<compile_context>
chip_gen: v7x
topology: tpu7x:2x2x1
jax: 0.10.0
libtpu: 0.0.40
codegen_flags: <defaults>
</compile_context>

<pallas_src>
import functools

import jax
import jax.numpy as jnp
from jax import lax
from jax.experimental import pallas as pl
from jax.experimental.pallas import tpu as pltpu

EPS = 1e-5
_TM_MAX = 512                    # max M-tile rows
_VMEM_LIMIT = 32 * 1024 * 1024   # safe on v5e/v6e/v7x; footprint is ~10 MiB


def _round_up(x, m):
    return (x + m - 1) // m * m


def _choose_tiles(m, min_tm=8, max_tm=_TM_MAX):
    """Pick (tm, nt): tm % 8 == 0, tm >= min_tm, nt*tm >= m, small padded
    tail (v5e), and nt >= 2 whenever possible (keeps both v7x cores busy)."""
    min_tm = _round_up(max(min_tm, 8), 8)
    max_tm = max(_round_up(max_tm, 8), min_tm)
    nt = max(2, -(-m // max_tm))
    tm = max(_round_up(-(-m // nt), 8), min_tm)
    nt = max(-(-m // tm), 1)
    return tm, nt


def _compiler_params():
    return pltpu.CompilerParams(dimension_semantics=("parallel",),
                                vmem_limit_bytes=_VMEM_LIMIT)


# ----------------------------------------------------------------------------
# In-kernel BN partial sums (sum / sum-of-squares packed into an (8, C) tile)
# and the tiny [C]-sized folding glue (training-mode BN -> per-channel affine)
# ----------------------------------------------------------------------------
def _partial_stat_rows(z, mask, shape):
    """(8, C): row 0 = sum(z*mask), row 1 = sum(z*z*mask), rows 2..7 = 0."""
    zm = z * mask
    s1 = jnp.sum(zm, axis=0, keepdims=True)
    s2 = jnp.sum(z * zm, axis=0, keepdims=True)
    row = lax.broadcasted_iota(jnp.int32, shape, 0)
    return jnp.where(row == 0, s1, jnp.where(row == 1, s2, 0.0))


def _bn_affine(partial, count, gamma, beta):
    """Fold per-tile partial sums into scale/shift (batch-stat BN)."""
    c = partial.shape[-1]
    st = partial.reshape(-1, 8, c)
    s1 = jnp.sum(st[:, 0, :], axis=0)
    s2 = jnp.sum(st[:, 1, :], axis=0)
    mu = s1 / count
    var = jnp.maximum(s2 / count - mu * mu, 0.0)   # biased (training) variance
    scale = gamma.astype(jnp.float32) * lax.rsqrt(var + EPS)
    shift = beta.astype(jnp.float32) - mu * scale
    return scale.reshape(1, c), shift.reshape(1, c)


# ----------------------------------------------------------------------------
# Frame-flat layout helpers (XLA side, all bf16 / tiny)
# ----------------------------------------------------------------------------
def _interior_mask(n, ho, wo):
    """[n*(ho+2)*(wo+2), 1] f32: 1 at interior pixels of the padded frame."""
    hf, wf = ho + 2, wo + 2
    idx = jnp.arange(hf * wf, dtype=jnp.int32)
    i, j = idx // wf, idx % wf
    m = ((i >= 1) & (i <= ho) & (j >= 1) & (j <= wo)).astype(jnp.float32)
    return jnp.tile(m, n).reshape(n * hf * wf, 1)


def _ext_tiles(flat, hpre, tm, nt, halo_p):
    """Row-tile a frame-flat array shifted down by `hpre` zero rows.

    Returns (cur [nt*tm, C], halo [nt, halo_p, C]); tile t's input slab is
    concat(cur[t*tm:(t+1)*tm], halo[t]) == shifted[t*tm : t*tm + tm + halo_p].
    """
    l, c = flat.shape
    total = (nt + 1) * tm
    ext = jnp.pad(flat, ((hpre, total - hpre - l), (0, 0)))
    cur = ext[:nt * tm]
    halo = ext[tm:].reshape(nt, tm, c)[:, :halo_p, :]
    return cur, halo


# ----------------------------------------------------------------------------
# Pass A: 3x3 stride-1 conv as 9 shifted MXU matmuls on a halo'd VMEM slab,
# with optional fused BN+ReLU prologue and optional fused 1x1 shortcut.
# ----------------------------------------------------------------------------
def _conv3x3_frame(x_flat, w_oihw, geom, prologue=None, shortcut=None):
    """x_flat: [N*F, Cin] bf16 frame-flat (F = (Ho+2)*(Wo+2)).

    prologue: None or (scale, shift) f32 [1, Cin] -- applies
              max(x*scale+shift, 0) * interior_mask to the loaded slab
              (fused BN+ReLU of the previous conv; also restores the zero
              padding ring).  Without a prologue the frame rows of x_flat
              must already be exact zeros.
    shortcut: None or (xs_flat [N*F, Cs] bf16, ws [Cs, Cout]).
    Returns ((z, stats[, zs, stats_s]), geometry dict); z/zs are [Mp, Cout]
    bf16 in frame-flat coordinates (frame rows garbage -> cropped later).
    """
    n, ho, wo = geom
    hf, wf = ho + 2, wo + 2
    f = hf * wf
    mv = n * f
    cin = x_flat.shape[1]
    cout = w_oihw.shape[0]

    hpre = wf + 1                      # shift so all 9 tap offsets are >= 0
    halo = 2 * wf + 2                  # largest tap offset
    halo_p = _round_up(halo, 8)
    tm, nt = _choose_tiles(mv, min_tm=halo_p)
    mp = nt * tm
    offs = [kh * wf + kw for kh in range(3) for kw in range(3)]

    inter = _interior_mask(n, ho, wo)                      # [mv, 1] f32
    mout = jnp.pad(inter, ((0, mp - mv), (0, 0)))          # stats mask
    cur, halo_arr = _ext_tiles(x_flat, hpre, tm, nt, halo_p)
    w9 = jnp.transpose(w_oihw, (2, 3, 1, 0)).reshape(9, cin, cout)
    w9 = w9.astype(jnp.bfloat16)

    in_specs = [pl.BlockSpec((tm, cin), lambda t: (t, 0)),
                pl.BlockSpec((1, halo_p, cin), lambda t: (t, 0, 0))]
    inputs = [cur, halo_arr]
    if prologue is not None:
        mcur, mhalo = _ext_tiles(inter, hpre, tm, nt, halo_p)
        sc_in, sh_in = prologue
        in_specs += [pl.BlockSpec((tm, 1), lambda t: (t, 0)),
                     pl.BlockSpec((1, halo_p, 1), lambda t: (t, 0, 0)),
                     pl.BlockSpec((1, cin), lambda t: (0, 0)),
                     pl.BlockSpec((1, cin), lambda t: (0, 0))]
        inputs += [mcur, mhalo, sc_in, sh_in]
    in_specs += [pl.BlockSpec((9, cin, cout), lambda t: (0, 0, 0)),
                 pl.BlockSpec((tm, 1), lambda t: (t, 0))]
    inputs += [w9, mout]

    out_shape = [jax.ShapeDtypeStruct((mp, cout), jnp.bfloat16),
                 jax.ShapeDtypeStruct((nt * 8, cout), jnp.float32)]
    out_specs = [pl.BlockSpec((tm, cout), lambda t: (t, 0)),
                 pl.BlockSpec((8, cout), lambda t: (t, 0))]
    if shortcut is not None:
        xs_flat, ws = shortcut
        cs = xs_flat.shape[1]
        in_specs += [pl.BlockSpec((tm, cs), lambda t: (t, 0)),
                     pl.BlockSpec((cs, cout), lambda t: (0, 0))]
        inputs += [jnp.pad(xs_flat, ((0, mp - xs_flat.shape[0]), (0, 0))),
                   ws.astype(jnp.bfloat16)]
        out_shape += [jax.ShapeDtypeStruct((mp, cout), jnp.bfloat16),
                      jax.ShapeDtypeStruct((nt * 8, cout), jnp.float32)]
        out_specs += [pl.BlockSpec((tm, cout), lambda t: (t, 0)),
                      pl.BlockSpec((8, cout), lambda t: (t, 0))]

    has_pro = prologue is not None
    has_sc = shortcut is not None

    def kernel(*refs):
        if has_pro:
            (cur_ref, halo_ref, mcur_ref, mhalo_ref, sc_ref, sh_ref,
             w_ref, mout_ref) = refs[:8]
            rest = refs[8:]
        else:
            cur_ref, halo_ref, w_ref, mout_ref = refs[:4]
            rest = refs[4:]
        if has_sc:
            xs_ref, ws_ref, z_ref, st_ref, zs_ref, sts_ref, slab_ref = rest
        else:
            z_ref, st_ref, slab_ref = rest

        # ---- stage the (tm + halo_p)-row slab in VMEM ----------------------
        if has_pro:
            # fused BN+ReLU of the previous conv; mask keeps the padding ring
            # (and any frame/tail garbage) at exact zero.
            sc = sc_ref[...]
            sh = sh_ref[...]
            yc = jnp.maximum(cur_ref[...].astype(jnp.float32) * sc + sh, 0.0)
            slab_ref[0:tm, :] = (yc * mcur_ref[...]).astype(slab_ref.dtype)
            yh = jnp.maximum(halo_ref[0].astype(jnp.float32) * sc + sh, 0.0)
            slab_ref[tm:tm + halo_p, :] = \
                (yh * mhalo_ref[0]).astype(slab_ref.dtype)
        else:
            slab_ref[0:tm, :] = cur_ref[...]
            slab_ref[tm:tm + halo_p, :] = halo_ref[0]

        # ---- 3x3 patches on the fly: 9 shifted MXU matmuls, f32 accum ------
        acc = None
        for k in range(9):
            lhs = slab_ref[offs[k]:offs[k] + tm, :]
            d = jnp.dot(lhs, w_ref[k], preferred_element_type=jnp.float32)
            acc = d if acc is None else acc + d

        mo = mout_ref[...]                       # (tm, 1) interior mask
        z_ref[...] = acc.astype(z_ref.dtype)     # bf16 store (stats from f32)
        st_ref[...] = _partial_stat_rows(acc, mo, st_ref.shape)

        if has_sc:
            zs = jnp.dot(xs_ref[...], ws_ref[...],
                         preferred_element_type=jnp.float32)
            zs_ref[...] = zs.astype(zs_ref.dtype)
            sts_ref[...] = _partial_stat_rows(zs, mo, sts_ref.shape)

    outs = pl.pallas_call(
        kernel,
        out_shape=tuple(out_shape),
        grid=(nt,),
        in_specs=in_specs,
        out_specs=tuple(out_specs),
        scratch_shapes=[pltpu.VMEM((tm + halo_p, cin), jnp.bfloat16)],
        compiler_params=_compiler_params(),
    )(*inputs)
    return outs, dict(tm=tm, nt=nt, mp=mp, mv=mv)


# ----------------------------------------------------------------------------
# Stopgap for the strided conv1: bf16 HBM im2col + tiled matmul + BN stats
# ----------------------------------------------------------------------------
def _im2col_3x3(x_nhwc, stride):
    """3x3 patches (padding=1), K ordering = (kh, kw, cin).  Built in bf16."""
    n, h, w, c = x_nhwc.shape
    ho = (h + 2 - 3) // stride + 1
    wo = (w + 2 - 3) // stride + 1
    xp = jnp.pad(x_nhwc, ((0, 0), (1, 1), (1, 1), (0, 0)))
    cols = []
    for kh in range(3):
        for kw in range(3):
            cols.append(xp[:, kh:kh + (ho - 1) * stride + 1:stride,
                              kw:kw + (wo - 1) * stride + 1:stride, :])
    patches = jnp.concatenate(cols, axis=-1)
    return patches.reshape(n * ho * wo, 9 * c), (n, ho, wo)


def _w3x3_to_mat(w_oihw):
    # [Cout, Cin, 3, 3] -> [9*Cin, Cout], K order (kh, kw, cin)
    return jnp.transpose(w_oihw, (2, 3, 1, 0)).reshape(-1, w_oihw.shape[0])


def _mm_stats_kernel(p_ref, w_ref, z_ref, st_ref):
    z = jnp.dot(p_ref[...], w_ref[...], preferred_element_type=jnp.float32)
    z_ref[...] = z.astype(z_ref.dtype)
    st_ref[...] = _partial_stat_rows(z, 1.0, st_ref.shape)


def _conv3x3_im2col(x_nhwc, w_oihw, stride):
    p, (n, ho, wo) = _im2col_3x3(x_nhwc, stride)       # bf16 patches
    m = n * ho * wo
    k = p.shape[1]
    cout = w_oihw.shape[0]
    tm, nt = _choose_tiles(m)
    mp = nt * tm
    pp = jnp.pad(p, ((0, mp - m), (0, 0)))
    wm = _w3x3_to_mat(w_oihw).astype(jnp.bfloat16)
    z, st = pl.pallas_call(
        _mm_stats_kernel,
        out_shape=(jax.ShapeDtypeStruct((mp, cout), jnp.bfloat16),
                   jax.ShapeDtypeStruct((nt * 8, cout), jnp.float32)),
        grid=(nt,),
        in_specs=[pl.BlockSpec((tm, k), lambda t: (t, 0)),
                  pl.BlockSpec((k, cout), lambda t: (0, 0))],
        out_specs=(pl.BlockSpec((tm, cout), lambda t: (t, 0)),
                   pl.BlockSpec((8, cout), lambda t: (t, 0))),
        compiler_params=_compiler_params(),
    )(pp, wm)
    return z, st, m


# ----------------------------------------------------------------------------
# Pass B: folded-BN affine [+ residual branch] + ReLU.  bf16 in / bf16 out,
# f32 element-wise math (v5e has no bf16 VALU).
# ----------------------------------------------------------------------------
def _bn_relu_kernel(z_ref, sc_ref, sh_ref, o_ref):
    y = z_ref[...].astype(jnp.float32) * sc_ref[...] + sh_ref[...]
    o_ref[...] = jnp.maximum(y, 0.0).astype(o_ref.dtype)


def _bn_add_relu_kernel(z_ref, sc_ref, sh_ref, zs_ref, scs_ref, shs_ref, o_ref):
    y = z_ref[...].astype(jnp.float32) * sc_ref[...] + sh_ref[...]
    ys = zs_ref[...].astype(jnp.float32) * scs_ref[...] + shs_ref[...]
    o_ref[...] = jnp.maximum(y + ys, 0.0).astype(o_ref.dtype)


def _bn_relu_apply(z, scale, shift, tm):
    mp, c = z.shape
    nt = mp // tm
    return pl.pallas_call(
        _bn_relu_kernel,
        out_shape=jax.ShapeDtypeStruct((mp, c), jnp.bfloat16),
        grid=(nt,),
        in_specs=[pl.BlockSpec((tm, c), lambda t: (t, 0)),
                  pl.BlockSpec((1, c), lambda t: (0, 0)),
                  pl.BlockSpec((1, c), lambda t: (0, 0))],
        out_specs=pl.BlockSpec((tm, c), lambda t: (t, 0)),
        compiler_params=_compiler_params(),
    )(z, scale, shift)


def _bn_add_relu_apply(z, scale, shift, zs, scale_s, shift_s, tm):
    mp, c = z.shape
    nt = mp // tm
    return pl.pallas_call(
        _bn_add_relu_kernel,
        out_shape=jax.ShapeDtypeStruct((mp, c), jnp.bfloat16),
        grid=(nt,),
        in_specs=[pl.BlockSpec((tm, c), lambda t: (t, 0)),
                  pl.BlockSpec((1, c), lambda t: (0, 0)),
                  pl.BlockSpec((1, c), lambda t: (0, 0)),
                  pl.BlockSpec((tm, c), lambda t: (t, 0)),
                  pl.BlockSpec((1, c), lambda t: (0, 0)),
                  pl.BlockSpec((1, c), lambda t: (0, 0))],
        out_specs=pl.BlockSpec((tm, c), lambda t: (t, 0)),
        compiler_params=_compiler_params(),
    )(z, scale, shift, zs, scale_s, shift_s)


# ----------------------------------------------------------------------------
# BasicBlock forward
# ----------------------------------------------------------------------------
def basic_block_forward(x_nchw, params, stride, downsample):
    """Forward pass of BasicBlock (PyTorch semantics, batch-statistics BN)."""
    x = jnp.transpose(x_nchw, (0, 2, 3, 1)).astype(jnp.bfloat16)   # NHWC bf16
    n, h, w, c_in = x.shape
    c_out = params["w1"].shape[0]
    ho = (h + 2 - 3) // stride + 1
    wo = (w + 2 - 3) // stride + 1
    hf, wf = ho + 2, wo + 2
    mv = n * hf * wf                          # frame-flat rows
    m_valid = n * ho * wo                     # true BN element count / channel

    # ---- conv1 (+ BN1 partial stats); conv biases dropped (BN cancels) -----
    if stride == 1:
        xf = jnp.pad(x, ((0, 0), (1, 1), (1, 1), (0, 0))).reshape(mv, c_in)
        (z1, st1), _ = _conv3x3_frame(xf, params["w1"], (n, ho, wo))
        z1_frame = z1[:mv]
    else:
        # TODO(synk): phase-split flat-shift to kill this last HBM im2col.
        z1, st1, mo1 = _conv3x3_im2col(x, params["w1"], stride)
        z1_frame = jnp.pad(z1[:mo1].reshape(n, ho, wo, c_out),
                           ((0, 0), (1, 1), (1, 1), (0, 0))).reshape(mv, c_out)
    sc1, sh1 = _bn_affine(st1, m_valid, params["g1"], params["be1"])

    # ---- conv2 pass A with fused BN1+ReLU prologue [+ 1x1 shortcut] --------
    if downsample:
        if stride != 1 or c_in != c_out:
            ws = params["ws"].reshape(c_out, c_in).T           # [Cin, Cout]
        else:
            ws = jnp.eye(c_in, dtype=jnp.bfloat16)             # identity add
        xs = x[:, ::stride, ::stride, :]
        xs_f = jnp.pad(xs, ((0, 0), (1, 1), (1, 1), (0, 0))).reshape(mv, c_in)
        (z2, st2, zs, sts), g2 = _conv3x3_frame(
            z1_frame, params["w2"], (n, ho, wo),
            prologue=(sc1, sh1), shortcut=(xs_f, ws))
        sc2, sh2 = _bn_affine(st2, m_valid, params["g2"], params["be2"])
        if stride != 1 or c_in != c_out:
            scs, shs = _bn_affine(sts, m_valid, params["gs"], params["bes"])
        else:                                                  # plain residual
            scs = jnp.ones((1, c_out), jnp.float32)
            shs = jnp.zeros((1, c_out), jnp.float32)
        out = _bn_add_relu_apply(z2, sc2, sh2, zs, scs, shs, g2["tm"])
    else:
        # Torch spec: no residual add when downsample is False.
        (z2, st2), g2 = _conv3x3_frame(z1_frame, params["w2"], (n, ho, wo),
                                       prologue=(sc1, sh1))
        sc2, sh2 = _bn_affine(st2, m_valid, params["g2"], params["be2"])
        out = _bn_relu_apply(z2, sc2, sh2, g2["tm"])

    # crop the frame ring, back to NCHW f32
    out = out[:mv].reshape(n, hf, wf, c_out)[:, 1:1 + ho, 1:1 + wo, :]
    return jnp.transpose(out, (0, 3, 1, 2)).astype(jnp.float32)


# ----------------------------------------------------------------------------
# Pure-JAX reference (bf16 conv inputs, f32 BN, conv bias included -- the
# bias cancels exactly under batch-statistics BN, which the kernel exploits).
# ----------------------------------------------------------------------------
def _ref_bn_train(x, g, b):
    mu = x.mean(axis=(0, 2, 3), keepdims=True)
    var = x.var(axis=(0, 2, 3), keepdims=True)             # biased, training
    return (x - mu) / jnp.sqrt(var + EPS) * g.reshape(1, -1, 1, 1) \
        + b.reshape(1, -1, 1, 1)


def _ref_conv(x, w, strides, pad):
    return lax.conv_general_dilated(
        x.astype(jnp.bfloat16), w.astype(jnp.bfloat16), strides, pad,
        dimension_numbers=("NCHW", "OIHW", "NCHW"),
        preferred_element_type=jnp.float32)


def _ref_forward(x, p, stride, downsample):
    y = _ref_conv(x, p["w1"], (stride, stride), ((1, 1), (1, 1)))
    y = y + p["b1"].reshape(1, -1, 1, 1)
    y = jnp.maximum(_ref_bn_train(y, p["g1"], p["be1"]), 0.0)
    y2 = _ref_conv(y, p["w2"], (1, 1), ((1, 1), (1, 1)))
    y2 = y2 + p["b2"].reshape(1, -1, 1, 1)
    y2 = _ref_bn_train(y2, p["g2"], p["be2"])
    if downsample:
        if stride != 1 or p["w1"].shape[1] != p["w1"].shape[0]:
            s = _ref_conv(x, p["ws"], (stride, stride), ((0, 0), (0, 0)))
            y2 = y2 + _ref_bn_train(s, p["gs"], p["bes"])
        else:
            y2 = y2 + x
    return jnp.maximum(y2, 0.0)


# ----------------------------------------------------------------------------
if __name__ == "__main__":
    key = jax.random.PRNGKey(0)
    n, c_in, c_out, h, w = 2, 8, 16, 16, 16

    k = jax.random.split(key, 6)
    x = jax.random.normal(k[0], (n, c_in, h, w), dtype=jnp.float32)
    params = {
        "w1": 0.1 * jax.random.normal(k[1], (c_out, c_in, 3, 3), jnp.float32),
        "b1": 0.1 * jax.random.normal(k[2], (c_out,), jnp.float32),
        "g1": jnp.ones((c_out,), jnp.float32),
        "be1": jnp.zeros((c_out,), jnp.float32),
        "w2": 0.1 * jax.random.normal(k[3], (c_out, c_out, 3, 3), jnp.float32),
        "b2": 0.1 * jax.random.normal(k[4], (c_out,), jnp.float32),
        "g2": jnp.ones((c_out,), jnp.float32),
        "be2": jnp.zeros((c_out,), jnp.float32),
        "ws": 0.1 * jax.random.normal(k[5], (c_out, c_in, 1, 1), jnp.float32),
        "gs": jnp.ones((c_out,), jnp.float32),
        "bes": jnp.zeros((c_out,), jnp.float32),
    }

    # tolerance covers the deliberate bf16 storage of conv intermediates
    tol = dict(rtol=3e-2, atol=3e-2)

    # --- config A: stride=2, downsample with 1x1-conv shortcut ---------------
    fwd_a = jax.jit(functools.partial(basic_block_forward,
                                      stride=2, downsample=True))
    out_a = jax.block_until_ready(fwd_a(x, params))
    ref_a = _ref_forward(x, params, 2, True)
    assert out_a.shape == (n, c_out, h // 2, w // 2), out_a.shape
    assert jnp.allclose(out_a, ref_a, **tol), \
        float(jnp.max(jnp.abs(out_a - ref_a)))

    # --- config B: stride=1, no shortcut (matches the torch module) ----------
    fwd_b = jax.jit(functools.partial(basic_block_forward,
                                      stride=1, downsample=False))
    out_b = jax.block_until_ready(fwd_b(x, params))
    ref_b = _ref_forward(x, params, 1, False)
    assert out_b.shape == (n, c_out, h, w), out_b.shape
    assert jnp.allclose(out_b, ref_b, **tol), \
        float(jnp.max(jnp.abs(out_b - ref_b)))

    print("KERNEL_OK")
</pallas_src>

<mosaic_0001>
module attributes {stable_mosaic.version = 11 : i64} {
  func.func @_mm_stats_kernel(%arg0: i32, %arg1: memref<64x72xbf16, #tpu.memory_space<vmem>>, %arg2: memref<72x16xbf16, #tpu.memory_space<vmem>>, %arg3: memref<64x16xbf16, #tpu.memory_space<vmem>>, %arg4: memref<8x16xf32, #tpu.memory_space<vmem>>) attributes {dimension_semantics = [#tpu.dimension_semantics<parallel>], iteration_bounds = array<i64: 2>, scalar_prefetch = 0 : i64, scratch_operands = 0 : i64, tpu.core_type = #tpu.core_type<tc>, window_params = [{transform_indices = @transform_0, window_bounds = array<i64: 64, 72>}, {pipeline_mode = #tpu.pipeline_mode<synchronous>, transform_indices = @transform_1, window_bounds = array<i64: 72, 16>}, {transform_indices = @transform_2, window_bounds = array<i64: 64, 16>}, {transform_indices = @transform_3, window_bounds = array<i64: 8, 16>}]} {
    %c0 = arith.constant 0 : index
    %c0_0 = arith.constant 0 : index
    %0 = vector.load %arg1[%c0, %c0_0] : memref<64x72xbf16, #tpu.memory_space<vmem>>, vector<64x72xbf16>
    %c0_1 = arith.constant 0 : index
    %c0_2 = arith.constant 0 : index
    %1 = vector.load %arg2[%c0_1, %c0_2] : memref<72x16xbf16, #tpu.memory_space<vmem>>, vector<72x16xbf16>
    %cst = arith.constant dense<0.000000e+00> : vector<64x16xf32>
    %2 = tpu.matmul %0, %1, %cst {dimension_numbers = #tpu.dot_dimension_numbers<[1], [0], [0], [1], [0, 0, 1, 1], [], []>} : vector<64x72xbf16>, vector<72x16xbf16>, vector<64x16xf32> -> vector<64x16xf32>
    %3 = arith.truncf %2 : vector<64x16xf32> to vector<64x16xbf16>
    %c0_3 = arith.constant 0 : index
    %c0_4 = arith.constant 0 : index
    %4 = vector.load %arg3[%c0_3, %c0_4] : memref<64x16xbf16, #tpu.memory_space<vmem>>, vector<64x16xbf16>
    tpu.vector_store %arg3[%c0_3, %c0_4], %3 {strides = array<i32>} : memref<64x16xbf16, #tpu.memory_space<vmem>>, vector<64x16xbf16>,
    %cst_5 = arith.constant 1.000000e+00 : f32
    %5 = vector.broadcast %cst_5 : f32 to vector<64x16xf32>
    %6 = arith.mulf %2, %5 : vector<64x16xf32>
    %cst_6 = arith.constant dense<0.000000e+00> : vector<16xf32>
    %7 = vector.multi_reduction <add>, %6, %cst_6 [0] : vector<64x16xf32> to vector<16xf32>
    %8 = vector.shape_cast %7 : vector<16xf32> to vector<1x16xf32>
    %9 = arith.mulf %2, %6 : vector<64x16xf32>
    %cst_7 = arith.constant dense<0.000000e+00> : vector<16xf32>
    %10 = vector.multi_reduction <add>, %9, %cst_7 [0] : vector<64x16xf32> to vector<16xf32>
    %11 = vector.shape_cast %10 : vector<16xf32> to vector<1x16xf32>
    %12 = tpu.iota {dimensions = array<i32: 0>} : vector<8x16xi32>
    %c0_i32 = arith.constant 0 : i32
    %13 = vector.broadcast %c0_i32 : i32 to vector<8x16xi32>
    %14 = arith.cmpi eq, %12, %13 : vector<8x16xi32>
    %c1_i32 = arith.constant 1 : i32
    %15 = vector.broadcast %c1_i32 : i32 to vector<8x16xi32>
    %16 = arith.cmpi eq, %12, %15 : vector<8x16xi32>
    %cst_8 = arith.constant 0.000000e+00 : f32
    %17 = vector.shape_cast %11 : vector<1x16xf32> to vector<1x16xf32>
    %18 = vector.broadcast %17 : vector<1x16xf32> to vector<8x16xf32>
    %19 = vector.broadcast %cst_8 : f32 to vector<8x16xf32>
    %20 = arith.select %16, %18, %19 : vector<8x16xi1>, vector<8x16xf32>
    %21 = vector.shape_cast %8 : vector<1x16xf32> to vector<1x16xf32>
    %22 = vector.broadcast %21 : vector<1x16xf32> to vector<8x16xf32>
    %23 = arith.select %14, %22, %20 : vector<8x16xi1>, vector<8x16xf32>
    %c0_9 = arith.constant 0 : index
    %c0_10 = arith.constant 0 : index
    %24 = vector.load %arg4[%c0_9, %c0_10] : memref<8x16xf32, #tpu.memory_space<vmem>>, vector<8x16xf32>
    tpu.vector_store %arg4[%c0_9, %c0_10], %23 {strides = array<i32>} : memref<8x16xf32, #tpu.memory_space<vmem>>, vector<8x16xf32>,
    return
  }
  func.func @transform_0(%arg0: i32) -> (i32, i32) {
    %c0_i32 = arith.constant 0 : i32
    %c0_i32_0 = arith.constant 0 : i32
    return %arg0, %c0_i32 : i32, i32
  }
  func.func @transform_1(%arg0: i32) -> (i32, i32) {
    %c0_i32 = arith.constant 0 : i32
    %c0_i32_0 = arith.constant 0 : i32
    %c0_i32_1 = arith.constant 0 : i32
    return %c0_i32, %c0_i32_0 : i32, i32
  }
  func.func @transform_2(%arg0: i32) -> (i32, i32) {
    %c0_i32 = arith.constant 0 : i32
    %c0_i32_0 = arith.constant 0 : i32
    return %arg0, %c0_i32 : i32, i32
  }
  func.func @transform_3(%arg0: i32) -> (i32, i32) {
    %c0_i32 = arith.constant 0 : i32
    %c0_i32_0 = arith.constant 0 : i32
    return %arg0, %c0_i32 : i32, i32
  }
}

module attributes {stable_mosaic.version = 11 : i64} {
  func.func @kernel(%arg0: i32, %arg1: memref<104x16xbf16, #tpu.memory_space<vmem>>, %arg2: memref<1x24x16xbf16, #tpu.memory_space<vmem>>, %arg3: memref<104x1xf32, #tpu.memory_space<vmem>>, %arg4: memref<1x24x1xf32, #tpu.memory_space<vmem>>, %arg5: memref<1x16xf32, #tpu.memory_space<vmem>>, %arg6: memref<1x16xf32, #tpu.memory_space<vmem>>, %arg7: memref<9x16x16xbf16, #tpu.memory_space<vmem>>, %arg8: memref<104x1xf32, #tpu.memory_space<vmem>>, %arg9: memref<104x8xbf16, #tpu.memory_space<vmem>>, %arg10: memref<8x16xbf16, #tpu.memory_space<vmem>>, %arg11: memref<104x16xbf16, #tpu.memory_space<vmem>>, %arg12: memref<8x16xf32, #tpu.memory_space<vmem>>, %arg13: memref<104x16xbf16, #tpu.memory_space<vmem>>, %arg14: memref<8x16xf32, #tpu.memory_space<vmem>>, %arg15: memref<128x16xbf16, #tpu.memory_space<vmem>>) attributes {dimension_semantics = [#tpu.dimension_semantics<parallel>], iteration_bounds = array<i64: 2>, scalar_prefetch = 0 : i64, scratch_operands = 1 : i64, tpu.core_type = #tpu.core_type<tc>, window_params = [{transform_indices = @transform_0, window_bounds = array<i64: 104, 16>}, {transform_indices = @transform_1, window_bounds = array<i64: 1, 24, 16>}, {transform_indices = @transform_2, window_bounds = array<i64: 104, 1>}, {transform_indices = @transform_3, window_bounds = array<i64: 1, 24, 1>}, {pipeline_mode = #tpu.pipeline_mode<synchronous>, transform_indices = @transform_4, window_bounds = array<i64: 1, 16>}, {pipeline_mode = #tpu.pipeline_mode<synchronous>, transform_indices = @transform_5, window_bounds = array<i64: 1, 16>}, {pipeline_mode = #tpu.pipeline_mode<synchronous>, transform_indices = @transform_6, window_bounds = array<i64: 9, 16, 16>}, {transform_indices = @transform_7, window_bounds = array<i64: 104, 1>}, {transform_indices = @transform_8, window_bounds = array<i64: 104, 8>}, {pipeline_mode = #tpu.pipeline_mode<synchronous>, transform_indices = @transform_9, window_bounds = array<i64: 8, 16>}, {transform_indices = @transform_10, window_bounds = array<i64: 104, 16>}, {transform_indices = @transform_11, window_bounds = array<i64: 8, 16>}, {transform_indices = @transform_12, window_bounds = array<i64: 104, 16>}, {transform_indices = @transform_13, window_bounds = array<i64: 8, 16>}]} {
    %c0 = arith.constant 0 : index
    %c0_0 = arith.constant 0 : index
    %0 = vector.load %arg5[%c0, %c0_0] : memref<1x16xf32, #tpu.memory_space<vmem>>, vector<1x16xf32>
    %c0_1 = arith.constant 0 : index
    %c0_2 = arith.constant 0 : index
    %1 = vector.load %arg6[%c0_1, %c0_2] : memref<1x16xf32, #tpu.memory_space<vmem>>, vector<1x16xf32>
    %c0_3 = arith.constant 0 : index
    %c0_4 = arith.constant 0 : index
    %2 = vector.load %arg1[%c0_3, %c0_4] : memref<104x16xbf16, #tpu.memory_space<vmem>>, vector<104x16xbf16>
    %3 = arith.extf %2 : vector<104x16xbf16> to vector<104x16xf32>
    %4 = vector.broadcast %0 : vector<1x16xf32> to vector<104x16xf32>
    %5 = arith.mulf %3, %4 : vector<104x16xf32>
    %6 = vector.broadcast %1 : vector<1x16xf32> to vector<104x16xf32>
    %7 = arith.addf %5, %6 : vector<104x16xf32>
    %cst = arith.constant 0.000000e+00 : f32
    %8 = vector.broadcast %cst : f32 to vector<104x16xf32>
    %9 = arith.maximumf %7, %8 : vector<104x16xf32>
    %c0_5 = arith.constant 0 : index
    %c0_6 = arith.constant 0 : index
    %10 = vector.load %arg3[%c0_5, %c0_6] : memref<104x1xf32, #tpu.memory_space<vmem>>, vector<104x1xf32>
    %11 = vector.broadcast %10 : vector<104x1xf32> to vector<104x16xf32>
    %12 = arith.mulf %9, %11 : vector<104x16xf32>
    %13 = arith.truncf %12 : vector<104x16xf32> to vector<104x16xbf16>
    %c0_7 = arith.constant 0 : index
    %c0_8 = arith.constant 0 : index
    %14 = vector.load %arg15[%c0_7, %c0_8] : memref<128x16xbf16, #tpu.memory_space<vmem>>, vector<104x16xbf16>
    tpu.vector_store %arg15[%c0_7, %c0_8], %13 {strides = array<i32>} : memref<128x16xbf16, #tpu.memory_space<vmem>>, vector<104x16xbf16>,
    %c0_9 = arith.constant 0 : index
    %c0_10 = arith.constant 0 : index
    %c0_11 = arith.constant 0 : index
    %15 = vector.load %arg2[%c0_9, %c0_10, %c0_11] : memref<1x24x16xbf16, #tpu.memory_space<vmem>>, vector<1x24x16xbf16>
    %16 = vector.shape_cast %15 : vector<1x24x16xbf16> to vector<24x16xbf16>
    %17 = arith.extf %16 : vector<24x16xbf16> to vector<24x16xf32>
    %18 = vector.broadcast %0 : vector<1x16xf32> to vector<24x16xf32>
    %19 = arith.mulf %17, %18 : vector<24x16xf32>
    %20 = vector.broadcast %1 : vector<1x16xf32> to vector<24x16xf32>
    %21 = arith.addf %19, %20 : vector<24x16xf32>
    %cst_12 = arith.constant 0.000000e+00 : f32
    %22 = vector.broadcast %cst_12 : f32 to vector<24x16xf32>
    %23 = arith.maximumf %21, %22 : vector<24x16xf32>
    %c0_13 = arith.constant 0 : index
    %c0_14 = arith.constant 0 : index
    %c0_15 = arith.constant 0 : index
    %24 = vector.load %arg4[%c0_13, %c0_14, %c0_15] : memref<1x24x1xf32, #tpu.memory_space<vmem>>, vector<1x24x1xf32>
    %25 = vector.shape_cast %24 : vector<1x24x1xf32> to vector<24x1xf32>
    %26 = vector.broadcast %25 : vector<24x1xf32> to vector<24x16xf32>
    %27 = arith.mulf %23, %26 : vector<24x16xf32>
    %28 = arith.truncf %27 : vector<24x16xf32> to vector<24x16xbf16>
    %c104 = arith.constant 104 : index
    %c0_16 = arith.constant 0 : index
    %29 = vector.load %arg15[%c104, %c0_16] : memref<128x16xbf16, #tpu.memory_space<vmem>>, vector<24x16xbf16>
    tpu.vector_store %arg15[%c104, %c0_16], %28 {strides = array<i32>} : memref<128x16xbf16, #tpu.memory_space<vmem>>, vector<24x16xbf16>,
    %c0_17 = arith.constant 0 : index
    %c0_18 = arith.constant 0 : index
    %30 = vector.load %arg15[%c0_17, %c0_18] : memref<128x16xbf16, #tpu.memory_space<vmem>>, vector<104x16xbf16>
    %c0_19 = arith.constant 0 : index
    %c0_20 = arith.constant 0 : index
    %c0_21 = arith.constant 0 : index
    %31 = vector.load %arg7[%c0_19, %c0_20, %c0_21] : memref<9x16x16xbf16, #tpu.memory_space<vmem>>, vector<1x16x16xbf16>
    %32 = vector.shape_cast %31 : vector<1x16x16xbf16> to vector<16x16xbf16>
    %cst_22 = arith.constant dense<0.000000e+00> : vector<104x16xf32>
    %33 = tpu.matmul %30, %32, %cst_22 {dimension_numbers = #tpu.dot_dimension_numbers<[1], [0], [0], [1], [0, 0, 1, 1], [], []>} : vector<104x16xbf16>, vector<16x16xbf16>, vector<104x16xf32> -> vector<104x16xf32>
    %c1 = arith.constant 1 : index
    %c0_23 = arith.constant 0 : index
    %34 = vector.load %arg15[%c1, %c0_23] : memref<128x16xbf16, #tpu.memory_space<vmem>>, vector<104x16xbf16>
    %c1_24 = arith.constant 1 : index
    %c0_25 = arith.constant 0 : index
    %c0_26 = arith.constant 0 : index
    %35 = vector.load %arg7[%c1_24, %c0_25, %c0_26] : memref<9x16x16xbf16, #tpu.memory_space<vmem>>, vector<1x16x16xbf16>
    %36 = vector.shape_cast %35 : vector<1x16x16xbf16> to vector<16x16xbf16>
    %cst_27 = arith.constant dense<0.000000e+00> : vector<104x16xf32>
    %37 = tpu.matmul %34, %36, %cst_27 {dimension_numbers = #tpu.dot_dimension_numbers<[1], [0], [0], [1], [0, 0, 1, 1], [], []>} : vector<104x16xbf16>, vector<16x16xbf16>, vector<104x16xf32> -> vector<104x16xf32>
    %38 = arith.addf %33, %37 : vector<104x16xf32>
    %c2 = arith.constant 2 : index
    %c0_28 = arith.constant 0 : index
    %39 = vector.load %arg15[%c2, %c0_28] : memref<128x16xbf16, #tpu.memory_space<vmem>>, vector<104x16xbf16>
    %c2_29 = arith.constant 2 : index
    %c0_30 = arith.constant 0 : index
    %c0_31 = arith.constant 0 : index
    %40 = vector.load %arg7[%c2_29, %c0_30, %c0_31] : memref<9x16x16xbf16, #tpu.memory_space<vmem>>, vector<1x16x16xbf16>
    %41 = vector.shape_cast %40 : vector<1x16x16xbf16> to vector<16x16xbf16>
    %cst_32 = arith.constant dense<0.000000e+00> : vector<104x16xf32>
    %42 = tpu.matmul %39, %41, %cst_32 {dimension_numbers = #tpu.dot_dimension_numbers<[1], [0], [0], [1], [0, 0, 1, 1], [], []>} : vector<104x16xbf16>, vector<16x16xbf16>, vector<104x16xf32> -> vector<104x16xf32>
    %43 = arith.addf %38, %42 : vector<104x16xf32>
    %c10 = arith.constant 10 : index
    %c0_33 = arith.constant 0 : index
    %44 = vector.load %arg15[%c10, %c0_33] : memref<128x16xbf16, #tpu.memory_space<vmem>>, vector<104x16xbf16>
    %c3 = arith.constant 3 : index
    %c0_34 = arith.constant 0 : index
    %c0_35 = arith.constant 0 : index
    %45 = vector.load %arg7[%c3, %c0_34, %c0_35] : memref<9x16x16xbf16, #tpu.memory_space<vmem>>, vector<1x16x16xbf16>
    %46 = vector.shape_cast %45 : vector<1x16x16xbf16> to vector<16x16xbf16>
    %cst_36 = arith.constant dense<0.000000e+00> : vector<104x16xf32>
    %47 = tpu.matmul %44, %46, %cst_36 {dimension_numbers = #tpu.dot_dimension_numbers<[1], [0], [0], [1], [0, 0, 1, 1], [], []>} : vector<104x16xbf16>, vector<16x16xbf16>, vector<104x16xf32> -> vector<104x16xf32>
    %48 = arith.addf %43, %47 : vector<104x16xf32>
    %c11 = arith.constant 11 : index
    %c0_37 = arith.constant 0 : index
    %49 = vector.load %arg15[%c11, %c0_37] : memref<128x16xbf16, #tpu.memory_space<vmem>>, vector<104x16xbf16>
    %c4 = arith.constant 4 : index
    %c0_38 = arith.constant 0 : index
    %c0_39 = arith.constant 0 : index
    %50 = vector.load %arg7[%c4, %c0_38, %c0_39] : memref<9x16x16xbf16, #tpu.memory_space<vmem>>, vector<1x16x16xbf16>
    %51 = vector.shape_cast %50 : vector<1x16x16xbf16> to vector<16x16xbf16>
    %cst_40 = arith.constant dense<0.000000e+00> : vector<104x16xf32>
    %52 = tpu.matmul %49, %51, %cst_40 {dimension_numbers = #tpu.dot_dimension_numbers<[1], [0], [0], [1], [0, 0, 1, 1], [], []>} : vector<104x16xbf16>, vector<16x16xbf16>, vector<104x16xf32> -> vector<104x16xf32>
    %53 = arith.addf %48, %52 : vector<104x16xf32>
    %c12 = arith.constant 12 : index
    %c0_41 = arith.constant 0 : index
    %54 = vector.load %arg15[%c12, %c0_41] : memref<128x16xbf16, #tpu.memory_space<vmem>>, vector<104x16xbf16>
    %c5 = arith.constant 5 : index
    %c0_42 = arith.constant 0 : index
    %c0_43 = arith.constant 0 : index
    %55 = vector.load %arg7[%c5, %c0_42, %c0_43] : memref<9x16x16xbf16, #tpu.memory_space<vmem>>, vector<1x16x16xbf16>
    %56 = vector.shape_cast %55 : vector<1x16x16xbf16> to vector<16x16xbf16>
    %cst_44 = arith.constant dense<0.000000e+00> : vector<104x16xf32>
    %57 = tpu.matmul %54, %56, %cst_44 {dimension_numbers = #tpu.dot_dimension_numbers<[1], [0], [0], [1], [0, 0, 1, 1], [], []>} : vector<104x16xbf16>, vector<16x16xbf16>, vector<104x16xf32> -> vector<104x16xf32>
    %58 = arith.addf %53, %57 : vector<104x16xf32>
    %c20 = arith.constant 20 : index
    %c0_45 = arith.constant 0 : index
    %59 = vector.load %arg15[%c20, %c0_45] : memref<128x16xbf16, #tpu.memory_space<vmem>>, vector<104x16xbf16>
    %c6 = arith.constant 6 : index
    %c0_46 = arith.constant 0 : index
    %c0_47 = arith.constant 0 : index
    %60 = vector.load %arg7[%c6, %c0_46, %c0_47] : memref<9x16x16xbf16, #tpu.memory_space<vmem>>, vector<1x16x16xbf16>
    %61 = vector.shape_cast %60 : vector<1x16x16xbf16> to vector<16x16xbf16>
    %cst_48 = arith.constant dense<0.000000e+00> : vector<104x16xf32>
    %62 = tpu.matmul %59, %61, %cst_48 {dimension_numbers = #tpu.dot_dimension_numbers<[1], [0], [0], [1], [0, 0, 1, 1], [], []>} : vector<104x16xbf16>, vector<16x16xbf16>, vector<104x16xf32> -> vector<104x16xf32>
    %63 = arith.addf %58, %62 : vector<104x16xf32>
    %c21 = arith.constant 21 : index
    %c0_49 = arith.constant 0 : index
    %64 = vector.load %arg15[%c21, %c0_49] : memref<128x16xbf16, #tpu.memory_space<vmem>>, vector<104x16xbf16>
    %c7 = arith.constant 7 : index
    %c0_50 = arith.constant 0 : index
    %c0_51 = arith.constant 0 : index
    %65 = vector.load %arg7[%c7, %c0_50, %c0_51] : memref<9x16x16xbf16, #tpu.memory_space<vmem>>, vector<1x16x16xbf16>
    %66 = vector.shape_cast %65 : vector<1x16x16xbf16> to vector<16x16xbf16>
    %cst_52 = arith.constant dense<0.000000e+00> : vector<104x16xf32>
    %67 = tpu.matmul %64, %66, %cst_52 {dimension_numbers = #tpu.dot_dimension_numbers<[1], [0], [0], [1], [0, 0, 1, 1], [], []>} : vector<104x16xbf16>, vector<16x16xbf16>, vector<104x16xf32> -> vector<104x16xf32>
    %68 = arith.addf %63, %67 : vector<104x16xf32>
    %c22 = arith.constant 22 : index
    %c0_53 = arith.constant 0 : index
    %69 = vector.load %arg15[%c22, %c0_53] : memref<128x16xbf16, #tpu.memory_space<vmem>>, vector<104x16xbf16>
    %c8 = arith.constant 8 : index
    %c0_54 = arith.constant 0 : index
    %c0_55 = arith.constant 0 : index
    %70 = vector.load %arg7[%c8, %c0_54, %c0_55] : memref<9x16x16xbf16, #tpu.memory_space<vmem>>, vector<1x16x16xbf16>
    %71 = vector.shape_cast %70 : vector<1x16x16xbf16> to vector<16x16xbf16>
    %cst_56 = arith.constant dense<0.000000e+00> : vector<104x16xf32>
    %72 = tpu.matmul %69, %71, %cst_56 {dimension_numbers = #tpu.dot_dimension_numbers<[1], [0], [0], [1], [0, 0, 1, 1], [], []>} : vector<104x16xbf16>, vector<16x16xbf16>, vector<104x16xf32> -> vector<104x16xf32>
    %73 = arith.addf %68, %72 : vector<104x16xf32>
    %c0_57 = arith.constant 0 : index
    %c0_58 = arith.constant 0 : index
    %74 = vector.load %arg8[%c0_57, %c0_58] : memref<104x1xf32, #tpu.memory_space<vmem>>, vector<104x1xf32>
    %75 = arith.truncf %73 : vector<104x16xf32> to vector<104x16xbf16>
    %c0_59 = arith.constant 0 : index
    %c0_60 = arith.constant 0 : index
    %76 = vector.load %arg11[%c0_59, %c0_60] : memref<104x16xbf16, #tpu.memory_space<vmem>>, vector<104x16xbf16>
    tpu.vector_store %arg11[%c0_59, %c0_60], %75 {strides = array<i32>} : memref<104x16xbf16, #tpu.memory_space<vmem>>, vector<104x16xbf16>,
    %77 = vector.broadcast %74 : vector<104x1xf32> to vector<104x16xf32>
    %78 = arith.mulf %73, %77 : vector<104x16xf32>
    %cst_61 = arith.constant dense<0.000000e+00> : vector<16xf32>
    %79 = vector.multi_reduction <add>, %78, %cst_61 [0] : vector<104x16xf32> to vector<16xf32>
    %80 = vector.shape_cast %79 : vector<16xf32> to vector<1x16xf32>
    %81 = arith.mulf %73, %78 : vector<104x16xf32>
    %cst_62 = arith.constant dense<0.000000e+00> : vector<16xf32>
    %82 = vector.multi_reduction <add>, %81, %cst_62 [0] : vector<104x16xf32> to vector<16xf32>
    %83 = vector.shape_cast %82 : vector<16xf32> to vector<1x16xf32>
    %84 = tpu.iota {dimensions = array<i32: 0>} : vector<8x16xi32>
    %c0_i32 = arith.constant 0 : i32
    %85 = vector.broadcast %c0_i32 : i32 to vector<8x16xi32>
    %86 = arith.cmpi eq, %84, %85 : vector<8x16xi32>
    %c1_i32 = arith.constant 1 : i32
    %87 = vector.broadcast %c1_i32 : i32 to vector<8x16xi32>
    %88 = arith.cmpi eq, %84, %87 : vector<8x16xi32>
    %cst_63 = arith.constant 0.000000e+00 : f32
    %89 = vector.shape_cast %83 : vector<1x16xf32> to vector<1x16xf32>
    %90 = vector.broadcast %89 : vector<1x16xf32> to vector<8x16xf32>
    %91 = vector.broadcast %cst_63 : f32 to vector<8x16xf32>
    %92 = arith.select %88, %90, %91 : vector<8x16xi1>, vector<8x16xf32>
    %93 = vector.shape_cast %80 : vector<1x16xf32> to vector<1x16xf32>
    %94 = vector.broadcast %93 : vector<1x16xf32> to vector<8x16xf32>
    %95 = arith.select %86, %94, %92 : vector<8x16xi1>, vector<8x16xf32>
    %c0_64 = arith.constant 0 : index
    %c0_65 = arith.constant 0 : index
    %96 = vector.load %arg12[%c0_64, %c0_65] : memref<8x16xf32, #tpu.memory_space<vmem>>, vector<8x16xf32>
    tpu.vector_store %arg12[%c0_64, %c0_65], %95 {strides = array<i32>} : memref<8x16xf32, #tpu.memory_space<vmem>>, vector<8x16xf32>,
    %c0_66 = arith.constant 0 : index
    %c0_67 = arith.constant 0 : index
    %97 = vector.load %arg9[%c0_66, %c0_67] : memref<104x8xbf16, #tpu.memory_space<vmem>>, vector<104x8xbf16>
    %c0_68 = arith.constant 0 : index
    %c0_69 = arith.constant 0 : index
    %98 = vector.load %arg10[%c0_68, %c0_69] : memref<8x16xbf16, #tpu.memory_space<vmem>>, vector<8x16xbf16>
    %cst_70 = arith.constant dense<0.000000e+00> : vector<104x16xf32>
    %99 = tpu.matmul %97, %98, %cst_70 {dimension_numbers = #tpu.dot_dimension_numbers<[1], [0], [0], [1], [0, 0, 1, 1], [], []>} : vector<104x8xbf16>, vector<8x16xbf16>, vector<104x16xf32> -> vector<104x16xf32>
    %100 = arith.truncf %99 : vector<104x16xf32> to vector<104x16xbf16>
    %c0_71 = arith.constant 0 : index
    %c0_72 = arith.constant 0 : index
    %101 = vector.load %arg13[%c0_71, %c0_72] : memref<104x16xbf16, #tpu.memory_space<vmem>>, vector<104x16xbf16>
    tpu.vector_store %arg13[%c0_71, %c0_72], %100 {strides = array<i32>} : memref<104x16xbf16, #tpu.memory_space<vmem>>, vector<104x16xbf16>,
    %102 = vector.broadcast %74 : vector<104x1xf32> to vector<104x16xf32>
    %103 = arith.mulf %99, %102 : vector<104x16xf32>
    %cst_73 = arith.constant dense<0.000000e+00> : vector<16xf32>
    %104 = vector.multi_reduction <add>, %103, %cst_73 [0] : vector<104x16xf32> to vector<16xf32>
    %105 = vector.shape_cast %104 : vector<16xf32> to vector<1x16xf32>
    %106 = arith.mulf %99, %103 : vector<104x16xf32>
    %cst_74 = arith.constant dense<0.000000e+00> : vector<16xf32>
    %107 = vector.multi_reduction <add>, %106, %cst_74 [0] : vector<104x16xf32> to vector<16xf32>
    %108 = vector.shape_cast %107 : vector<16xf32> to vector<1x16xf32>
    %109 = tpu.iota {dimensions = array<i32: 0>} : vector<8x16xi32>
    %c0_i32_75 = arith.constant 0 : i32
    %110 = vector.broadcast %c0_i32_75 : i32 to vector<8x16xi32>
    %111 = arith.cmpi eq, %109, %110 : vector<8x16xi32>
    %c1_i32_76 = arith.constant 1 : i32
    %112 = vector.broadcast %c1_i32_76 : i32 to vector<8x16xi32>
    %113 = arith.cmpi eq, %109, %112 : vector<8x16xi32>
    %cst_77 = arith.constant 0.000000e+00 : f32
    %114 = vector.shape_cast %108 : vector<1x16xf32> to vector<1x16xf32>
    %115 = vector.broadcast %114 : vector<1x16xf32> to vector<8x16xf32>
    %116 = vector.broadcast %cst_77 : f32 to vector<8x16xf32>
    %117 = arith.select %113, %115, %116 : vector<8x16xi1>, vector<8x16xf32>
    %118 = vector.shape_cast %105 : vector<1x16xf32> to vector<1x16xf32>
    %119 = vector.broadcast %118 : vector<1x16xf32> to vector<8x16xf32>
    %120 = arith.select %111, %119, %117 : vector<8x16xi1>, vector<8x16xf32>
    %c0_78 = arith.constant 0 : index
    %c0_79 = arith.constant 0 : index
    %121 = vector.load %arg14[%c0_78, %c0_79] : memref<8x16xf32, #tpu.memory_space<vmem>>, vector<8x16xf32>
    tpu.vector_store %arg14[%c0_78, %c0_79], %120 {strides = array<i32>} : memref<8x16xf32, #tpu.memory_space<vmem>>, vector<8x16xf32>,
    return
  }
  func.func @transform_0(%arg0: i32) -> (i32, i32) {
    %c0_i32 = arith.constant 0 : i32
    %c0_i32_0 = arith.constant 0 : i32
    return %arg0, %c0_i32 : i32, i32
  }
  func.func @transform_1(%arg0: i32) -> (i32, i32, i32) {
    %c0_i32 = arith.constant 0 : i32
    %c0_i32_0 = arith.constant 0 : i32
    %c0_i32_1 = arith.constant 0 : i32
    return %arg0, %c0_i32, %c0_i32_0 : i32, i32, i32
  }
  func.func @transform_2(%arg0: i32) -> (i32, i32) {
    %c0_i32 = arith.constant 0 : i32
    %c0_i32_0 = arith.constant 0 : i32
    return %arg0, %c0_i32 : i32, i32
  }
  func.func @transform_3(%arg0: i32) -> (i32, i32, i32) {
    %c0_i32 = arith.constant 0 : i32
    %c0_i32_0 = arith.constant 0 : i32
    %c0_i32_1 = arith.constant 0 : i32
    return %arg0, %c0_i32, %c0_i32_0 : i32, i32, i32
  }
  func.func @transform_4(%arg0: i32) -> (i32, i32) {
    %c0_i32 = arith.constant 0 : i32
    %c0_i32_0 = arith.constant 0 : i32
    %c0_i32_1 = arith.constant 0 : i32
    return %c0_i32, %c0_i32_0 : i32, i32
  }
  func.func @transform_5(%arg0: i32) -> (i32, i32) {
    %c0_i32 = arith.constant 0 : i32
    %c0_i32_0 = arith.constant 0 : i32
    %c0_i32_1 = arith.constant 0 : i32
    return %c0_i32, %c0_i32_0 : i32, i32
  }
  func.func @transform_6(%arg0: i32) -> (i32, i32, i32) {
    %c0_i32 = arith.constant 0 : i32
    %c0_i32_0 = arith.constant 0 : i32
    %c0_i32_1 = arith.constant 0 : i32
    %c0_i32_2 = arith.constant 0 : i32
    return %c0_i32, %c0_i32_0, %c0_i32_1 : i32, i32, i32
  }
  func.func @transform_7(%arg0: i32) -> (i32, i32) {
    %c0_i32 = arith.constant 0 : i32
    %c0_i32_0 = arith.constant 0 : i32
    return %arg0, %c0_i32 : i32, i32
  }
  func.func @transform_8(%arg0: i32) -> (i32, i32) {
    %c0_i32 = arith.constant 0 : i32
    %c0_i32_0 = arith.constant 0 : i32
    return %arg0, %c0_i32 : i32, i32
  }
  func.func @transform_9(%arg0: i32) -> (i32, i32) {
    %c0_i32 = arith.constant 0 : i32
    %c0_i32_0 = arith.constant 0 : i32
    %c0_i32_1 = arith.constant 0 : i32
    return %c0_i32, %c0_i32_0 : i32, i32
  }
  func.func @transform_10(%arg0: i32) -> (i32, i32) {
    %c0_i32 = arith.constant 0 : i32
    %c0_i32_0 = arith.constant 0 : i32
    return %arg0, %c0_i32 : i32, i32
  }
  func.func @transform_11(%arg0: i32) -> (i32, i32) {
    %c0_i32 = arith.constant 0 : i32
    %c0_i32_0 = arith.constant 0 : i32
    return %arg0, %c0_i32 : i32, i32
  }
  func.func @transform_12(%arg0: i32) -> (i32, i32) {
    %c0_i32 = arith.constant 0 : i32
    %c0_i32_0 = arith.constant 0 : i32
    return %arg0, %c0_i32 : i32, i32
  }
  func.func @transform_13(%arg0: i32) -> (i32, i32) {
    %c0_i32 = arith.constant 0 : i32
    %c0_i32_0 = arith.constant 0 : i32
    return %arg0, %c0_i32 : i32, i32
  }
}

module attributes {stable_mosaic.version = 11 : i64} {
  func.func @_bn_add_relu_kernel(%arg0: i32, %arg1: memref<104x16xbf16, #tpu.memory_space<vmem>>, %arg2: memref<1x16xf32, #tpu.memory_space<vmem>>, %arg3: memref<1x16xf32, #tpu.memory_space<vmem>>, %arg4: memref<104x16xbf16, #tpu.memory_space<vmem>>, %arg5: memref<1x16xf32, #tpu.memory_space<vmem>>, %arg6: memref<1x16xf32, #tpu.memory_space<vmem>>, %arg7: memref<104x16xbf16, #tpu.memory_space<vmem>>) attributes {dimension_semantics = [#tpu.dimension_semantics<parallel>], iteration_bounds = array<i64: 2>, scalar_prefetch = 0 : i64, scratch_operands = 0 : i64, tpu.core_type = #tpu.core_type<tc>, window_params = [{transform_indices = @transform_0, window_bounds = array<i64: 104, 16>}, {pipeline_mode = #tpu.pipeline_mode<synchronous>, transform_indices = @transform_1, window_bounds = array<i64: 1, 16>}, {pipeline_mode = #tpu.pipeline_mode<synchronous>, transform_indices = @transform_2, window_bounds = array<i64: 1, 16>}, {transform_indices = @transform_3, window_bounds = array<i64: 104, 16>}, {pipeline_mode = #tpu.pipeline_mode<synchronous>, transform_indices = @transform_4, window_bounds = array<i64: 1, 16>}, {pipeline_mode = #tpu.pipeline_mode<synchronous>, transform_indices = @transform_5, window_bounds = array<i64: 1, 16>}, {transform_indices = @transform_6, window_bounds = array<i64: 104, 16>}]} {
    %c0 = arith.constant 0 : index
    %c0_0 = arith.constant 0 : index
    %0 = vector.load %arg1[%c0, %c0_0] : memref<104x16xbf16, #tpu.memory_space<vmem>>, vector<104x16xbf16>
    %1 = arith.extf %0 : vector<104x16xbf16> to vector<104x16xf32>
    %c0_1 = arith.constant 0 : index
    %c0_2 = arith.constant 0 : index
    %2 = vector.load %arg2[%c0_1, %c0_2] : memref<1x16xf32, #tpu.memory_space<vmem>>, vector<1x16xf32>
    %3 = vector.broadcast %2 : vector<1x16xf32> to vector<104x16xf32>
    %4 = arith.mulf %1, %3 : vector<104x16xf32>
    %c0_3 = arith.constant 0 : index
    %c0_4 = arith.constant 0 : index
    %5 = vector.load %arg3[%c0_3, %c0_4] : memref<1x16xf32, #tpu.memory_space<vmem>>, vector<1x16xf32>
    %6 = vector.broadcast %5 : vector<1x16xf32> to vector<104x16xf32>
    %7 = arith.addf %4, %6 : vector<104x16xf32>
    %c0_5 = arith.constant 0 : index
    %c0_6 = arith.constant 0 : index
    %8 = vector.load %arg4[%c0_5, %c0_6] : memref<104x16xbf16, #tpu.memory_space<vmem>>, vector<104x16xbf16>
    %9 = arith.extf %8 : vector<104x16xbf16> to vector<104x16xf32>
    %c0_7 = arith.constant 0 : index
    %c0_8 = arith.constant 0 : index
    %10 = vector.load %arg5[%c0_7, %c0_8] : memref<1x16xf32, #tpu.memory_space<vmem>>, vector<1x16xf32>
    %11 = vector.broadcast %10 : vector<1x16xf32> to vector<104x16xf32>
    %12 = arith.mulf %9, %11 : vector<104x16xf32>
    %c0_9 = arith.constant 0 : index
    %c0_10 = arith.constant 0 : index
    %13 = vector.load %arg6[%c0_9, %c0_10] : memref<1x16xf32, #tpu.memory_space<vmem>>, vector<1x16xf32>
    %14 = vector.broadcast %13 : vector<1x16xf32> to vector<104x16xf32>
    %15 = arith.addf %12, %14 : vector<104x16xf32>
    %16 = arith.addf %7, %15 : vector<104x16xf32>
    %cst = arith.constant 0.000000e+00 : f32
    %17 = vector.broadcast %cst : f32 to vector<104x16xf32>
    %18 = arith.maximumf %16, %17 : vector<104x16xf32>
    %19 = arith.truncf %18 : vector<104x16xf32> to vector<104x16xbf16>
    %c0_11 = arith.constant 0 : index
    %c0_12 = arith.constant 0 : index
    %20 = vector.load %arg7[%c0_11, %c0_12] : memref<104x16xbf16, #tpu.memory_space<vmem>>, vector<104x16xbf16>
    tpu.vector_store %arg7[%c0_11, %c0_12], %19 {strides = array<i32>} : memref<104x16xbf16, #tpu.memory_space<vmem>>, vector<104x16xbf16>,
    return
  }
  func.func @transform_0(%arg0: i32) -> (i32, i32) {
    %c0_i32 = arith.constant 0 : i32
    %c0_i32_0 = arith.constant 0 : i32
    return %arg0, %c0_i32 : i32, i32
  }
  func.func @transform_1(%arg0: i32) -> (i32, i32) {
    %c0_i32 = arith.constant 0 : i32
    %c0_i32_0 = arith.constant 0 : i32
    %c0_i32_1 = arith.constant 0 : i32
    return %c0_i32, %c0_i32_0 : i32, i32
  }
  func.func @transform_2(%arg0: i32) -> (i32, i32) {
    %c0_i32 = arith.constant 0 : i32
    %c0_i32_0 = arith.constant 0 : i32
    %c0_i32_1 = arith.constant 0 : i32
    return %c0_i32, %c0_i32_0 : i32, i32
  }
  func.func @transform_3(%arg0: i32) -> (i32, i32) {
    %c0_i32 = arith.constant 0 : i32
    %c0_i32_0 = arith.constant 0 : i32
    return %arg0, %c0_i32 : i32, i32
  }
  func.func @transform_4(%arg0: i32) -> (i32, i32) {
    %c0_i32 = arith.constant 0 : i32
    %c0_i32_0 = arith.constant 0 : i32
    %c0_i32_1 = arith.constant 0 : i32
    return %c0_i32, %c0_i32_0 : i32, i32
  }
  func.func @transform_5(%arg0: i32) -> (i32, i32) {
    %c0_i32 = arith.constant 0 : i32
    %c0_i32_0 = arith.constant 0 : i32
    %c0_i32_1 = arith.constant 0 : i32
    return %c0_i32, %c0_i32_0 : i32, i32
  }
  func.func @transform_6(%arg0: i32) -> (i32, i32) {
    %c0_i32 = arith.constant 0 : i32
    %c0_i32_0 = arith.constant 0 : i32
    return %arg0, %c0_i32 : i32, i32
  }
}

</mosaic_0001>

<llo_original>
// kernel: tile.8
$region0: #{tile.8}
  #allocation0 [shape = 's32[1]{0}', space=sflag, size = 0x4, scoped, tag = 'scoped memory for tile.8']
  %s0 = inlined_call_operand.vmem [shape: f32[100], index: 0, kind: input, shape index: {}]
  %s1 = inlined_call_operand.vmem [shape: f32[2,100], index: 1, kind: output, shape index: {}]
  // Predicated region
  $region2: #{tile.8} parent=0 // pred_check
    _
  $region3: #{tile.8} parent=0 // pred_check_branch
    %3 = sbr.rel (0) target = $region5
  $region4: #{tile.8} parent=0 // pred_region
    _
  $region5: #{tile.8} parent=0 // pred_fallthru
    _
  %v4 = vld [vmem:[%s0] ss:$0 sm:$0xff]
  %5 = vst [vmem:[%s1] sm:$0x3] %v4

// kernel: tile.0
$region0: #{tile.0}
  %s0 = inlined_call_operand.vmem [shape: f32[2,100], index: 0, kind: input, shape index: {}]
  %s1 = inlined_call_operand.vmem [shape: f32[200,1], index: 1, kind: output, shape index: {}]
  $region1: #{tile.0} parent=0
    #allocation0 [shape = 'u8[4096]{0}', space=vmem, size = 0x1000, scoped, tag = 'scoped mem for input reshape']
    %s3 = sshllo.u32 0, 2
    %v4 = vld [vmem:[%s0] sm:%s3]
    %5 = vst [vmem:[#allocation0] sm:%s3] %v4
    %v6 = vld [vmem:[#allocation0] sm:$0x3]
    %vm7 = vcmask 7168
    %8 = vst.msk [vmem:[%s1] ss:$100 sm:$0x3] %vm7, %v6
    %v9 = vld [vmem:[#allocation0] sm:$0x3]
    %10 = vrot.lane.b32.xlu0 %v9, 127
    %v11 = vpop.permute.xlu0 %10
    %vm12 = vcmask 7168
    %s13 = scalar_lea.vmem %s1, 1
    %14 = vst.msk [vmem:[%s13] ss:$100 sm:$0x3] %vm12, %v11
    %v15 = vld [vmem:[#allocation0] sm:$0x3]
    %16 = vrot.lane.b32.xlu0 %v15, 126
    %v17 = vpop.permute.xlu0 %16
    %vm18 = vcmask 7168
    %s19 = scalar_lea.vmem %s1, 2
    %20 = vst.msk [vmem:[%s19] ss:$100 sm:$0x3] %vm18, %v17
    %v21 = vld [vmem:[#allocation0] sm:$0x3]
    %22 = vrot.lane.b32.xlu0 %v21, 125
    %v23 = vpop.permute.xlu0 %22
    %vm24 = vcmask 7168
    %s25 = scalar_lea.vmem %s1, 3
    %26 = vst.msk [vmem:[%s25] ss:$100 sm:$0x3] %vm24, %v23
    %v27 = vld [vmem:[#allocation0] sm:$0x3]
    %28 = vrot.lane.b32.xlu0 %v27, 124
    %v29 = vpop.permute.xlu0 %28
    %vm30 = vcmask 7168
    %s31 = scalar_lea.vmem %s1, 4
    %32 = vst.msk [vmem:[%s31] ss:$100 sm:$0x3] %vm30, %v29
    %v33 = vld [vmem:[#allocation0] sm:$0x3]
    %34 = vrot.lane.b32.xlu0 %v33, 123
    %v35 = vpop.permute.xlu0 %34
    %vm36 = vcmask 7168
    %s37 = scalar_lea.vmem %s1, 5
    %38 = vst.msk [vmem:[%s37] ss:$100 sm:$0x3] %vm36, %v35
    %v39 = vld [vmem:[#allocation0] sm:$0x3]
    %40 = vrot.lane.b32.xlu0 %v39, 122
    %v41 = vpop.permute.xlu0 %40
    %vm42 = vcmask 7168
    %s43 = scalar_lea.vmem %s1, 6
    %44 = vst.msk [vmem:[%s43] ss:$100 sm:$0x3] %vm42, %v41
    %v45 = vld [vmem:[#allocation0] sm:$0x3]
    %46 = vrot.lane.b32.xlu0 %v45, 121
    %v47 = vpop.permute.xlu0 %46
    %vm48 = vcmask 7168
    %s49 = scalar_lea.vmem %s1, 7
    %50 = vst.msk [vmem:[%s49] ss:$100 sm:$0x3] %vm48, %v47
    %v51 = vld [vmem:[#allocation0] sm:$0x3]
    %52 = vrot.lane.b32.xlu0 %v51, 120
    %v53 = vpop.permute.xlu0 %52
    %vm54 = vcmask 7168
    %s55 = scalar_lea.vmem %s1, 8
    %56 = vst.msk [vmem:[%s55] ss:$100 sm:$0x3] %vm54, %v53
    %v57 = vld [vmem:[#allocation0] sm:$0x3]
    %58 = vrot.lane.b32.xlu0 %v57, 119
    %v59 = vpop.permute.xlu0 %58
    %vm60 = vcmask 7168
    %s61 = scalar_lea.vmem %s1, 9
    %62 = vst.msk [vmem:[%s61] ss:$100 sm:$0x3] %vm60, %v59
    %v63 = vld [vmem:[#allocation0] sm:$0x3]
    %64 = vrot.lane.b32.xlu0 %v63, 118
    %v65 = vpop.permute.xlu0 %64
    %vm66 = vcmask 7168
    %s67 = scalar_lea.vmem %s1, 10
    %68 = vst.msk [vmem:[%s67] ss:$100 sm:$0x3] %vm66, %v65
    %v69 = vld [vmem:[#allocation0] sm:$0x3]
    %70 = vrot.lane.b32.xlu0 %v69, 117
    %v71 = vpop.permute.xlu0 %70
    %vm72 = vcmask 7168
    %s73 = scalar_lea.vmem %s1, 11
    %74 = vst.msk [vmem:[%s73] ss:$100 sm:$0x3] %vm72, %v71
    %v75 = vld [vmem:[#allocation0] sm:$0x3]
    %76 = vrot.lane.b32.xlu0 %v75, 116
    %v77 = vpop.permute.xlu0 %76
    %vm78 = vcmask 7168
    %s79 = scalar_lea.vmem %s1, 12
    %80 = vst.msk [vmem:[%s79] ss:$100 sm:$0x3] %vm78, %v77
    %v81 = vld [vmem:[#allocation0] sm:$0x3]
    %82 = vrot.lane.b32.xlu0 %v81, 115
    %v83 = vpop.permute.xlu0 %82
    %vm84 = vcmask 7168
    %s85 = scalar_lea.vmem %s1, 13
    %86 = vst.msk [vmem:[%s85] ss:$100 sm:$0x3] %vm84, %v83
    %v87 = vld [vmem:[#allocation0] sm:$0x3]
    %88 = vrot.lane.b32.xlu0 %v87, 114
    %v89 = vpop.permute.xlu0 %88
    %vm90 = vcmask 7168
    %s91 = scalar_lea.vmem %s1, 14
    %92 = vst.msk [vmem:[%s91] ss:$100 sm:$0x3] %vm90, %v89
    %v93 = vld [vmem:[#allocation0] sm:$0x3]
    %94 = vrot.lane.b32.xlu0 %v93, 113
    %v95 = vpop.permute.xlu0 %94
    %vm96 = vcmask 7168
    %s97 = scalar_lea.vmem %s1, 15
    %98 = vst.msk [vmem:[%s97] ss:$100 sm:$0x3] %vm96, %v95
    %v99 = vld [vmem:[#allocation0] sm:$0x3]
    %100 = vrot.lane.b32.xlu0 %v99, 112
    %v101 = vpop.permute.xlu0 %100
    %vm102 = vcmask 7168
    %s103 = scalar_lea.vmem %s1, 16
    %104 = vst.msk [vmem:[%s103] ss:$100 sm:$0x3] %vm102, %v101
    %v105 = vld [vmem:[#allocation0] sm:$0x3]
    %106 = vrot.lane.b32.xlu0 %v105, 111
    %v107 = vpop.permute.xlu0 %106
    %vm108 = vcmask 7168
    %s109 = scalar_lea.vmem %s1, 17
    %110 = vst.msk [vmem:[%s109] ss:$100 sm:$0x3] %vm108, %v107
    %v111 = vld [vmem:[#allocation0] sm:$0x3]
    %112 = vrot.lane.b32.xlu0 %v111, 110
    %v113 = vpop.permute.xlu0 %112
    %vm114 = vcmask 7168
    %s115 = scalar_lea.vmem %s1, 18
    %116 = vst.msk [vmem:[%s115] ss:$100 sm:$0x3] %vm114, %v113
    %v117 = vld [vmem:[#allocation0] sm:$0x3]
    %118 = vrot.lane.b32.xlu0 %v117, 109
    %v119 = vpop.permute.xlu0 %118
    %vm120 = vcmask 7168
    %s121 = scalar_lea.vmem %s1, 19
    %122 = vst.msk [vmem:[%s121] ss:$100 sm:$0x3] %vm120, %v119
    %v123 = vld [vmem:[#allocation0] sm:$0x3]
    %124 = vrot.lane.b32.xlu0 %v123, 108
    %v125 = vpop.permute.xlu0 %124
    %vm126 = vcmask 7168
    %s127 = scalar_lea.vmem %s1, 20
    %128 = vst.msk [vmem:[%s127] ss:$100 sm:$0x3] %vm126, %v125
    %v129 = vld [vmem:[#allocation0] sm:$0x3]
    %130 = vrot.lane.b32.xlu0 %v129, 107
    %v131 = vpop.permute.xlu0 %130
    %vm132 = vcmask 7168
    %s133 = scalar_lea.vmem %s1, 21
    %134 = vst.msk [vmem:[%s133] ss:$100 sm:$0x3] %vm132, %v131
    %v135 = vld [vmem:[#allocation0] sm:$0x3]
    %136 = vrot.lane.b32.xlu0 %v135, 106
    %v137 = vpop.permute.xlu0 %136
    %vm138 = vcmask 7168
    %s139 = scalar_lea.vmem %s1, 22
    %140 = vst.msk [vmem:[%s139] ss:$100 sm:$0x3] %vm138, %v137
    %v141 = vld [vmem:[#allocation0] sm:$0x3]
    %142 = vrot.lane.b32.xlu0 %v141, 105
    %v143 = vpop.permute.xlu0 %142
    %vm144 = vcmask 7168
    %s145 = scalar_lea.vmem %s1, 23
    %146 = vst.msk [vmem:[%s145] ss:$100 sm:$0x3] %vm144, %v143
    %v147 = vld [vmem:[#allocation0] sm:$0x3]
    %148 = vrot.lane.b32.xlu0 %v147, 104
    %v149 = vpop.permute.xlu0 %148
    %vm150 = vcmask 7168
    %s151 = scalar_lea.vmem %s1, 24
    %152 = vst.msk [vmem:[%s151] ss:$100 sm:$0x3] %vm150, %v149
    %v153 = vld [vmem:[#allocation0] sm:$0x3]
    %154 = vrot.lane.b32.xlu0 %v153, 103
    %v155 = vpop.permute.xlu0 %154
    %vm156 = vcmask 7168
    %s157 = scalar_lea.vmem %s1, 25
    %158 = vst.msk [vmem:[%s157] ss:$100 sm:$0x3] %vm156, %v155
    %v159 = vld [vmem:[#allocation0] sm:$0x3]
    %160 = vrot.lane.b32.xlu0 %v159, 102
    %v161 = vpop.permute.xlu0 %160
    %vm162 = vcmask 7168
    %s163 = scalar_lea.vmem %s1, 26
    %164 = vst.msk [vmem:[%s163] ss:$100 sm:$0x3] %vm162, %v161
    %v165 = vld [vmem:[#allocation0] sm:$0x3]
    %166 = vrot.lane.b32.xlu0 %v165, 101
    %v167 = vpop.permute.xlu0 %166
    %vm168 = vcmask 7168
    %s169 = scalar_lea.vmem %s1, 27
    %170 = vst.msk [vmem:[%s169] ss:$100 sm:$0x3] %vm168, %v167
    %s171 = scalar_lea.vmem [#allocation0], 1
    %s172 = smov 3
    %v173 = vld [vmem:[%s171] ss:$-1 sm:%s172]
    %174 = vrot.lane.b32.xlu0 %v173, 100
    %v175 = vpop.permute.xlu0 %174
    %vm176 = vcmask 7168
    %s177 = scalar_lea.vmem %s1, 128
    %178 = vst.msk [vmem:[%s177] ss:$-100 sm:$0x3] %vm176, %v175
    %s179 = scalar_lea.vmem [#allocation0], 1
    %s180 = smov 3
    %v181 = vld [vmem:[%s179] ss:$-1 sm:%s180]
    %182 = vrot.lane.b32.xlu0 %v181, 99
    %v183 = vpop.permute.xlu0 %182
    %vm184 = vcmask 7168
    %s185 = scalar_lea.vmem %s1, 129
    %186 = vst.msk [vmem:[%s185] ss:$-100 sm:$0x3] %vm184, %v183
    %s187 = scalar_lea.vmem [#allocation0], 1
    %s188 = smov 3
    %v189 = vld [vmem:[%s187] ss:$-1 sm:%s188]
    %190 = vrot.lane.b32.xlu0 %v189, 98
    %v191 = vpop.permute.xlu0 %190
    %vm192 = vcmask 7168
    %s193 = scalar_lea.vmem %s1, 130
    %194 = vst.msk [vmem:[%s193] ss:$-100 sm:$0x3] %vm192, %v191
    %s195 = scalar_lea.vmem [#allocation0], 1
    %s196 = smov 3
    %v197 = vld [vmem:[%s195] ss:$-1 sm:%s196]
    %198 = vrot.lane.b32.xlu0 %v197, 97
    %v199 = vpop.permute.xlu0 %198
    %vm200 = vcmask 7168
    %s201 = scalar_lea.vmem %s1, 131
    %202 = vst.msk [vmem:[%s201] ss:$-100 sm:$0x3] %vm200, %v199
    %v203 = vld [vmem:[#allocation0] sm:$0x3]
    %204 = vrot.lane.b32.xlu0 %v203, 96
    %v205 = vpop.permute.xlu0 %204
    %vm206 = vcmask 7168
    %s207 = scalar_lea.vmem %s1, 32
    %208 = vst.msk [vmem:[%s207] ss:$100 sm:$0x3] %vm206, %v205
    %v209 = vld [vmem:[#allocation0] sm:$0x3]
    %210 = vrot.lane.b32.xlu0 %v209, 95
    %v211 = vpop.permute.xlu0 %210
    %vm212 = vcmask 7168
    %s213 = scalar_lea.vmem %s1, 33
    %214 = vst.msk [vmem:[%s213] ss:$100 sm:$0x3] %vm212, %v211
    %v215 = vld [vmem:[#allocation0] sm:$0x3]
    %216 = vrot.lane.b32.xlu0 %v215, 94
    %v217 = vpop.permute.xlu0 %216
    %vm218 = vcmask 7168
    %s219 = scalar_lea.vmem %s1, 34
    %220 = vst.msk [vmem:[%s219] ss:$100 sm:$0x3] %vm218, %v217
    %v221 = vld [vmem:[#allocation0] sm:$0x3]
    %222 = vrot.lane.b32.xlu0 %v221, 93
    %v223 = vpop.permute.xlu0 %222
    %vm224 = vcmask 7168
    %s225 = scalar_lea.vmem %s1, 35
    %226 = vst.msk [vmem:[%s225] ss:$100 sm:$0x3] %vm224, %v223
    %v227 = vld [vmem:[#allocation0] sm:$0x3]
    %228 = vrot.lane.b32.xlu0 %v227, 92
    %v229 = vpop.permute.xlu0 %228
    %vm230 = vcmask 7168
    %s231 = scalar_lea.vmem %s1, 36
    %232 = vst.msk [vmem:[%s231] ss:$100 sm:$0x3] %vm230, %v229
    %v233 = vld [vmem:[#allocation0] sm:$0x3]
    %234 = vrot.lane.b32.xlu0 %v233, 91
    %v235 = vpop.permute.xlu0 %234
    %vm236 = vcmask 7168
    %s237 = scalar_lea.vmem %s1, 37
    %238 = vst.msk [vmem:[%s237] ss:$100 sm:$0x3] %vm236, %v235
    %v239 = vld [vmem:[#allocation0] sm:$0x3]
    %240 = vrot.lane.b32.xlu0 %v239, 90
    %v241 = vpop.permute.xlu0 %240
    %vm242 = vcmask 7168
    %s243 = scalar_lea.vmem %s1, 38
    %244 = vst.msk [vmem:[%s243] ss:$100 sm:$0x3] %vm242, %v241
    %v245 = vld [vmem:[#allocation0] sm:$0x3]
    %246 = vrot.lane.b32.xlu0 %v245, 89
    %v247 = vpop.permute.xlu0 %246
    %vm248 = vcmask 7168
    %s249 = scalar_lea.vmem %s1, 39
    %250 = vst.msk [vmem:[%s249] ss:$100 sm:$0x3] %vm248, %v247
    %v251 = vld [vmem:[#allocation0] sm:$0x3]
    %252 = vrot.lane.b32.xlu0 %v251, 88
    %v253 = vpop.permute.xlu0 %252
    %vm254 = vcmask 7168
    %s255 = scalar_lea.vmem %s1, 40
    %256 = vst.msk [vmem:[%s255] ss:$100 sm:$0x3] %vm254, %v253
    %v257 = vld [vmem:[#allocation0] sm:$0x3]
    %258 = vrot.lane.b32.xlu0 %v257, 87
    %v259 = vpop.permute.xlu0 %258
    %vm260 = vcmask 7168
    %s261 = scalar_lea.vmem %s1, 41
    %262 = vst.msk [vmem:[%s261] ss:$100 sm:$0x3] %vm260, %v259
    %v263 = vld [vmem:[#allocation0] sm:$0x3]
    %264 = vrot.lane.b32.xlu0 %v263, 86
    %v265 = vpop.permute.xlu0 %264
    %vm266 = vcmask 7168
    %s267 = scalar_lea.vmem %s1, 42
    %268 = vst.msk [vmem:[%s267] ss:$100 sm:$0x3] %vm266, %v265
    %v269 = vld [vmem:[#allocation0] sm:$0x3]
    %270 = vrot.lane.b32.xlu0 %v269, 85
    %v271 = vpop.permute.xlu0 %270
    %vm272 = vcmask 7168
    %s273 = scalar_lea.vmem %s1, 43
    %274 = vst.msk [vmem:[%s273] ss:$100 sm:$0x3] %vm272, %v271
    %v275 = vld [vmem:[#allocation0] sm:$0x3]
    %276 = vrot.lane.b32.xlu0 %v275, 84
    %v277 = vpop.permute.xlu0 %276
    %vm278 = vcmask 7168
    %s279 = scalar_lea.vmem %s1, 44
    %280 = vst.msk [vmem:[%s279] ss:$100 sm:$0x3] %vm278, %v277
    %v281 = vld [vmem:[#allocation0] sm:$0x3]
    %282 = vrot.lane.b32.xlu0 %v281, 83
    %v283 = vpop.permute.xlu0 %282
    %vm284 = vcmask 7168
    %s285 = scalar_lea.vmem %s1, 45
    %286 = vst.msk [vmem:[%s285] ss:$100 sm:$0x3] %vm284, %v283
    %v287 = vld [vmem:[#allocation0] sm:$0x3]
    %288 = vrot.lane.b32.xlu0 %v287, 82
    %v289 = vpop.permute.xlu0 %288
    %vm290 = vcmask 7168
    %s291 = scalar_lea.vmem %s1, 46
    %292 = vst.msk [vmem:[%s291] ss:$100 sm:$0x3] %vm290, %v289
    %v293 = vld [vmem:[#allocation0] sm:$0x3]
    %294 = vrot.lane.b32.xlu0 %v293, 81
    %v295 = vpop.permute.xlu0 %294
    %vm296 = vcmask 7168
    %s297 = scalar_lea.vmem %s1, 47
    %298 = vst.msk [vmem:[%s297] ss:$100 sm:$0x3] %vm296, %v295
    %v299 = vld [vmem:[#allocation0] sm:$0x3]
    %300 = vrot.lane.b32.xlu0 %v299, 80
    %v301 = vpop.permute.xlu0 %300
    %vm302 = vcmask 7168
    %s303 = scalar_lea.vmem %s1, 48
    %304 = vst.msk [vmem:[%s303] ss:$100 sm:$0x3] %vm302, %v301
    %v305 = vld [vmem:[#allocation0] sm:$0x3]
    %306 = vrot.lane.b32.xlu0 %v305, 79
    %v307 = vpop.permute.xlu0 %306
    %vm308 = vcmask 7168
    %s309 = scalar_lea.vmem %s1, 49
    %310 = vst.msk [vmem:[%s309] ss:$100 sm:$0x3] %vm308, %v307
    %v311 = vld [vmem:[#allocation0] sm:$0x3]
    %312 = vrot.lane.b32.xlu0 %v311, 78
    %v313 = vpop.permute.xlu0 %312
    %vm314 = vcmask 7168
    %s315 = scalar_lea.vmem %s1, 50
    %316 = vst.msk [vmem:[%s315] ss:$100 sm:$0x3] %vm314, %v313
    %v317 = vld [vmem:[#allocation0] sm:$0x3]
    %318 = vrot.lane.b32.xlu0 %v317, 77
    %v319 = vpop.permute.xlu0 %318
    %vm320 = vcmask 7168
    %s321 = scalar_lea.vmem %s1, 51
    %322 = vst.msk [vmem:[%s321] ss:$100 sm:$0x3] %vm320, %v319
    %v323 = vld [vmem:[#allocation0] sm:$0x3]
    %324 = vrot.lane.b32.xlu0 %v323, 76
    %v325 = vpop.permute.xlu0 %324
    %vm326 = vcmask 7168
    %s327 = scalar_lea.vmem %s1, 52
    %328 = vst.msk [vmem:[%s327] ss:$100 sm:$0x3] %vm326, %v325
    %v329 = vld [vmem:[#allocation0] sm:$0x3]
    %330 = vrot.lane.b32.xlu0 %v329, 75
    %v331 = vpop.permute.xlu0 %330
    %vm332 = vcmask 7168
    %s333 = scalar_lea.vmem %s1, 53
    %334 = vst.msk [vmem:[%s333] ss:$100 sm:$0x3] %vm332, %v331
    %v335 = vld [vmem:[#allocation0] sm:$0x3]
    %336 = vrot.lane.b32.xlu0 %v335, 74
    %v337 = vpop.permute.xlu0 %336
    %vm338 = vcmask 7168
    %s339 = scalar_lea.vmem %s1, 54
    %340 = vst.msk [vmem:[%s339] ss:$100 sm:$0x3] %vm338, %v337
    %v341 = vld [vmem:[#allocation0] sm:$0x3]
    %342 = vrot.lane.b32.xlu0 %v341, 73
    %v343 = vpop.permute.xlu0 %342
    %vm344 = vcmask 7168
    %s345 = scalar_lea.vmem %s1, 55
    %346 = vst.msk [vmem:[%s345] ss:$100 sm:$0x3] %vm344, %v343
    %v347 = vld [vmem:[#allocation0] sm:$0x3]
    %348 = vrot.lane.b32.xlu0 %v347, 72
    %v349 = vpop.permute.xlu0 %348
    %vm350 = vcmask 7168
    %s351 = scalar_lea.vmem %s1, 56
    %352 = vst.msk [vmem:[%s351] ss:$100 sm:$0x3] %vm350, %v349
    %v353 = vld [vmem:[#allocation0] sm:$0x3]
    %354 = vrot.lane.b32.xlu0 %v353, 71
    %v355 = vpop.permute.xlu0 %354
    %vm356 = vcmask 7168
    %s357 = scalar_lea.vmem %s1, 57
    %358 = vst.msk [vmem:[%s357] ss:$100 sm:$0x3] %vm356, %v355
    %v359 = vld [vmem:[#allocation0] sm:$0x3]
    %360 = vrot.lane.b32.xlu0 %v359, 70
    %v361 = vpop.permute.xlu0 %360
    %vm362 = vcmask 7168
    %s363 = scalar_lea.vmem %s1, 58
    %364 = vst.msk [vmem:[%s363] ss:$100 sm:$0x3] %vm362, %v361
    %v365 = vld [vmem:[#allocation0] sm:$0x3]
    %366 = vrot.lane.b32.xlu0 %v365, 69
    %v367 = vpop.permute.xlu0 %366
    %vm368 = vcmask 7168
    %s369 = scalar_lea.vmem %s1, 59
    %370 = vst.msk [vmem:[%s369] ss:$100 sm:$0x3] %vm368, %v367
    %s371 = scalar_lea.vmem [#allocation0], 1
    %s372 = smov 3
    %v373 = vld [vmem:[%s371] ss:$-1 sm:%s372]
    %374 = vrot.lane.b32.xlu0 %v373, 68
    %v375 = vpop.permute.xlu0 %374
    %vm376 = vcmask 7168
    %s377 = scalar_lea.vmem %s1, 160
    %378 = vst.msk [vmem:[%s377] ss:$-100 sm:$0x3] %vm376, %v375
    %s379 = scalar_lea.vmem [#allocation0], 1
    %s380 = smov 3
    %v381 = vld [vmem:[%s379] ss:$-1 sm:%s380]
    %382 = vrot.lane.b32.xlu0 %v381, 67
    %v383 = vpop.permute.xlu0 %382
    %vm384 = vcmask 7168
    %s385 = scalar_lea.vmem %s1, 161
    %386 = vst.msk [vmem:[%s385] ss:$-100 sm:$0x3] %vm384, %v383
    %s387 = scalar_lea.vmem [#allocation0], 1
    %s388 = smov 3
    %v389 = vld [vmem:[%s387] ss:$-1 sm:%s388]
    %390 = vrot.lane.b32.xlu0 %v389, 66
    %v391 = vpop.permute.xlu0 %390
    %vm392 = vcmask 7168
    %s393 = scalar_lea.vmem %s1, 162
    %394 = vst.msk [vmem:[%s393] ss:$-100 sm:$0x3] %vm392, %v391
    %s395 = scalar_lea.vmem [#allocation0], 1
    %s396 = smov 3
    %v397 = vld [vmem:[%s395] ss:$-1 sm:%s396]
    %398 = vrot.lane.b32.xlu0 %v397, 65
    %v399 = vpop.permute.xlu0 %398
    %vm400 = vcmask 7168
    %s401 = scalar_lea.vmem %s1, 163
    %402 = vst.msk [vmem:[%s401] ss:$-100 sm:$0x3] %vm400, %v399
    %v403 = vld [vmem:[#allocation0] sm:$0x3]
    %404 = vrot.lane.b32.xlu0 %v403, 64
    %v405 = vpop.permute.xlu0 %404
    %vm406 = vcmask 7168
    %s407 = scalar_lea.vmem %s1, 64
    %408 = vst.msk [vmem:[%s407] ss:$100 sm:$0x3] %vm406, %v405
    %v409 = vld [vmem:[#allocation0] sm:$0x3]
    %410 = vrot.lane.b32.xlu0 %v409, 63
    %v411 = vpop.permute.xlu0 %410
    %vm412 = vcmask 7168
    %s413 = scalar_lea.vmem %s1, 65
    %414 = vst.msk [vmem:[%s413] ss:$100 sm:$0x3] %vm412, %v411
    %v415 = vld [vmem:[#allocation0] sm:$0x3]
    %416 = vrot.lane.b32.xlu0 %v415, 62
    %v417 = vpop.permute.xlu0 %416
    %vm418 = vcmask 7168
    %s419 = scalar_lea.vmem %s1, 66
    %420 = vst.msk [vmem:[%s419] ss:$100 sm:$0x3] %vm418, %v417
    %v421 = vld [vmem:[#allocation0] sm:$0x3]
    %422 = vrot.lane.b32.xlu0 %v421, 61
    %v423 = vpop.permute.xlu0 %422
    %vm424 = vcmask 7168
    %s425 = scalar_lea.vmem %s1, 67
    %426 = vst.msk [vmem:[%s425] ss:$100 sm:$0x3] %vm424, %v423
    %v427 = vld [vmem:[#allocation0] sm:$0x3]
    %428 = vrot.lane.b32.xlu0 %v427, 60
    %v429 = vpop.permute.xlu0 %428
    %vm430 = vcmask 7168
    %s431 = scalar_lea.vmem %s1, 68
    %432 = vst.msk [vmem:[%s431] ss:$100 sm:$0x3] %vm430, %v429
    %v433 = vld [vmem:[#allocation0] sm:$0x3]
    %434 = vrot.lane.b32.xlu0 %v433, 59
    %v435 = vpop.permute.xlu0 %434
    %vm436 = vcmask 7168
    %s437 = scalar_lea.vmem %s1, 69
    %438 = vst.msk [vmem:[%s437] ss:$100 sm:$0x3] %vm436, %v435
    %v439 = vld [vmem:[#allocation0] sm:$0x3]
    %440 = vrot.lane.b32.xlu0 %v439, 58
    %v441 = vpop.permute.xlu0 %440
    %vm442 = vcmask 7168
    %s443 = scalar_lea.vmem %s1, 70
    %444 = vst.msk [vmem:[%s443] ss:$100 sm:$0x3] %vm442, %v441
    %v445 = vld [vmem:[#allocation0] sm:$0x3]
    %446 = vrot.lane.b32.xlu0 %v445, 57
    %v447 = vpop.permute.xlu0 %446
    %vm448 = vcmask 7168
    %s449 = scalar_lea.vmem %s1, 71
    %450 = vst.msk [vmem:[%s449] ss:$100 sm:$0x3] %vm448, %v447
    %v451 = vld [vmem:[#allocation0] sm:$0x3]
    %452 = vrot.lane.b32.xlu0 %v451, 56
    %v453 = vpop.permute.xlu0 %452
    %vm454 = vcmask 7168
    %s455 = scalar_lea.vmem %s1, 72
    %456 = vst.msk [vmem:[%s455] ss:$100 sm:$0x3] %vm454, %v453
    %v457 = vld [vmem:[#allocation0] sm:$0x3]
    %458 = vrot.lane.b32.xlu0 %v457, 55
    %v459 = vpop.permute.xlu0 %458
    %vm460 = vcmask 7168
    %s461 = scalar_lea.vmem %s1, 73
    %462 = vst.msk [vmem:[%s461] ss:$100 sm:$0x3] %vm460, %v459
    %v463 = vld [vmem:[#allocation0] sm:$0x3]
    %464 = vrot.lane.b32.xlu0 %v463, 54
    %v465 = vpop.permute.xlu0 %464
    %vm466 = vcmask 7168
    %s467 = scalar_lea.vmem %s1, 74
    %468 = vst.msk [vmem:[%s467] ss:$100 sm:$0x3] %vm466, %v465
    %v469 = vld [vmem:[#allocation0] sm:$0x3]
    %470 = vrot.lane.b32.xlu0 %v469, 53
    %v471 = vpop.permute.xlu0 %470
    %vm472 = vcmask 7168
    %s473 = scalar_lea.vmem %s1, 75
    %474 = vst.msk [vmem:[%s473] ss:$100 sm:$0x3] %vm472, %v471
    %v475 = vld [vmem:[#allocation0] sm:$0x3]
    %476 = vrot.lane.b32.xlu0 %v475, 52
    %v477 = vpop.permute.xlu0 %476
    %vm478 = vcmask 7168
    %s479 = scalar_lea.vmem %s1, 76
    %480 = vst.msk [vmem:[%s479] ss:$100 sm:$0x3] %vm478, %v477
    %v481 = vld [vmem:[#allocation0] sm:$0x3]
    %482 = vrot.lane.b32.xlu0 %v481, 51
    %v483 = vpop.permute.xlu0 %482
    %vm484 = vcmask 7168
    %s485 = scalar_lea.vmem %s1, 77
    %486 = vst.msk [vmem:[%s485] ss:$100 sm:$0x3] %vm484, %v483
    %v487 = vld [vmem:[#allocation0] sm:$0x3]
    %488 = vrot.lane.b32.xlu0 %v487, 50
    %v489 = vpop.permute.xlu0 %488
    %vm490 = vcmask 7168
    %s491 = scalar_lea.vmem %s1, 78
    %492 = vst.msk [vmem:[%s491] ss:$100 sm:$0x3] %vm490, %v489
    %v493 = vld [vmem:[#allocation0] sm:$0x3]
    %494 = vrot.lane.b32.xlu0 %v493, 49
    %v495 = vpop.permute.xlu0 %494
    %vm496 = vcmask 7168
    %s497 = scalar_lea.vmem %s1, 79
    %498 = vst.msk [vmem:[%s497] ss:$100 sm:$0x3] %vm496, %v495
    %v499 = vld [vmem:[#allocation0] sm:$0x3]
    %500 = vrot.lane.b32.xlu0 %v499, 48
    %v501 = vpop.permute.xlu0 %500
    %vm502 = vcmask 7168
    %s503 = scalar_lea.vmem %s1, 80
    %504 = vst.msk [vmem:[%s503] ss:$100 sm:$0x3] %vm502, %v501
    %v505 = vld [vmem:[#allocation0] sm:$0x3]
    %506 = vrot.lane.b32.xlu0 %v505, 47
    %v507 = vpop.permute.xlu0 %506
    %vm508 = vcmask 7168
    %s509 = scalar_lea.vmem %s1, 81
    %510 = vst.msk [vmem:[%s509] ss:$100 sm:$0x3] %vm508, %v507
    %v511 = vld [vmem:[#allocation0] sm:$0x3]
    %512 = vrot.lane.b32.xlu0 %v511, 46
    %v513 = vpop.permute.xlu0 %512
    %vm514 = vcmask 7168
    %s515 = scalar_lea.vmem %s1, 82
    %516 = vst.msk [vmem:[%s515] ss:$100 sm:$0x3] %vm514, %v513
    %v517 = vld [vmem:[#allocation0] sm:$0x3]
    %518 = vrot.lane.b32.xlu0 %v517, 45
    %v519 = vpop.permute.xlu0 %518
    %vm520 = vcmask 7168
    %s521 = scalar_lea.vmem %s1, 83
    %522 = vst.msk [vmem:[%s521] ss:$100 sm:$0x3] %vm520, %v519
    %v523 = vld [vmem:[#allocation0] sm:$0x3]
    %524 = vrot.lane.b32.xlu0 %v523, 44
    %v525 = vpop.permute.xlu0 %524
    %vm526 = vcmask 7168
    %s527 = scalar_lea.vmem %s1, 84
    %528 = vst.msk [vmem:[%s527] ss:$100 sm:$0x3] %vm526, %v525
    %v529 = vld [vmem:[#allocation0] sm:$0x3]
    %530 = vrot.lane.b32.xlu0 %v529, 43
    %v531 = vpop.permute.xlu0 %530
    %vm532 = vcmask 7168
    %s533 = scalar_lea.vmem %s1, 85
    %534 = vst.msk [vmem:[%s533] ss:$100 sm:$0x3] %vm532, %v531
    %v535 = vld [vmem:[#allocation0] sm:$0x3]
    %536 = vrot.lane.b32.xlu0 %v535, 42
    %v537 = vpop.permute.xlu0 %536
    %vm538 = vcmask 7168
    %s539 = scalar_lea.vmem %s1, 86
    %540 = vst.msk [vmem:[%s539] ss:$100 sm:$0x3] %vm538, %v537
    %v541 = vld [vmem:[#allocation0] sm:$0x3]
    %542 = vrot.lane.b32.xlu0 %v541, 41
    %v543 = vpop.permute.xlu0 %542
    %vm544 = vcmask 7168
    %s545 = scalar_lea.vmem %s1, 87
    %546 = vst.msk [vmem:[%s545] ss:$100 sm:$0x3] %vm544, %v543
    %v547 = vld [vmem:[#allocation0] sm:$0x3]
    %548 = vrot.lane.b32.xlu0 %v547, 40
    %v549 = vpop.permute.xlu0 %548
    %vm550 = vcmask 7168
    %s551 = scalar_lea.vmem %s1, 88
    %552 = vst.msk [vmem:[%s551] ss:$100 sm:$0x3] %vm550, %v549
    %v553 = vld [vmem:[#allocation0] sm:$0x3]
    %554 = vrot.lane.b32.xlu0 %v553, 39
    %v555 = vpop.permute.xlu0 %554
    %vm556 = vcmask 7168
    %s557 = scalar_lea.vmem %s1, 89
    %558 = vst.msk [vmem:[%s557] ss:$100 sm:$0x3] %vm556, %v555
    %v559 = vld [vmem:[#allocation0] sm:$0x3]
    %560 = vrot.lane.b32.xlu0 %v559, 38
    %v561 = vpop.permute.xlu0 %560
    %vm562 = vcmask 7168
    %s563 = scalar_lea.vmem %s1, 90
    %564 = vst.msk [vmem:[%s563] ss:$100 sm:$0x3] %vm562, %v561
    %v565 = vld [vmem:[#allocation0] sm:$0x3]
    %566 = vrot.lane.b32.xlu0 %v565, 37
    %v567 = vpop.permute.xlu0 %566
    %vm568 = vcmask 7168
    %s569 = scalar_lea.vmem %s1, 91
    %570 = vst.msk [vmem:[%s569] ss:$100 sm:$0x3] %vm568, %v567
    %s571 = scalar_lea.vmem [#allocation0], 1
    %s572 = smov 3
    %v573 = vld [vmem:[%s571] ss:$-1 sm:%s572]
    %574 = vrot.lane.b32.xlu0 %v573, 36
    %v575 = vpop.permute.xlu0 %574
    %vm576 = vcmask 7168
    %s577 = scalar_lea.vmem %s1, 192
    %578 = vst.msk [vmem:[%s577] ss:$-100 sm:$0x3] %vm576, %v575
    %s579 = scalar_lea.vmem [#allocation0], 1
    %s580 = smov 3
    %v581 = vld [vmem:[%s579] ss:$-1 sm:%s580]
    %582 = vrot.lane.b32.xlu0 %v581, 35
    %v583 = vpop.permute.xlu0 %582
    %vm584 = vcmask 7168
    %s585 = scalar_lea.vmem %s1, 193
    %586 = vst.msk [vmem:[%s585] ss:$-100 sm:$0x3] %vm584, %v583
    %s587 = scalar_lea.vmem [#allocation0], 1
    %s588 = smov 3
    %v589 = vld [vmem:[%s587] ss:$-1 sm:%s588]
    %590 = vrot.lane.b32.xlu0 %v589, 34
    %v591 = vpop.permute.xlu0 %590
    %vm592 = vcmask 7168
    %s593 = scalar_lea.vmem %s1, 194
    %594 = vst.msk [vmem:[%s593] ss:$-100 sm:$0x3] %vm592, %v591
    %s595 = scalar_lea.vmem [#allocation0], 1
    %s596 = smov 3
    %v597 = vld [vmem:[%s595] ss:$-1 sm:%s596]
    %598 = vrot.lane.b32.xlu0 %v597, 33
    %v599 = vpop.permute.xlu0 %598
    %vm600 = vcmask 7168
    %s601 = scalar_lea.vmem %s1, 195
    %602 = vst.msk [vmem:[%s601] ss:$-100 sm:$0x3] %vm600, %v599
    %v603 = vld [vmem:[#allocation0] sm:$0x3]
    %604 = vrot.lane.b32.xlu0 %v603, 32
    %v605 = vpop.permute.xlu0 %604
    %vm606 = vcmask 7168
    %s607 = scalar_lea.vmem %s1, 96
    %608 = vst.msk [vmem:[%s607] ss:$100 sm:$0x3] %vm606, %v605
    %v609 = vld [vmem:[#allocation0] sm:$0x3]
    %610 = vrot.lane.b32.xlu0 %v609, 31
    %v611 = vpop.permute.xlu0 %610
    %vm612 = vcmask 7168
    %s613 = scalar_lea.vmem %s1, 97
    %614 = vst.msk [vmem:[%s613] ss:$100 sm:$0x3] %vm612, %v611
    %v615 = vld [vmem:[#allocation0] sm:$0x3]
    %616 = vrot.lane.b32.xlu0 %v615, 30
    %v617 = vpop.permute.xlu0 %616
    %vm618 = vcmask 7168
    %s619 = scalar_lea.vmem %s1, 98
    %620 = vst.msk [vmem:[%s619] ss:$100 sm:$0x3] %vm618, %v617
    %v621 = vld [vmem:[#allocation0] sm:$0x3]
    %622 = vrot.lane.b32.xlu0 %v621, 29
    %v623 = vpop.permute.xlu0 %622
    %vm624 = vcmask 7168
    %s625 = scalar_lea.vmem %s1, 99
    %626 = vst.msk [vmem:[%s625] ss:$100 sm:$0x3] %vm624, %v623

// kernel: basic_block_forward.3
$region0: #{basic_block_forward.3}
  #allocation0 [shape = 'u32[]', space=smem, size = 0x4, offset = 0x4, fixed_abs, tag = 'smem constant byte address 0x4 - core index']
  #allocation1 [shape = 'u32[144,128]{1,0:T(1,128)}', space=vmem, size = 0x12000, scoped, tag = 'internal scratch']
  %s0 = inlined_call_operand.vmem [shape: bf16[128,72], index: 0, kind: input, shape index: {}]
  %s1 = inlined_call_operand.vmem [shape: bf16[72,16], index: 1, kind: input, shape index: {}]
  %s2 = inlined_call_operand.vmem [shape: bf16[128,16], index: 2, kind: output, shape index: {0}]
  %s3 = inlined_call_operand.vmem [shape: f32[16,16], index: 3, kind: output, shape index: {1}]
  %4 = xla_tuple %s2, %s3
  %s5 = sld [smem:[#allocation0]]
  $region49: #{basic_block_forward.3} parent=0
    _
  %s7 = ssub.s32 1, %s5
  %s8 = scalar_select 0, %s7, %s5
  loop: start=0, step=1, limit=4
  $region2: #{basic_block_forward.3} parent=0 // loop_pre_header
    _
  $region3: #{basic_block_forward.3} parent=0 // loop_header
    %s10 = sphi 0, %s14
    %p11 = scmp.ge.s32.totalorder %s10, 4
    %s20 = sphi 0, %s22
    %s23 = sphi 0, %s20
    %s24 = sphi 0, %s23
    %s40 = sphi 0, %s24
    %s44 = sphi 0, %s44
    %s46 = sphi 0, %s44
    %s47 = sphi 0, %s46
    %s61 = sphi 0, %s47
    %s67 = sphi 0, %s69
    %s70 = sphi 0, %s67
    %s71 = sphi 0, %s70
    %s87 = sphi 0, %s71
    %s93 = sphi 0, %s95
    %s96 = sphi 0, %s93
    %s97 = sphi 0, %s96
    %s113 = sphi 0, %s97
  $region4: #{basic_block_forward.3} parent=0 // loop_header_branch
    %13 = sbr.rel (%p11) target = $region8
  $region5: #{basic_block_forward.3} parent=0 // loop_body
    %s15 = ssub.s32 %s10, 1
    %s16 = ssub.s32 %s10, 2
    %s17 = sadd.s32 %s10, 1
    %s18 = ssub.s32 %s10, %s17
    %p19 = scmp.eq.s32.totalorder %s18, 0
    %s21 = sadd.s32 %s20, 1
    %s22 = scalar_select %p19, %s20, %s21
    %p25 = pneg %p19
    %p26 = scmp.eq.s32.totalorder %s10, 1
    %p27 = por %p25, %p26
    %p28 = scmp.ne.s32.totalorder %s20, %s23
    %p29 = scmp.eq.s32.totalorder %s10, 0
    %p30 = por %p28, %p29
    %p31 = scmp.ne.s32.totalorder %s20, %s23
    %p32 = scmp.eq.s32.totalorder %s15, 1
    %p33 = por %p31, %p32
    %p34 = scmp.ne.s32.totalorder %s23, %s24
    %p35 = scmp.eq.s32.totalorder %s15, 0
    %p36 = por %p34, %p35
    %p37 = scmp.ne.s32.totalorder %s23, %s24
    %p38 = scmp.eq.s32.totalorder %s16, 1
    %p39 = por %p37, %p38
    %p41 = scmp.ne.s32.totalorder %s24, %s40
    %p42 = scmp.eq.s32.totalorder %s16, 0
    %p43 = por %p41, %p42
    %s45 = sadd.s32 %s44, 1
    %p48 = scmp.eq.s32.totalorder %s10, 1
    %p49 = scmp.ne.s32.totalorder %s44, %s46
    %p50 = scmp.eq.s32.totalorder %s10, 0
    %p51 = por %p49, %p50
    %p52 = scmp.ne.s32.totalorder %s44, %s46
    %p53 = scmp.eq.s32.totalorder %s15, 1
    %p54 = por %p52, %p53
    %p55 = scmp.ne.s32.totalorder %s46, %s47
    %p56 = scmp.eq.s32.totalorder %s15, 0
    %p57 = por %p55, %p56
    %p58 = scmp.ne.s32.totalorder %s46, %s47
    %p59 = scmp.eq.s32.totalorder %s16, 1
    %p60 = por %p58, %p59
    %p62 = scmp.ne.s32.totalorder %s47, %s61
    %p63 = scmp.eq.s32.totalorder %s16, 0
    %p64 = por %p62, %p63
    %s65 = ssub.s32 %s10, %s17
    %p66 = scmp.eq.s32.totalorder %s65, 0
    %s68 = sadd.s32 %s67, 1
    %s69 = scalar_select %p66, %s67, %s68
    %p72 = pneg %p66
    %p73 = scmp.eq.s32.totalorder %s10, 1
    %p74 = por %p72, %p73
    %p75 = scmp.ne.s32.totalorder %s67, %s70
    %p76 = scmp.eq.s32.totalorder %s10, 0
    %p77 = por %p75, %p76
    %p78 = scmp.ne.s32.totalorder %s67, %s70
    %p79 = scmp.eq.s32.totalorder %s15, 1
    %p80 = por %p78, %p79
    %p81 = scmp.ne.s32.totalorder %s70, %s71
    %p82 = scmp.eq.s32.totalorder %s15, 0
    %p83 = por %p81, %p82
    %p84 = scmp.ne.s32.totalorder %s70, %s71
    %p85 = scmp.eq.s32.totalorder %s16, 1
    %p86 = por %p84, %p85
    %p88 = scmp.ne.s32.totalorder %s71, %s87
    %p89 = scmp.eq.s32.totalorder %s16, 0
    %p90 = por %p88, %p89
    %s91 = ssub.s32 %s10, %s17
    %p92 = scmp.eq.s32.totalorder %s91, 0
    %s94 = sadd.s32 %s93, 1
    %s95 = scalar_select %p92, %s93, %s94
    %p98 = pneg %p92
    %p99 = scmp.eq.s32.totalorder %s10, 1
    %p100 = por %p98, %p99
    %p101 = scmp.ne.s32.totalorder %s93, %s96
    %p102 = scmp.eq.s32.totalorder %s10, 0
    %p103 = por %p101, %p102
    %p104 = scmp.ne.s32.totalorder %s93, %s96
    %p105 = scmp.eq.s32.totalorder %s15, 1
    %p106 = por %p104, %p105
    %p107 = scmp.ne.s32.totalorder %s96, %s97
    %p108 = scmp.eq.s32.totalorder %s15, 0
    %p109 = por %p107, %p108
    %p110 = scmp.ne.s32.totalorder %s96, %s97
    %p111 = scmp.eq.s32.totalorder %s16, 1
    %p112 = por %p110, %p111
    %p114 = scmp.ne.s32.totalorder %s97, %s113
    %p115 = scmp.eq.s32.totalorder %s16, 0
    %p116 = por %p114, %p115
    %p117 = scmp.le.s32.totalorder 1, %s10
    %p118 = scmp.lt.s32.totalorder %s10, 3
    %p119 = pnand %p117, %p118
    %p120 = pneg %p119
    // Predicated region
    $region9: #{basic_block_forward.3} parent=5 // pred_check
      _
    $region10: #{basic_block_forward.3} parent=5 // pred_check_branch
      %122 = sbr.rel (%p119) target = $region12
    $region11: #{basic_block_forward.3} parent=5 // pred_region
      %s123 = ssub.s32 %s10, 1
      // Predicated region
      $region13: #{basic_block_forward.3} parent=11 // pred_check
        %p124 = pneg %p57
      $region14: #{basic_block_forward.3} parent=11 // pred_check_branch
        %126 = sbr.rel (%p124) target = $region16
      $region15: #{basic_block_forward.3} parent=11 // pred_region
        _
      $region16: #{basic_block_forward.3} parent=11 // pred_fallthru
        _
    $region12: #{basic_block_forward.3} parent=5 // pred_fallthru
      _
    %p127 = scmp.lt.s32.totalorder %s10, 2
    // Predicated region
    $region17: #{basic_block_forward.3} parent=5 // pred_check
      %p128 = pneg %p127
    $region18: #{basic_block_forward.3} parent=5 // pred_check_branch
      %130 = sbr.rel (%p128) target = $region20
    $region19: #{basic_block_forward.3} parent=5 // pred_region
      // Predicated region
      $region21: #{basic_block_forward.3} parent=19 // pred_check
        %p131 = pneg %p30
      $region22: #{basic_block_forward.3} parent=19 // pred_check_branch
        %133 = sbr.rel (%p131) target = $region24
      $region23: #{basic_block_forward.3} parent=19 // pred_region
        %s134 = smul.u32 8, %s10
        %p135 = scmp.lt.s32.totalorder %s134, 15
        %s136 = scalar_select %p135, %s134, 15
        %s137 = smul.addr %s136, 4
        %s138 = scalar_lea.vmem %s0, %s137
        %s139 = smul.u32 8, %s10
      $region24: #{basic_block_forward.3} parent=19 // pred_fallthru
        _
    $region20: #{basic_block_forward.3} parent=5 // pred_fallthru
      _
    %p140 = scmp.le.s32.totalorder 1, %s10
    %p141 = scmp.lt.s32.totalorder %s10, 3
    %p142 = pnand %p140, %p141
    %p143 = pneg %p142
    // Predicated region
    $region25: #{basic_block_forward.3} parent=5 // pred_check
      _
    $region26: #{basic_block_forward.3} parent=5 // pred_check_branch
      %145 = sbr.rel (%p142) target = $region28
    $region27: #{basic_block_forward.3} parent=5 // pred_region
      %s146 = ssub.s32 %s10, 1
      %s147 = smul.u32 8, %s15
      %p148 = scmp.lt.s32.totalorder %s147, 15
      %s149 = scalar_select %p148, %s147, 15
      %s150 = smul.addr %s149, 4
      %s151 = scalar_lea.vmem %s0, %s150
      %p152 = pneg %p36
      %p153 = pneg %p33
      %p154 = pneg %p57
      %p155 = pneg %p54
      %p156 = pneg %p83
      %p157 = pneg %p80
      %s158 = smul.u32 8, %s15
      %p159 = scmp.lt.s32.totalorder %s158, 15
      %s160 = scalar_select %p159, %s158, 15
      %s161 = smul.addr %s160, 4
      %s162 = scalar_lea.vmem %s2, %s161
      %p163 = pneg %p109
      %p164 = pneg %p106
      %p165 = scmp.lt.s32.totalorder %s15, 1
      %s166 = scalar_select %p165, %s15, 1
      %s167 = smul.addr %s166, 8
      %s168 = scalar_lea.vmem %s3, %s167
      %s169 = smul.u32 8, %s15
      %p170 = scmp.lt.s32.totalorder %s169, 15
      %s171 = scalar_select %p170, %s169, 15
      %s172 = smul.addr %s171, 4
      %s173 = scalar_lea.vmem %s0, %s172
      %s174 = smul.u32 8, %s15
      %s175 = smul.u32 8, %s15
      %p176 = scmp.lt.s32.totalorder %s175, 15
      %s177 = scalar_select %p176, %s175, 15
      %s178 = smul.addr %s177, 4
      %s179 = scalar_lea.vmem %s2, %s178
      %s180 = smul.u32 8, %s15
      %p181 = scmp.lt.s32.totalorder %s15, 1
      %s182 = scalar_select %p181, %s15, 1
      %s183 = smul.addr %s182, 8
      %s184 = scalar_lea.vmem %s3, %s183
      %v186 = vld [vmem:[%s173] sm:$0xf]
      %v187 = vld [vmem:[%s173 + $0x4] sm:$0xf]
      %v188 = vld [vmem:[%s173 + $0x8] sm:$0xf]
      %v189 = vld [vmem:[%s173 + $0xc] sm:$0xf]
      %v190 = vld [vmem:[%s173 + $0x10] sm:$0xf]
      %v191 = vld [vmem:[%s173 + $0x14] sm:$0xf]
      %v192 = vld [vmem:[%s173 + $0x18] sm:$0xf]
      %v193 = vld [vmem:[%s173 + $0x1c] sm:$0xf]
      %v194 = vld [vmem:[%s1] sm:$0xf]
      %v195 = vld [vmem:[%s1 + $0x4] sm:$0xf]
      %v196 = vld [vmem:[%s1 + $0x8] sm:$0xf]
      %v197 = vld [vmem:[%s1 + $0xc] sm:$0xf]
      %v198 = vld [vmem:[%s1 + $0x10] sm:$0xf]
      %v199 = vld [vmem:[%s1 + $0x14] sm:$0xf]
      %v200 = vld [vmem:[%s1 + $0x18] sm:$0xf]
      %v201 = vld [vmem:[%s1 + $0x1c] sm:$0xf]
      %v202 = vld [vmem:[%s1 + $0x20] sm:$0xf]
      %v211 = vunpack.c.l.b16 %v186
      %v212 = vunpack.c.l.b16 %v187
      %v213 = vunpack.c.l.b16 %v188
      %v214 = vunpack.c.l.b16 %v189
      %v215 = vunpack.c.l.b16 %v190
      %v216 = vunpack.c.l.b16 %v191
      %v217 = vunpack.c.l.b16 %v192
      %v218 = vunpack.c.l.b16 %v193
      %v219 = vpack.c.b16 %v212, %v211
      %v220 = vpack.c.b16 %v214, %v213
      %v221 = vpack.c.b16 %v216, %v215
      %v222 = vpack.c.b16 %v218, %v217
      %v232 = vunpack.c.l.b16 %v194
      %v233 = vunpack.c.l.b16 %v195
      %v234 = vunpack.c.l.b16 %v196
      %v235 = vunpack.c.l.b16 %v197
      %v236 = vunpack.c.l.b16 %v198
      %v237 = vunpack.c.l.b16 %v199
      %v238 = vunpack.c.l.b16 %v200
      %v239 = vunpack.c.l.b16 %v201
      %v240 = vunpack.c.l.b16 %v202
      %v241 = vpack.c.b16 %v233, %v232
      %v242 = vpack.c.b16 %v235, %v234
      %v243 = vpack.c.b16 %v237, %v236
      %v244 = vpack.c.b16 %v239, %v238
      %v245 = vpack.c.b16 %v240, %v240
      %vm250 = vcmask 588800
      %v252 = vsel %vm250, %v219, 0
      %v255 = vsel %vm250, %v220, 0
      %v258 = vsel %vm250, %v221, 0
      %v261 = vsel %vm250, %v222, 0
      %vm263 = vcmask 1043456
      %v265 = vsel %vm263, %v245, 0
      %267 = vmatprep.subr.bf16.mxu0 0
      %268 = vmatpush1.bf16.msra.mxu0 %v241
      %269 = vmatprep.subr.bf16.mxu0 0
      %270 = vmatpush1.bf16.msra.mxu0 %v242
      %271 = vmatprep.subr.bf16.mxu0 0
      %272 = vmatpush1.bf16.msra.mxu0 %v243
      %273 = vmatprep.subr.bf16.mxu0 0
      %274 = vmatpush1.bf16.msra.mxu0 %v244
      %275 = vmatprep.subr.bf16.mxu0 0
      %276 = vmatpush1.bf16.msra.mxu0 %v265
      %277 = vmatprep.subr.bf16.mxu0 0
      %278 = vmatpush1.bf16.msra.mxu0 0
      %279 = vmatprep.subr.bf16.mxu0 0
      %280 = vmatpush1.bf16.msra.mxu0 0
      %281 = vmatprep.subr.bf16.mxu0 0
      %282 = vmatpush1.bf16.msra.mxu0 0
      %283 = vmatprep.subr.bf16.mxu0 0
      %284 = vmatpush1.bf16.msra.mxu0 0
      %285 = vmatprep.subr.bf16.mxu0 0
      %286 = vmatpush1.bf16.msra.mxu0 0
      %287 = vmatprep.subr.bf16.mxu0 0
      %288 = vmatpush1.bf16.msra.mxu0 0
      %289 = vmatprep.subr.bf16.mxu0 0
      %290 = vmatpush1.bf16.msra.mxu0 0
      %291 = vmatprep.subr.bf16.mxu0 0
      %292 = vmatpush1.bf16.msra.mxu0 0
      %293 = vmatprep.subr.bf16.mxu0 0
      %294 = vmatpush1.bf16.msra.mxu0 0
      %295 = vmatprep.subr.bf16.mxu0 0
      %296 = vmatpush1.bf16.msra.mxu0 0
      %297 = vmatprep.subr.bf16.mxu0 0
      %298 = vmatpush1.bf16.msra.mxu0 0
      %299 = vmatprep.mubr.bf16.mxu0 0
      %300 = vmatmul.mubr.bf16.gmra.mrb[0].mxu0 %v252
      %v301 = vpop.f32.mrb[0].mxu0
      %v302 = vadd.f32 0.0, %v301
      %v303 = vpop.f32.mrb[0].mxu0
      %v304 = vpop.f32.mrb[0].mxu0
      %v305 = vadd.f32 0.0, %v304
      %v306 = vpop.f32.mrb[0].mxu0
      %307 = vmatprep.mubr.bf16.mxu0 0
      %308 = vmatmul.mubr.bf16.gmra.mrb[0].mxu0 %v255
      %v309 = vpop.f32.mrb[0].mxu0
      %v310 = vadd.f32 0.0, %v309
      %v311 = vpop.f32.mrb[0].mxu0
      %v312 = vpop.f32.mrb[0].mxu0
      %v313 = vadd.f32 0.0, %v312
      %v314 = vpop.f32.mrb[0].mxu0
      %315 = vmatprep.mubr.bf16.mxu0 0
      %316 = vmatmul.mubr.bf16.gmra.mrb[0].mxu0 %v258
      %v317 = vpop.f32.mrb[0].mxu0
      %v318 = vadd.f32 0.0, %v317
      %v319 = vpop.f32.mrb[0].mxu0
      %v320 = vpop.f32.mrb[0].mxu0
      %v321 = vadd.f32 0.0, %v320
      %v322 = vpop.f32.mrb[0].mxu0
      %323 = vmatprep.mubr.bf16.mxu0 0
      %324 = vmatmul.mubr.bf16.gmra.mrb[0].mxu0 %v261
      %v325 = vpop.f32.mrb[0].mxu0
      %v326 = vadd.f32 0.0, %v325
      %v327 = vpop.f32.mrb[0].mxu0
      %v328 = vpop.f32.mrb[0].mxu0
      %v329 = vadd.f32 0.0, %v328
      %v330 = vpop.f32.mrb[0].mxu0
      %331 = vdwg.mxu0
      %v332 = vpack.c.bf16 %v305, %v302
      %v333 = vpack.c.bf16 %v313, %v310
      %v334 = vpack.c.bf16 %v321, %v318
      %v335 = vpack.c.bf16 %v329, %v326
      %v340 = vunpack.c.l.b16 %v332
      %v341 = vunpack.c.h.b16 %v332
      %v342 = vunpack.c.l.b16 %v333
      %v343 = vunpack.c.h.b16 %v333
      %v344 = vunpack.c.l.b16 %v334
      %v345 = vunpack.c.h.b16 %v334
      %v346 = vunpack.c.l.b16 %v335
      %v347 = vunpack.c.h.b16 %v335
      %v348 = vpack.c.b16 %v340, %v340
      %v349 = vpack.c.b16 %v341, %v341
      %v350 = vpack.c.b16 %v342, %v342
      %v351 = vpack.c.b16 %v343, %v343
      %v352 = vpack.c.b16 %v344, %v344
      %v353 = vpack.c.b16 %v345, %v345
      %v354 = vpack.c.b16 %v346, %v346
      %v355 = vpack.c.b16 %v347, %v347
      %vm364 = vcmask 125952
      %365 = vst.msk [vmem:[%s179] sm:$0xf] %vm364, %v348
      %366 = vst.msk [vmem:[%s179 + $0x4] sm:$0xf] %vm364, %v349
      %367 = vst.msk [vmem:[%s179 + $0x8] sm:$0xf] %vm364, %v350
      %368 = vst.msk [vmem:[%s179 + $0xc] sm:$0xf] %vm364, %v351
      %369 = vst.msk [vmem:[%s179 + $0x10] sm:$0xf] %vm364, %v352
      %370 = vst.msk [vmem:[%s179 + $0x14] sm:$0xf] %vm364, %v353
      %371 = vst.msk [vmem:[%s179 + $0x18] sm:$0xf] %vm364, %v354
      %372 = vst.msk [vmem:[%s179 + $0x1c] sm:$0xf] %vm364, %v355
      %vm373 = vcmask 130048
      %v374 = vsel %vm373, %v302, 0.0
      %v375 = vsel %vm373, %v305, 0.0
      %v376 = vadd.f32 %v374, %v375
      %v377 = vsel %vm373, %v310, 0.0
      %v378 = vadd.f32 %v376, %v377
      %v379 = vsel %vm373, %v313, 0.0
      %v380 = vadd.f32 %v378, %v379
      %v381 = vsel %vm373, %v318, 0.0
      %v382 = vadd.f32 %v380, %v381
      %v383 = vsel %vm373, %v321, 0.0
      %v384 = vadd.f32 %v382, %v383
      %v385 = vsel %vm373, %v326, 0.0
      %v386 = vadd.f32 %v384, %v385
      %v387 = vsel %vm373, %v329, 0.0
      %v388 = vadd.f32 %v386, %v387
      %v389 = vrot.slane %v388, 4
      %v390 = vadd.f32 %v388, %v389
      %v391 = vrot.slane %v390, 2
      %v392 = vadd.f32 %v390, %v391
      %v393 = vrot.slane %v392, 1
      %v394 = vadd.f32 %v392, %v393
      %v395 = vmul.f32 %v302, %v302
      %v396 = vmul.f32 %v305, %v305
      %v397 = vmul.f32 %v310, %v310
      %v398 = vmul.f32 %v313, %v313
      %v399 = vmul.f32 %v318, %v318
      %v400 = vmul.f32 %v321, %v321
      %v401 = vmul.f32 %v326, %v326
      %v402 = vmul.f32 %v329, %v329
      %v403 = vsel %vm373, %v395, 0.0
      %v404 = vsel %vm373, %v396, 0.0
      %v405 = vadd.f32 %v403, %v404
      %v406 = vsel %vm373, %v397, 0.0
      %v407 = vadd.f32 %v405, %v406
      %v408 = vsel %vm373, %v398, 0.0
      %v409 = vadd.f32 %v407, %v408
      %v410 = vsel %vm373, %v399, 0.0
      %v411 = vadd.f32 %v409, %v410
      %v412 = vsel %vm373, %v400, 0.0
      %v413 = vadd.f32 %v411, %v412
      %v414 = vsel %vm373, %v401, 0.0
      %v415 = vadd.f32 %v413, %v414
      %v416 = vsel %vm373, %v402, 0.0
      %v417 = vadd.f32 %v415, %v416
      %v418 = vrot.slane %v417, 4
      %v419 = vadd.f32 %v417, %v418
      %v420 = vrot.slane %v419, 2
      %v421 = vadd.f32 %v419, %v420
      %v422 = vrot.slane %v421, 1
      %v423 = vadd.f32 %v421, %v422
      %v424 = vlaneseq
      %v425 = vshrl.u32 %v424, 7
      %vm426 = vcmp.eq.s32.totalorder %v425, 0
      %vm427 = vcmp.eq.s32.totalorder %v425, 1
      %v428 = vsel %vm427, %v423, 0.0
      %v429 = vsel %vm426, %v394, %v428
      %430 = vst.msk [vmem:[%s184] sm:$0xff] %vm373, %v429
      %s431 = smul.u32 8, %s15
      %p432 = scmp.lt.s32.totalorder %s431, 15
      %s433 = scalar_select %p432, %s431, 15
      %s434 = smul.addr %s433, 4
      %s435 = scalar_lea.vmem %s2, %s434
      %p436 = scmp.lt.s32.totalorder %s15, 1
      %s437 = scalar_select %p436, %s15, 1
      %s438 = smul.addr %s437, 8
      %s439 = scalar_lea.vmem %s3, %s438
      // Predicated region
      $region29: #{basic_block_forward.3} parent=27 // pred_check
        %p440 = pneg %p80
      $region30: #{basic_block_forward.3} parent=27 // pred_check_branch
        %442 = sbr.rel (%p440) target = $region32
      $region31: #{basic_block_forward.3} parent=27 // pred_region
        %s443 = smul.u32 8, %s15
      $region32: #{basic_block_forward.3} parent=27 // pred_fallthru
        _
      // Predicated region
      $region33: #{basic_block_forward.3} parent=27 // pred_check
        %p444 = pneg %p106
      $region34: #{basic_block_forward.3} parent=27 // pred_check_branch
        %446 = sbr.rel (%p444) target = $region36
      $region35: #{basic_block_forward.3} parent=27 // pred_region
        _
      $region36: #{basic_block_forward.3} parent=27 // pred_fallthru
        _
    $region28: #{basic_block_forward.3} parent=5 // pred_fallthru
      _
    %p447 = scmp.le.s32.totalorder 2, %s10
    // Predicated region
    $region37: #{basic_block_forward.3} parent=5 // pred_check
      %p448 = pneg %p447
    $region38: #{basic_block_forward.3} parent=5 // pred_check_branch
      %450 = sbr.rel (%p448) target = $region40
    $region39: #{basic_block_forward.3} parent=5 // pred_region
      %s451 = ssub.s32 %s10, 2
      // Predicated region
      $region41: #{basic_block_forward.3} parent=39 // pred_check
        %p452 = pneg %p86
      $region42: #{basic_block_forward.3} parent=39 // pred_check_branch
        %454 = sbr.rel (%p452) target = $region44
      $region43: #{basic_block_forward.3} parent=39 // pred_region
        %s455 = smul.u32 8, %s16
        %p456 = scmp.lt.s32.totalorder %s455, 15
        %s457 = scalar_select %p456, %s455, 15
        %s458 = smul.addr %s457, 4
        %s459 = scalar_lea.vmem %s2, %s458
      $region44: #{basic_block_forward.3} parent=39 // pred_fallthru
        _
      // Predicated region
      $region45: #{basic_block_forward.3} parent=39 // pred_check
        %p460 = pneg %p112
      $region46: #{basic_block_forward.3} parent=39 // pred_check_branch
        %462 = sbr.rel (%p460) target = $region48
      $region47: #{basic_block_forward.3} parent=39 // pred_region
        %p463 = scmp.lt.s32.totalorder %s16, 1
        %s464 = scalar_select %p463, %s16, 1
        %s465 = smul.addr %s464, 8
        %s466 = scalar_lea.vmem %s3, %s465
      $region48: #{basic_block_forward.3} parent=39 // pred_fallthru
        _
    $region40: #{basic_block_forward.3} parent=5 // pred_fallthru
      _
  $region6: #{basic_block_forward.3} parent=0 // loop_footer
    %s14 = sadd.s32 1, %s10
  $region7: #{basic_block_forward.3} parent=0 // loop_footer_branch
    %9 = sbr.rel target = $region3
  $region8: #{basic_block_forward.3} parent=0 // loop_exit
    _

// kernel: basic_block_forward.5
$region0: #{basic_block_forward.5}
  #allocation0 [shape = 'u32[]', space=smem, size = 0x4, offset = 0x4, fixed_abs, tag = 'smem constant byte address 0x4 - core index']
  #allocation1 [shape = 'u32[144,128]{1,0:T(1,128)}', space=vmem, size = 0x12000, scoped, tag = 'internal scratch']
  %s0 = inlined_call_operand.vmem [shape: bf16[208,16], index: 0, kind: input, shape index: {}]
  %s1 = inlined_call_operand.vmem [shape: f32[1,16], index: 1, kind: input, shape index: {}]
  %s2 = inlined_call_operand.vmem [shape: f32[1,16], index: 2, kind: input, shape index: {}]
  %s3 = inlined_call_operand.vmem [shape: bf16[208,16], index: 3, kind: input, shape index: {}]
  %s4 = inlined_call_operand.vmem [shape: f32[1,16], index: 4, kind: input, shape index: {}]
  %s5 = inlined_call_operand.vmem [shape: f32[1,16], index: 5, kind: input, shape index: {}]
  %s6 = inlined_call_operand.vmem [shape: bf16[208,16], index: 6, kind: output, shape index: {}]
  %s7 = sld [smem:[#allocation0]]
  $region57: #{basic_block_forward.5} parent=0
    _
  %s9 = ssub.s32 1, %s7
  %s10 = scalar_select 0, %s9, %s7
  loop: start=0, step=1, limit=4
  $region2: #{basic_block_forward.5} parent=0 // loop_pre_header
    _
  $region3: #{basic_block_forward.5} parent=0 // loop_header
    %s12 = sphi 0, %s16
    %p13 = scmp.ge.s32.totalorder %s12, 4
    %s22 = sphi 0, %s24
    %s25 = sphi 0, %s22
    %s26 = sphi 0, %s25
    %s42 = sphi 0, %s26
    %s46 = sphi 0, %s46
    %s48 = sphi 0, %s46
    %s49 = sphi 0, %s48
    %s63 = sphi 0, %s49
    %s67 = sphi 0, %s67
    %s69 = sphi 0, %s67
    %s70 = sphi 0, %s69
    %s84 = sphi 0, %s70
    %s90 = sphi 0, %s92
    %s93 = sphi 0, %s90
    %s94 = sphi 0, %s93
    %s110 = sphi 0, %s94
    %s114 = sphi 0, %s114
    %s116 = sphi 0, %s114
    %s117 = sphi 0, %s116
    %s131 = sphi 0, %s117
    %s135 = sphi 0, %s135
    %s137 = sphi 0, %s135
    %s138 = sphi 0, %s137
    %s152 = sphi 0, %s138
    %s158 = sphi 0, %s160
    %s161 = sphi 0, %s158
    %s162 = sphi 0, %s161
    %s178 = sphi 0, %s162
  $region4: #{basic_block_forward.5} parent=0 // loop_header_branch
    %15 = sbr.rel (%p13) target = $region8
  $region5: #{basic_block_forward.5} parent=0 // loop_body
    %s17 = ssub.s32 %s12, 1
    %s18 = ssub.s32 %s12, 2
    %s19 = sadd.s32 %s12, 1
    %s20 = ssub.s32 %s12, %s19
    %p21 = scmp.eq.s32.totalorder %s20, 0
    %s23 = sadd.s32 %s22, 1
    %s24 = scalar_select %p21, %s22, %s23
    %p27 = pneg %p21
    %p28 = scmp.eq.s32.totalorder %s12, 1
    %p29 = por %p27, %p28
    %p30 = scmp.ne.s32.totalorder %s22, %s25
    %p31 = scmp.eq.s32.totalorder %s12, 0
    %p32 = por %p30, %p31
    %p33 = scmp.ne.s32.totalorder %s22, %s25
    %p34 = scmp.eq.s32.totalorder %s17, 1
    %p35 = por %p33, %p34
    %p36 = scmp.ne.s32.totalorder %s25, %s26
    %p37 = scmp.eq.s32.totalorder %s17, 0
    %p38 = por %p36, %p37
    %p39 = scmp.ne.s32.totalorder %s25, %s26
    %p40 = scmp.eq.s32.totalorder %s18, 1
    %p41 = por %p39, %p40
    %p43 = scmp.ne.s32.totalorder %s26, %s42
    %p44 = scmp.eq.s32.totalorder %s18, 0
    %p45 = por %p43, %p44
    %s47 = sadd.s32 %s46, 1
    %p50 = scmp.eq.s32.totalorder %s12, 1
    %p51 = scmp.ne.s32.totalorder %s46, %s48
    %p52 = scmp.eq.s32.totalorder %s12, 0
    %p53 = por %p51, %p52
    %p54 = scmp.ne.s32.totalorder %s46, %s48
    %p55 = scmp.eq.s32.totalorder %s17, 1
    %p56 = por %p54, %p55
    %p57 = scmp.ne.s32.totalorder %s48, %s49
    %p58 = scmp.eq.s32.totalorder %s17, 0
    %p59 = por %p57, %p58
    %p60 = scmp.ne.s32.totalorder %s48, %s49
    %p61 = scmp.eq.s32.totalorder %s18, 1
    %p62 = por %p60, %p61
    %p64 = scmp.ne.s32.totalorder %s49, %s63
    %p65 = scmp.eq.s32.totalorder %s18, 0
    %p66 = por %p64, %p65
    %s68 = sadd.s32 %s67, 1
    %p71 = scmp.eq.s32.totalorder %s12, 1
    %p72 = scmp.ne.s32.totalorder %s67, %s69
    %p73 = scmp.eq.s32.totalorder %s12, 0
    %p74 = por %p72, %p73
    %p75 = scmp.ne.s32.totalorder %s67, %s69
    %p76 = scmp.eq.s32.totalorder %s17, 1
    %p77 = por %p75, %p76
    %p78 = scmp.ne.s32.totalorder %s69, %s70
    %p79 = scmp.eq.s32.totalorder %s17, 0
    %p80 = por %p78, %p79
    %p81 = scmp.ne.s32.totalorder %s69, %s70
    %p82 = scmp.eq.s32.totalorder %s18, 1
    %p83 = por %p81, %p82
    %p85 = scmp.ne.s32.totalorder %s70, %s84
    %p86 = scmp.eq.s32.totalorder %s18, 0
    %p87 = por %p85, %p86
    %s88 = ssub.s32 %s12, %s19
    %p89 = scmp.eq.s32.totalorder %s88, 0
    %s91 = sadd.s32 %s90, 1
    %s92 = scalar_select %p89, %s90, %s91
    %p95 = pneg %p89
    %p96 = scmp.eq.s32.totalorder %s12, 1
    %p97 = por %p95, %p96
    %p98 = scmp.ne.s32.totalorder %s90, %s93
    %p99 = scmp.eq.s32.totalorder %s12, 0
    %p100 = por %p98, %p99
    %p101 = scmp.ne.s32.totalorder %s90, %s93
    %p102 = scmp.eq.s32.totalorder %s17, 1
    %p103 = por %p101, %p102
    %p104 = scmp.ne.s32.totalorder %s93, %s94
    %p105 = scmp.eq.s32.totalorder %s17, 0
    %p106 = por %p104, %p105
    %p107 = scmp.ne.s32.totalorder %s93, %s94
    %p108 = scmp.eq.s32.totalorder %s18, 1
    %p109 = por %p107, %p108
    %p111 = scmp.ne.s32.totalorder %s94, %s110
    %p112 = scmp.eq.s32.totalorder %s18, 0
    %p113 = por %p111, %p112
    %s115 = sadd.s32 %s114, 1
    %p118 = scmp.eq.s32.totalorder %s12, 1
    %p119 = scmp.ne.s32.totalorder %s114, %s116
    %p120 = scmp.eq.s32.totalorder %s12, 0
    %p121 = por %p119, %p120
    %p122 = scmp.ne.s32.totalorder %s114, %s116
    %p123 = scmp.eq.s32.totalorder %s17, 1
    %p124 = por %p122, %p123
    %p125 = scmp.ne.s32.totalorder %s116, %s117
    %p126 = scmp.eq.s32.totalorder %s17, 0
    %p127 = por %p125, %p126
    %p128 = scmp.ne.s32.totalorder %s116, %s117
    %p129 = scmp.eq.s32.totalorder %s18, 1
    %p130 = por %p128, %p129
    %p132 = scmp.ne.s32.totalorder %s117, %s131
    %p133 = scmp.eq.s32.totalorder %s18, 0
    %p134 = por %p132, %p133
    %s136 = sadd.s32 %s135, 1
    %p139 = scmp.eq.s32.totalorder %s12, 1
    %p140 = scmp.ne.s32.totalorder %s135, %s137
    %p141 = scmp.eq.s32.totalorder %s12, 0
    %p142 = por %p140, %p141
    %p143 = scmp.ne.s32.totalorder %s135, %s137
    %p144 = scmp.eq.s32.totalorder %s17, 1
    %p145 = por %p143, %p144
    %p146 = scmp.ne.s32.totalorder %s137, %s138
    %p147 = scmp.eq.s32.totalorder %s17, 0
    %p148 = por %p146, %p147
    %p149 = scmp.ne.s32.totalorder %s137, %s138
    %p150 = scmp.eq.s32.totalorder %s18, 1
    %p151 = por %p149, %p150
    %p153 = scmp.ne.s32.totalorder %s138, %s152
    %p154 = scmp.eq.s32.totalorder %s18, 0
    %p155 = por %p153, %p154
    %s156 = ssub.s32 %s12, %s19
    %p157 = scmp.eq.s32.totalorder %s156, 0
    %s159 = sadd.s32 %s158, 1
    %s160 = scalar_select %p157, %s158, %s159
    %p163 = pneg %p157
    %p164 = scmp.eq.s32.totalorder %s12, 1
    %p165 = por %p163, %p164
    %p166 = scmp.ne.s32.totalorder %s158, %s161
    %p167 = scmp.eq.s32.totalorder %s12, 0
    %p168 = por %p166, %p167
    %p169 = scmp.ne.s32.totalorder %s158, %s161
    %p170 = scmp.eq.s32.totalorder %s17, 1
    %p171 = por %p169, %p170
    %p172 = scmp.ne.s32.totalorder %s161, %s162
    %p173 = scmp.eq.s32.totalorder %s17, 0
    %p174 = por %p172, %p173
    %p175 = scmp.ne.s32.totalorder %s161, %s162
    %p176 = scmp.eq.s32.totalorder %s18, 1
    %p177 = por %p175, %p176
    %p179 = scmp.ne.s32.totalorder %s162, %s178
    %p180 = scmp.eq.s32.totalorder %s18, 0
    %p181 = por %p179, %p180
    %p182 = scmp.le.s32.totalorder 1, %s12
    %p183 = scmp.lt.s32.totalorder %s12, 3
    %p184 = pnand %p182, %p183
    %p185 = pneg %p184
    // Predicated region
    $region9: #{basic_block_forward.5} parent=5 // pred_check
      _
    $region10: #{basic_block_forward.5} parent=5 // pred_check_branch
      %187 = sbr.rel (%p184) target = $region12
    $region11: #{basic_block_forward.5} parent=5 // pred_region
      %s188 = ssub.s32 %s12, 1
      // Predicated region
      $region13: #{basic_block_forward.5} parent=11 // pred_check
        %p189 = pneg %p59
      $region14: #{basic_block_forward.5} parent=11 // pred_check_branch
        %191 = sbr.rel (%p189) target = $region16
      $region15: #{basic_block_forward.5} parent=11 // pred_region
        _
      $region16: #{basic_block_forward.5} parent=11 // pred_fallthru
        _
      // Predicated region
      $region17: #{basic_block_forward.5} parent=11 // pred_check
        %p192 = pneg %p80
      $region18: #{basic_block_forward.5} parent=11 // pred_check_branch
        %194 = sbr.rel (%p192) target = $region20
      $region19: #{basic_block_forward.5} parent=11 // pred_region
        _
      $region20: #{basic_block_forward.5} parent=11 // pred_fallthru
        _
      // Predicated region
      $region21: #{basic_block_forward.5} parent=11 // pred_check
        %p195 = pneg %p127
      $region22: #{basic_block_forward.5} parent=11 // pred_check_branch
        %197 = sbr.rel (%p195) target = $region24
      $region23: #{basic_block_forward.5} parent=11 // pred_region
        _
      $region24: #{basic_block_forward.5} parent=11 // pred_fallthru
        _
      // Predicated region
      $region25: #{basic_block_forward.5} parent=11 // pred_check
        %p198 = pneg %p148
      $region26: #{basic_block_forward.5} parent=11 // pred_check_branch
        %200 = sbr.rel (%p198) target = $region28
      $region27: #{basic_block_forward.5} parent=11 // pred_region
        _
      $region28: #{basic_block_forward.5} parent=11 // pred_fallthru
        _
    $region12: #{basic_block_forward.5} parent=5 // pred_fallthru
      _
    %p201 = scmp.lt.s32.totalorder %s12, 2
    // Predicated region
    $region29: #{basic_block_forward.5} parent=5 // pred_check
      %p202 = pneg %p201
    $region30: #{basic_block_forward.5} parent=5 // pred_check_branch
      %204 = sbr.rel (%p202) target = $region32
    $region31: #{basic_block_forward.5} parent=5 // pred_region
      // Predicated region
      $region33: #{basic_block_forward.5} parent=31 // pred_check
        %p205 = pneg %p32
      $region34: #{basic_block_forward.5} parent=31 // pred_check_branch
        %207 = sbr.rel (%p205) target = $region36
      $region35: #{basic_block_forward.5} parent=31 // pred_region
        %s208 = smul.u32 13, %s12
        %p209 = scmp.lt.s32.totalorder %s208, 25
        %s210 = scalar_select %p209, %s208, 25
        %s211 = smul.addr %s210, 4
        %s212 = scalar_lea.vmem %s0, %s211
        %s213 = smul.u32 13, %s12
      $region36: #{basic_block_forward.5} parent=31 // pred_fallthru
        _
      // Predicated region
      $region37: #{basic_block_forward.5} parent=31 // pred_check
        %p214 = pneg %p100
      $region38: #{basic_block_forward.5} parent=31 // pred_check_branch
        %216 = sbr.rel (%p214) target = $region40
      $region39: #{basic_block_forward.5} parent=31 // pred_region
        %s217 = smul.u32 13, %s12
        %p218 = scmp.lt.s32.totalorder %s217, 25
        %s219 = scalar_select %p218, %s217, 25
        %s220 = smul.addr %s219, 4
        %s221 = scalar_lea.vmem %s3, %s220
        %s222 = smul.u32 13, %s12
      $region40: #{basic_block_forward.5} parent=31 // pred_fallthru
        _
    $region32: #{basic_block_forward.5} parent=5 // pred_fallthru
      _
    %p223 = scmp.le.s32.totalorder 1, %s12
    %p224 = scmp.lt.s32.totalorder %s12, 3
    %p225 = pnand %p223, %p224
    %p226 = pneg %p225
    // Predicated region
    $region41: #{basic_block_forward.5} parent=5 // pred_check
      _
    $region42: #{basic_block_forward.5} parent=5 // pred_check_branch
      %228 = sbr.rel (%p225) target = $region44
    $region43: #{basic_block_forward.5} parent=5 // pred_region
      %s229 = ssub.s32 %s12, 1
      %s230 = smul.u32 13, %s17
      %p231 = scmp.lt.s32.totalorder %s230, 25
      %s232 = scalar_select %p231, %s230, 25
      %s233 = smul.addr %s232, 4
      %s234 = scalar_lea.vmem %s0, %s233
      %p235 = pneg %p38
      %p236 = pneg %p35
      %p237 = pneg %p59
      %p238 = pneg %p56
      %p239 = pneg %p80
      %p240 = pneg %p77
      %s241 = smul.u32 13, %s17
      %p242 = scmp.lt.s32.totalorder %s241, 25
      %s243 = scalar_select %p242, %s241, 25
      %s244 = smul.addr %s243, 4
      %s245 = scalar_lea.vmem %s3, %s244
      %p246 = pneg %p106
      %p247 = pneg %p103
      %p248 = pneg %p127
      %p249 = pneg %p124
      %p250 = pneg %p148
      %p251 = pneg %p145
      %p252 = pneg %p174
      %p253 = pneg %p171
      %s254 = smul.u32 13, %s17
      %p255 = scmp.lt.s32.totalorder %s254, 25
      %s256 = scalar_select %p255, %s254, 25
      %s257 = smul.addr %s256, 4
      %s258 = scalar_lea.vmem %s6, %s257
      %s259 = smul.u32 13, %s17
      %p260 = scmp.lt.s32.totalorder %s259, 25
      %s261 = scalar_select %p260, %s259, 25
      %s262 = smul.addr %s261, 4
      %s263 = scalar_lea.vmem %s0, %s262
      %s264 = smul.u32 13, %s17
      %s265 = smul.u32 13, %s17
      %p266 = scmp.lt.s32.totalorder %s265, 25
      %s267 = scalar_select %p266, %s265, 25
      %s268 = smul.addr %s267, 4
      %s269 = scalar_lea.vmem %s3, %s268
      %s270 = smul.u32 13, %s17
      %s271 = smul.u32 13, %s17
      %p272 = scmp.lt.s32.totalorder %s271, 25
      %s273 = scalar_select %p272, %s271, 25
      %s274 = smul.addr %s273, 4
      %s275 = scalar_lea.vmem %s6, %s274
      %s276 = smul.u32 13, %s17
      %v277 = vld [vmem:[%s263] sm:$0xf]
      %v278 = vld [vmem:[%s263 + $0x4] sm:$0xf]
      %v279 = vld [vmem:[%s263 + $0x8] sm:$0xf]
      %v280 = vld [vmem:[%s263 + $0xc] sm:$0xf]
      %v281 = vld [vmem:[%s263 + $0x10] sm:$0xf]
      %v282 = vld [vmem:[%s263 + $0x14] sm:$0xf]
      %v283 = vld [vmem:[%s263 + $0x18] sm:$0xf]
      %v284 = vld [vmem:[%s263 + $0x1c] sm:$0xf]
      %v285 = vld [vmem:[%s263 + $0x20] sm:$0xf]
      %v286 = vld [vmem:[%s263 + $0x24] sm:$0xf]
      %v287 = vld [vmem:[%s263 + $0x28] sm:$0xf]
      %v288 = vld [vmem:[%s263 + $0x2c] sm:$0xf]
      %v289 = vld [vmem:[%s263 + $0x30] sm:$0xf]
      %v290 = vunpack.c.l.bf16 %v277
      %v291 = vunpack.c.l.bf16 %v278
      %v292 = vunpack.c.l.bf16 %v279
      %v293 = vunpack.c.l.bf16 %v280
      %v294 = vunpack.c.l.bf16 %v281
      %v295 = vunpack.c.l.bf16 %v282
      %v296 = vunpack.c.l.bf16 %v283
      %v297 = vunpack.c.l.bf16 %v284
      %v298 = vunpack.c.l.bf16 %v285
      %v299 = vunpack.c.l.bf16 %v286
      %v300 = vunpack.c.l.bf16 %v287
      %v301 = vunpack.c.l.bf16 %v288
      %v302 = vunpack.c.l.bf16 %v289
      %v303 = vld [vmem:[%s1] sm:$0x1]
      %v305 = vlaneseq
      %v306 = vshrl.u32 %v305, 7
      %v307 = vsub.s32 0, %v306
      %v308 = vrot.slane %v303, %v307
      %v310 = vmul.f32 %v290, %v308
      %v311 = vmul.f32 %v291, %v308
      %v312 = vmul.f32 %v292, %v308
      %v313 = vmul.f32 %v293, %v308
      %v314 = vmul.f32 %v294, %v308
      %v315 = vmul.f32 %v295, %v308
      %v316 = vmul.f32 %v296, %v308
      %v317 = vmul.f32 %v297, %v308
      %v318 = vmul.f32 %v298, %v308
      %v319 = vmul.f32 %v299, %v308
      %v320 = vmul.f32 %v300, %v308
      %v321 = vmul.f32 %v301, %v308
      %v322 = vmul.f32 %v302, %v308
      %v323 = vld [vmem:[%s2] sm:$0x1]
      %v325 = vlaneseq
      %v326 = vshrl.u32 %v325, 7
      %v327 = vsub.s32 0, %v326
      %v328 = vrot.slane %v323, %v327
      %v330 = vadd.f32 %v310, %v328
      %v331 = vadd.f32 %v311, %v328
      %v332 = vadd.f32 %v312, %v328
      %v333 = vadd.f32 %v313, %v328
      %v334 = vadd.f32 %v314, %v328
      %v335 = vadd.f32 %v315, %v328
      %v336 = vadd.f32 %v316, %v328
      %v337 = vadd.f32 %v317, %v328
      %v338 = vadd.f32 %v318, %v328
      %v339 = vadd.f32 %v319, %v328
      %v340 = vadd.f32 %v320, %v328
      %v341 = vadd.f32 %v321, %v328
      %v342 = vadd.f32 %v322, %v328
      %v343 = vld [vmem:[%s269] sm:$0xf]
      %v344 = vld [vmem:[%s269 + $0x4] sm:$0xf]
      %v345 = vld [vmem:[%s269 + $0x8] sm:$0xf]
      %v346 = vld [vmem:[%s269 + $0xc] sm:$0xf]
      %v347 = vld [vmem:[%s269 + $0x10] sm:$0xf]
      %v348 = vld [vmem:[%s269 + $0x14] sm:$0xf]
      %v349 = vld [vmem:[%s269 + $0x18] sm:$0xf]
      %v350 = vld [vmem:[%s269 + $0x1c] sm:$0xf]
      %v351 = vld [vmem:[%s269 + $0x20] sm:$0xf]
      %v352 = vld [vmem:[%s269 + $0x24] sm:$0xf]
      %v353 = vld [vmem:[%s269 + $0x28] sm:$0xf]
      %v354 = vld [vmem:[%s269 + $0x2c] sm:$0xf]
      %v355 = vld [vmem:[%s269 + $0x30] sm:$0xf]
      %v356 = vunpack.c.l.bf16 %v343
      %v357 = vunpack.c.l.bf16 %v344
      %v358 = vunpack.c.l.bf16 %v345
      %v359 = vunpack.c.l.bf16 %v346
      %v360 = vunpack.c.l.bf16 %v347
      %v361 = vunpack.c.l.bf16 %v348
      %v362 = vunpack.c.l.bf16 %v349
      %v363 = vunpack.c.l.bf16 %v350
      %v364 = vunpack.c.l.bf16 %v351
      %v365 = vunpack.c.l.bf16 %v352
      %v366 = vunpack.c.l.bf16 %v353
      %v367 = vunpack.c.l.bf16 %v354
      %v368 = vunpack.c.l.bf16 %v355
      %v369 = vld [vmem:[%s4] sm:$0x1]
      %v371 = vlaneseq
      %v372 = vshrl.u32 %v371, 7
      %v373 = vsub.s32 0, %v372
      %v374 = vrot.slane %v369, %v373
      %v376 = vmul.f32 %v356, %v374
      %v377 = vmul.f32 %v357, %v374
      %v378 = vmul.f32 %v358, %v374
      %v379 = vmul.f32 %v359, %v374
      %v380 = vmul.f32 %v360, %v374
      %v381 = vmul.f32 %v361, %v374
      %v382 = vmul.f32 %v362, %v374
      %v383 = vmul.f32 %v363, %v374
      %v384 = vmul.f32 %v364, %v374
      %v385 = vmul.f32 %v365, %v374
      %v386 = vmul.f32 %v366, %v374
      %v387 = vmul.f32 %v367, %v374
      %v388 = vmul.f32 %v368, %v374
      %v389 = vld [vmem:[%s5] sm:$0x1]
      %v391 = vlaneseq
      %v392 = vshrl.u32 %v391, 7
      %v393 = vsub.s32 0, %v392
      %v394 = vrot.slane %v389, %v393
      %v396 = vadd.f32 %v376, %v394
      %v397 = vadd.f32 %v377, %v394
      %v398 = vadd.f32 %v378, %v394
      %v399 = vadd.f32 %v379, %v394
      %v400 = vadd.f32 %v380, %v394
      %v401 = vadd.f32 %v381, %v394
      %v402 = vadd.f32 %v382, %v394
      %v403 = vadd.f32 %v383, %v394
      %v404 = vadd.f32 %v384, %v394
      %v405 = vadd.f32 %v385, %v394
      %v406 = vadd.f32 %v386, %v394
      %v407 = vadd.f32 %v387, %v394
      %v408 = vadd.f32 %v388, %v394
      %v409 = vadd.f32 %v330, %v396
      %v410 = vadd.f32 %v331, %v397
      %v411 = vadd.f32 %v332, %v398
      %v412 = vadd.f32 %v333, %v399
      %v413 = vadd.f32 %v334, %v400
      %v414 = vadd.f32 %v335, %v401
      %v415 = vadd.f32 %v336, %v402
      %v416 = vadd.f32 %v337, %v403
      %v417 = vadd.f32 %v338, %v404
      %v418 = vadd.f32 %v339, %v405
      %v419 = vadd.f32 %v340, %v406
      %v420 = vadd.f32 %v341, %v407
      %v421 = vadd.f32 %v342, %v408
      %v422 = vmax.f32 %v409, 0.0
      %v423 = vmax.f32 %v410, 0.0
      %v424 = vmax.f32 %v411, 0.0
      %v425 = vmax.f32 %v412, 0.0
      %v426 = vmax.f32 %v413, 0.0
      %v427 = vmax.f32 %v414, 0.0
      %v428 = vmax.f32 %v415, 0.0
      %v429 = vmax.f32 %v416, 0.0
      %v430 = vmax.f32 %v417, 0.0
      %v431 = vmax.f32 %v418, 0.0
      %v432 = vmax.f32 %v419, 0.0
      %v433 = vmax.f32 %v420, 0.0
      %v434 = vmax.f32 %v421, 0.0
      %v435 = vpack.c.bf16 %v423, %v422
      %v436 = vpack.c.bf16 %v425, %v424
      %v437 = vpack.c.bf16 %v427, %v426
      %v438 = vpack.c.bf16 %v429, %v428
      %v439 = vpack.c.bf16 %v431, %v430
      %v440 = vpack.c.bf16 %v433, %v432
      %v441 = vpack.c.bf16 %v434, %v434
      %v449 = vunpack.c.l.b16 %v435
      %v450 = vunpack.c.h.b16 %v435
      %v451 = vunpack.c.l.b16 %v436
      %v452 = vunpack.c.h.b16 %v436
      %v453 = vunpack.c.l.b16 %v437
      %v454 = vunpack.c.h.b16 %v437
      %v455 = vunpack.c.l.b16 %v438
      %v456 = vunpack.c.h.b16 %v438
      %v457 = vunpack.c.l.b16 %v439
      %v458 = vunpack.c.h.b16 %v439
      %v459 = vunpack.c.l.b16 %v440
      %v460 = vunpack.c.h.b16 %v440
      %v461 = vunpack.c.l.b16 %v441
      %v462 = vpack.c.b16 %v449, %v449
      %v463 = vpack.c.b16 %v450, %v450
      %v464 = vpack.c.b16 %v451, %v451
      %v465 = vpack.c.b16 %v452, %v452
      %v466 = vpack.c.b16 %v453, %v453
      %v467 = vpack.c.b16 %v454, %v454
      %v468 = vpack.c.b16 %v455, %v455
      %v469 = vpack.c.b16 %v456, %v456
      %v470 = vpack.c.b16 %v457, %v457
      %v471 = vpack.c.b16 %v458, %v458
      %v472 = vpack.c.b16 %v459, %v459
      %v473 = vpack.c.b16 %v460, %v460
      %v474 = vpack.c.b16 %v461, %v461
      %vm488 = vcmask 125952
      %489 = vst.msk [vmem:[%s275] sm:$0xf] %vm488, %v462
      %490 = vst.msk [vmem:[%s275 + $0x4] sm:$0xf] %vm488, %v463
      %491 = vst.msk [vmem:[%s275 + $0x8] sm:$0xf] %vm488, %v464
      %492 = vst.msk [vmem:[%s275 + $0xc] sm:$0xf] %vm488, %v465
      %493 = vst.msk [vmem:[%s275 + $0x10] sm:$0xf] %vm488, %v466
      %494 = vst.msk [vmem:[%s275 + $0x14] sm:$0xf] %vm488, %v467
      %495 = vst.msk [vmem:[%s275 + $0x18] sm:$0xf] %vm488, %v468
      %496 = vst.msk [vmem:[%s275 + $0x1c] sm:$0xf] %vm488, %v469
      %497 = vst.msk [vmem:[%s275 + $0x20] sm:$0xf] %vm488, %v470
      %498 = vst.msk [vmem:[%s275 + $0x24] sm:$0xf] %vm488, %v471
      %499 = vst.msk [vmem:[%s275 + $0x28] sm:$0xf] %vm488, %v472
      %500 = vst.msk [vmem:[%s275 + $0x2c] sm:$0xf] %vm488, %v473
      %501 = vst.msk [vmem:[%s275 + $0x30] sm:$0xf] %vm488, %v474
      %s502 = smul.u32 13, %s17
      %p503 = scmp.lt.s32.totalorder %s502, 25
      %s504 = scalar_select %p503, %s502, 25
      %s505 = smul.addr %s504, 4
      %s506 = scalar_lea.vmem %s6, %s505
      // Predicated region
      $region45: #{basic_block_forward.5} parent=43 // pred_check
        %p507 = pneg %p171
      $region46: #{basic_block_forward.5} parent=43 // pred_check_branch
        %509 = sbr.rel (%p507) target = $region48
      $region47: #{basic_block_forward.5} parent=43 // pred_region
        %s510 = smul.u32 13, %s17
      $region48: #{basic_block_forward.5} parent=43 // pred_fallthru
        _
    $region44: #{basic_block_forward.5} parent=5 // pred_fallthru
      _
    %p511 = scmp.le.s32.totalorder 2, %s12
    // Predicated region
    $region49: #{basic_block_forward.5} parent=5 // pred_check
      %p512 = pneg %p511
    $region50: #{basic_block_forward.5} parent=5 // pred_check_branch
      %514 = sbr.rel (%p512) target = $region52
    $region51: #{basic_block_forward.5} parent=5 // pred_region
      %s515 = ssub.s32 %s12, 2
      // Predicated region
      $region53: #{basic_block_forward.5} parent=51 // pred_check
        %p516 = pneg %p177
      $region54: #{basic_block_forward.5} parent=51 // pred_check_branch
        %518 = sbr.rel (%p516) target = $region56
      $region55: #{basic_block_forward.5} parent=51 // pred_region
        %s519 = smul.u32 13, %s18
        %p520 = scmp.lt.s32.totalorder %s519, 25
        %s521 = scalar_select %p520, %s519, 25
        %s522 = smul.addr %s521, 4
        %s523 = scalar_lea.vmem %s6, %s522
      $region56: #{basic_block_forward.5} parent=51 // pred_fallthru
        _
    $region52: #{basic_block_forward.5} parent=5 // pred_fallthru
      _
  $region6: #{basic_block_forward.5} parent=0 // loop_footer
    %s16 = sadd.s32 1, %s12
  $region7: #{basic_block_forward.5} parent=0 // loop_footer_branch
    %11 = sbr.rel target = $region3
  $region8: #{basic_block_forward.5} parent=0 // loop_exit
    _

// kernel: basic_block_forward.4
$region0: #{basic_block_forward.4}
  #allocation0 [shape = 'u32[]', space=smem, size = 0x4, offset = 0x4, fixed_abs, tag = 'smem constant byte address 0x4 - core index']
  #allocation1 [shape = 'u32[144,128]{1,0:T(1,128)}', space=vmem, size = 0x12000, scoped, tag = 'internal scratch']
  #allocation2 [shape = 'bf16[128,16]{1,0:T(16,128)(2,1)}', space=vmem, size = 0x8000, scoped, tag = 'scratch operand']
  %s0 = inlined_call_operand.vmem [shape: bf16[208,16], index: 0, kind: input, shape index: {}]
  %s1 = inlined_call_operand.vmem [shape: bf16[2,24,16], index: 1, kind: input, shape index: {}]
  %s2 = inlined_call_operand.vmem [shape: f32[208,1], index: 2, kind: input, shape index: {}]
  %s3 = inlined_call_operand.vmem [shape: f32[2,24,1], index: 3, kind: input, shape index: {}]
  %s4 = inlined_call_operand.vmem [shape: f32[1,16], index: 4, kind: input, shape index: {}]
  %s5 = inlined_call_operand.vmem [shape: f32[1,16], index: 5, kind: input, shape index: {}]
  %s6 = inlined_call_operand.vmem [shape: bf16[9,16,16], index: 6, kind: input, shape index: {}]
  %s7 = inlined_call_operand.vmem [shape: f32[208,1], index: 7, kind: input, shape index: {}]
  %s8 = inlined_call_operand.vmem [shape: bf16[208,8], index: 8, kind: input, shape index: {}]
  %s9 = inlined_call_operand.vmem [shape: bf16[8,16], index: 9, kind: input, shape index: {}]
  %s10 = inlined_call_operand.vmem [shape: bf16[208,16], index: 10, kind: output, shape index: {0}]
  %s11 = inlined_call_operand.vmem [shape: f32[16,16], index: 11, kind: output, shape index: {1}]
  %s12 = inlined_call_operand.vmem [shape: bf16[208,16], index: 12, kind: output, shape index: {2}]
  %s13 = inlined_call_operand.vmem [shape: f32[16,16], index: 13, kind: output, shape index: {3}]
  %14 = xla_tuple %s10, %s11, %s12, %s13
  %s15 = sld [smem:[#allocation0]]
  $region97: #{basic_block_forward.4} parent=0
    _
  %s17 = ssub.s32 1, %s15
  %s18 = scalar_select 0, %s17, %s15
  loop: start=0, step=1, limit=4
  $region2: #{basic_block_forward.4} parent=0 // loop_pre_header
    _
  $region3: #{basic_block_forward.4} parent=0 // loop_header
    %s20 = sphi 0, %s24
    %p21 = scmp.ge.s32.totalorder %s20, 4
    %s30 = sphi 0, %s32
    %s33 = sphi 0, %s30
    %s34 = sphi 0, %s33
    %s50 = sphi 0, %s34
    %s56 = sphi 0, %s58
    %s59 = sphi 0, %s56
    %s60 = sphi 0, %s59
    %s76 = sphi 0, %s60
    %s82 = sphi 0, %s84
    %s85 = sphi 0, %s82
    %s86 = sphi 0, %s85
    %s102 = sphi 0, %s86
    %s108 = sphi 0, %s110
    %s111 = sphi 0, %s108
    %s112 = sphi 0, %s111
    %s128 = sphi 0, %s112
    %s132 = sphi 0, %s132
    %s134 = sphi 0, %s132
    %s135 = sphi 0, %s134
    %s149 = sphi 0, %s135
    %s153 = sphi 0, %s153
    %s155 = sphi 0, %s153
    %s156 = sphi 0, %s155
    %s170 = sphi 0, %s156
    %s174 = sphi 0, %s174
    %s176 = sphi 0, %s174
    %s177 = sphi 0, %s176
    %s191 = sphi 0, %s177
    %s197 = sphi 0, %s199
    %s200 = sphi 0, %s197
    %s201 = sphi 0, %s200
    %s217 = sphi 0, %s201
    %s223 = sphi 0, %s225
    %s226 = sphi 0, %s223
    %s227 = sphi 0, %s226
    %s243 = sphi 0, %s227
    %s247 = sphi 0, %s247
    %s249 = sphi 0, %s247
    %s250 = sphi 0, %s249
    %s264 = sphi 0, %s250
    %s270 = sphi 0, %s272
    %s273 = sphi 0, %s270
    %s274 = sphi 0, %s273
    %s290 = sphi 0, %s274
    %s296 = sphi 0, %s298
    %s299 = sphi 0, %s296
    %s300 = sphi 0, %s299
    %s316 = sphi 0, %s300
    %s322 = sphi 0, %s324
    %s325 = sphi 0, %s322
    %s326 = sphi 0, %s325
    %s342 = sphi 0, %s326
    %s348 = sphi 0, %s350
    %s351 = sphi 0, %s348
    %s352 = sphi 0, %s351
    %s368 = sphi 0, %s352
  $region4: #{basic_block_forward.4} parent=0 // loop_header_branch
    %23 = sbr.rel (%p21) target = $region8
  $region5: #{basic_block_forward.4} parent=0 // loop_body
    %s25 = ssub.s32 %s20, 1
    %s26 = ssub.s32 %s20, 2
    %s27 = sadd.s32 %s20, 1
    %s28 = ssub.s32 %s20, %s27
    %p29 = scmp.eq.s32.totalorder %s28, 0
    %s31 = sadd.s32 %s30, 1
    %s32 = scalar_select %p29, %s30, %s31
    %p35 = pneg %p29
    %p36 = scmp.eq.s32.totalorder %s20, 1
    %p37 = por %p35, %p36
    %p38 = scmp.ne.s32.totalorder %s30, %s33
    %p39 = scmp.eq.s32.totalorder %s20, 0
    %p40 = por %p38, %p39
    %p41 = scmp.ne.s32.totalorder %s30, %s33
    %p42 = scmp.eq.s32.totalorder %s25, 1
    %p43 = por %p41, %p42
    %p44 = scmp.ne.s32.totalorder %s33, %s34
    %p45 = scmp.eq.s32.totalorder %s25, 0
    %p46 = por %p44, %p45
    %p47 = scmp.ne.s32.totalorder %s33, %s34
    %p48 = scmp.eq.s32.totalorder %s26, 1
    %p49 = por %p47, %p48
    %p51 = scmp.ne.s32.totalorder %s34, %s50
    %p52 = scmp.eq.s32.totalorder %s26, 0
    %p53 = por %p51, %p52
    %s54 = ssub.s32 %s20, %s27
    %p55 = scmp.eq.s32.totalorder %s54, 0
    %s57 = sadd.s32 %s56, 1
    %s58 = scalar_select %p55, %s56, %s57
    %p61 = pneg %p55
    %p62 = scmp.eq.s32.totalorder %s20, 1
    %p63 = por %p61, %p62
    %p64 = scmp.ne.s32.totalorder %s56, %s59
    %p65 = scmp.eq.s32.totalorder %s20, 0
    %p66 = por %p64, %p65
    %p67 = scmp.ne.s32.totalorder %s56, %s59
    %p68 = scmp.eq.s32.totalorder %s25, 1
    %p69 = por %p67, %p68
    %p70 = scmp.ne.s32.totalorder %s59, %s60
    %p71 = scmp.eq.s32.totalorder %s25, 0
    %p72 = por %p70, %p71
    %p73 = scmp.ne.s32.totalorder %s59, %s60
    %p74 = scmp.eq.s32.totalorder %s26, 1
    %p75 = por %p73, %p74
    %p77 = scmp.ne.s32.totalorder %s60, %s76
    %p78 = scmp.eq.s32.totalorder %s26, 0
    %p79 = por %p77, %p78
    %s80 = ssub.s32 %s20, %s27
    %p81 = scmp.eq.s32.totalorder %s80, 0
    %s83 = sadd.s32 %s82, 1
    %s84 = scalar_select %p81, %s82, %s83
    %p87 = pneg %p81
    %p88 = scmp.eq.s32.totalorder %s20, 1
    %p89 = por %p87, %p88
    %p90 = scmp.ne.s32.totalorder %s82, %s85
    %p91 = scmp.eq.s32.totalorder %s20, 0
    %p92 = por %p90, %p91
    %p93 = scmp.ne.s32.totalorder %s82, %s85
    %p94 = scmp.eq.s32.totalorder %s25, 1
    %p95 = por %p93, %p94
    %p96 = scmp.ne.s32.totalorder %s85, %s86
    %p97 = scmp.eq.s32.totalorder %s25, 0
    %p98 = por %p96, %p97
    %p99 = scmp.ne.s32.totalorder %s85, %s86
    %p100 = scmp.eq.s32.totalorder %s26, 1
    %p101 = por %p99, %p100
    %p103 = scmp.ne.s32.totalorder %s86, %s102
    %p104 = scmp.eq.s32.totalorder %s26, 0
    %p105 = por %p103, %p104
    %s106 = ssub.s32 %s20, %s27
    %p107 = scmp.eq.s32.totalorder %s106, 0
    %s109 = sadd.s32 %s108, 1
    %s110 = scalar_select %p107, %s108, %s109
    %p113 = pneg %p107
    %p114 = scmp.eq.s32.totalorder %s20, 1
    %p115 = por %p113, %p114
    %p116 = scmp.ne.s32.totalorder %s108, %s111
    %p117 = scmp.eq.s32.totalorder %s20, 0
    %p118 = por %p116, %p117
    %p119 = scmp.ne.s32.totalorder %s108, %s111
    %p120 = scmp.eq.s32.totalorder %s25, 1
    %p121 = por %p119, %p120
    %p122 = scmp.ne.s32.totalorder %s111, %s112
    %p123 = scmp.eq.s32.totalorder %s25, 0
    %p124 = por %p122, %p123
    %p125 = scmp.ne.s32.totalorder %s111, %s112
    %p126 = scmp.eq.s32.totalorder %s26, 1
    %p127 = por %p125, %p126
    %p129 = scmp.ne.s32.totalorder %s112, %s128
    %p130 = scmp.eq.s32.totalorder %s26, 0
    %p131 = por %p129, %p130
    %s133 = sadd.s32 %s132, 1
    %p136 = scmp.eq.s32.totalorder %s20, 1
    %p137 = scmp.ne.s32.totalorder %s132, %s134
    %p138 = scmp.eq.s32.totalorder %s20, 0
    %p139 = por %p137, %p138
    %p140 = scmp.ne.s32.totalorder %s132, %s134
    %p141 = scmp.eq.s32.totalorder %s25, 1
    %p142 = por %p140, %p141
    %p143 = scmp.ne.s32.totalorder %s134, %s135
    %p144 = scmp.eq.s32.totalorder %s25, 0
    %p145 = por %p143, %p144
    %p146 = scmp.ne.s32.totalorder %s134, %s135
    %p147 = scmp.eq.s32.totalorder %s26, 1
    %p148 = por %p146, %p147
    %p150 = scmp.ne.s32.totalorder %s135, %s149
    %p151 = scmp.eq.s32.totalorder %s26, 0
    %p152 = por %p150, %p151
    %s154 = sadd.s32 %s153, 1
    %p157 = scmp.eq.s32.totalorder %s20, 1
    %p158 = scmp.ne.s32.totalorder %s153, %s155
    %p159 = scmp.eq.s32.totalorder %s20, 0
    %p160 = por %p158, %p159
    %p161 = scmp.ne.s32.totalorder %s153, %s155
    %p162 = scmp.eq.s32.totalorder %s25, 1
    %p163 = por %p161, %p162
    %p164 = scmp.ne.s32.totalorder %s155, %s156
    %p165 = scmp.eq.s32.totalorder %s25, 0
    %p166 = por %p164, %p165
    %p167 = scmp.ne.s32.totalorder %s155, %s156
    %p168 = scmp.eq.s32.totalorder %s26, 1
    %p169 = por %p167, %p168
    %p171 = scmp.ne.s32.totalorder %s156, %s170
    %p172 = scmp.eq.s32.totalorder %s26, 0
    %p173 = por %p171, %p172
    %s175 = sadd.s32 %s174, 1
    %p178 = scmp.eq.s32.totalorder %s20, 1
    %p179 = scmp.ne.s32.totalorder %s174, %s176
    %p180 = scmp.eq.s32.totalorder %s20, 0
    %p181 = por %p179, %p180
    %p182 = scmp.ne.s32.totalorder %s174, %s176
    %p183 = scmp.eq.s32.totalorder %s25, 1
    %p184 = por %p182, %p183
    %p185 = scmp.ne.s32.totalorder %s176, %s177
    %p186 = scmp.eq.s32.totalorder %s25, 0
    %p187 = por %p185, %p186
    %p188 = scmp.ne.s32.totalorder %s176, %s177
    %p189 = scmp.eq.s32.totalorder %s26, 1
    %p190 = por %p188, %p189
    %p192 = scmp.ne.s32.totalorder %s177, %s191
    %p193 = scmp.eq.s32.totalorder %s26, 0
    %p194 = por %p192, %p193
    %s195 = ssub.s32 %s20, %s27
    %p196 = scmp.eq.s32.totalorder %s195, 0
    %s198 = sadd.s32 %s197, 1
    %s199 = scalar_select %p196, %s197, %s198
    %p202 = pneg %p196
    %p203 = scmp.eq.s32.totalorder %s20, 1
    %p204 = por %p202, %p203
    %p205 = scmp.ne.s32.totalorder %s197, %s200
    %p206 = scmp.eq.s32.totalorder %s20, 0
    %p207 = por %p205, %p206
    %p208 = scmp.ne.s32.totalorder %s197, %s200
    %p209 = scmp.eq.s32.totalorder %s25, 1
    %p210 = por %p208, %p209
    %p211 = scmp.ne.s32.totalorder %s200, %s201
    %p212 = scmp.eq.s32.totalorder %s25, 0
    %p213 = por %p211, %p212
    %p214 = scmp.ne.s32.totalorder %s200, %s201
    %p215 = scmp.eq.s32.totalorder %s26, 1
    %p216 = por %p214, %p215
    %p218 = scmp.ne.s32.totalorder %s201, %s217
    %p219 = scmp.eq.s32.totalorder %s26, 0
    %p220 = por %p218, %p219
    %s221 = ssub.s32 %s20, %s27
    %p222 = scmp.eq.s32.totalorder %s221, 0
    %s224 = sadd.s32 %s223, 1
    %s225 = scalar_select %p222, %s223, %s224
    %p228 = pneg %p222
    %p229 = scmp.eq.s32.totalorder %s20, 1
    %p230 = por %p228, %p229
    %p231 = scmp.ne.s32.totalorder %s223, %s226
    %p232 = scmp.eq.s32.totalorder %s20, 0
    %p233 = por %p231, %p232
    %p234 = scmp.ne.s32.totalorder %s223, %s226
    %p235 = scmp.eq.s32.totalorder %s25, 1
    %p236 = por %p234, %p235
    %p237 = scmp.ne.s32.totalorder %s226, %s227
    %p238 = scmp.eq.s32.totalorder %s25, 0
    %p239 = por %p237, %p238
    %p240 = scmp.ne.s32.totalorder %s226, %s227
    %p241 = scmp.eq.s32.totalorder %s26, 1
    %p242 = por %p240, %p241
    %p244 = scmp.ne.s32.totalorder %s227, %s243
    %p245 = scmp.eq.s32.totalorder %s26, 0
    %p246 = por %p244, %p245
    %s248 = sadd.s32 %s247, 1
    %p251 = scmp.eq.s32.totalorder %s20, 1
    %p252 = scmp.ne.s32.totalorder %s247, %s249
    %p253 = scmp.eq.s32.totalorder %s20, 0
    %p254 = por %p252, %p253
    %p255 = scmp.ne.s32.totalorder %s247, %s249
    %p256 = scmp.eq.s32.totalorder %s25, 1
    %p257 = por %p255, %p256
    %p258 = scmp.ne.s32.totalorder %s249, %s250
    %p259 = scmp.eq.s32.totalorder %s25, 0
    %p260 = por %p258, %p259
    %p261 = scmp.ne.s32.totalorder %s249, %s250
    %p262 = scmp.eq.s32.totalorder %s26, 1
    %p263 = por %p261, %p262
    %p265 = scmp.ne.s32.totalorder %s250, %s264
    %p266 = scmp.eq.s32.totalorder %s26, 0
    %p267 = por %p265, %p266
    %s268 = ssub.s32 %s20, %s27
    %p269 = scmp.eq.s32.totalorder %s268, 0
    %s271 = sadd.s32 %s270, 1
    %s272 = scalar_select %p269, %s270, %s271
    %p275 = pneg %p269
    %p276 = scmp.eq.s32.totalorder %s20, 1
    %p277 = por %p275, %p276
    %p278 = scmp.ne.s32.totalorder %s270, %s273
    %p279 = scmp.eq.s32.totalorder %s20, 0
    %p280 = por %p278, %p279
    %p281 = scmp.ne.s32.totalorder %s270, %s273
    %p282 = scmp.eq.s32.totalorder %s25, 1
    %p283 = por %p281, %p282
    %p284 = scmp.ne.s32.totalorder %s273, %s274
    %p285 = scmp.eq.s32.totalorder %s25, 0
    %p286 = por %p284, %p285
    %p287 = scmp.ne.s32.totalorder %s273, %s274
    %p288 = scmp.eq.s32.totalorder %s26, 1
    %p289 = por %p287, %p288
    %p291 = scmp.ne.s32.totalorder %s274, %s290
    %p292 = scmp.eq.s32.totalorder %s26, 0
    %p293 = por %p291, %p292
    %s294 = ssub.s32 %s20, %s27
    %p295 = scmp.eq.s32.totalorder %s294, 0
    %s297 = sadd.s32 %s296, 1
    %s298 = scalar_select %p295, %s296, %s297
    %p301 = pneg %p295
    %p302 = scmp.eq.s32.totalorder %s20, 1
    %p303 = por %p301, %p302
    %p304 = scmp.ne.s32.totalorder %s296, %s299
    %p305 = scmp.eq.s32.totalorder %s20, 0
    %p306 = por %p304, %p305
    %p307 = scmp.ne.s32.totalorder %s296, %s299
    %p308 = scmp.eq.s32.totalorder %s25, 1
    %p309 = por %p307, %p308
    %p310 = scmp.ne.s32.totalorder %s299, %s300
    %p311 = scmp.eq.s32.totalorder %s25, 0
    %p312 = por %p310, %p311
    %p313 = scmp.ne.s32.totalorder %s299, %s300
    %p314 = scmp.eq.s32.totalorder %s26, 1
    %p315 = por %p313, %p314
    %p317 = scmp.ne.s32.totalorder %s300, %s316
    %p318 = scmp.eq.s32.totalorder %s26, 0
    %p319 = por %p317, %p318
    %s320 = ssub.s32 %s20, %s27
    %p321 = scmp.eq.s32.totalorder %s320, 0
    %s323 = sadd.s32 %s322, 1
    %s324 = scalar_select %p321, %s322, %s323
    %p327 = pneg %p321
    %p328 = scmp.eq.s32.totalorder %s20, 1
    %p329 = por %p327, %p328
    %p330 = scmp.ne.s32.totalorder %s322, %s325
    %p331 = scmp.eq.s32.totalorder %s20, 0
    %p332 = por %p330, %p331
    %p333 = scmp.ne.s32.totalorder %s322, %s325
    %p334 = scmp.eq.s32.totalorder %s25, 1
    %p335 = por %p333, %p334
    %p336 = scmp.ne.s32.totalorder %s325, %s326
    %p337 = scmp.eq.s32.totalorder %s25, 0
    %p338 = por %p336, %p337
    %p339 = scmp.ne.s32.totalorder %s325, %s326
    %p340 = scmp.eq.s32.totalorder %s26, 1
    %p341 = por %p339, %p340
    %p343 = scmp.ne.s32.totalorder %s326, %s342
    %p344 = scmp.eq.s32.totalorder %s26, 0
    %p345 = por %p343, %p344
    %s346 = ssub.s32 %s20, %s27
    %p347 = scmp.eq.s32.totalorder %s346, 0
    %s349 = sadd.s32 %s348, 1
    %s350 = scalar_select %p347, %s348, %s349
    %p353 = pneg %p347
    %p354 = scmp.eq.s32.totalorder %s20, 1
    %p355 = por %p353, %p354
    %p356 = scmp.ne.s32.totalorder %s348, %s351
    %p357 = scmp.eq.s32.totalorder %s20, 0
    %p358 = por %p356, %p357
    %p359 = scmp.ne.s32.totalorder %s348, %s351
    %p360 = scmp.eq.s32.totalorder %s25, 1
    %p361 = por %p359, %p360
    %p362 = scmp.ne.s32.totalorder %s351, %s352
    %p363 = scmp.eq.s32.totalorder %s25, 0
    %p364 = por %p362, %p363
    %p365 = scmp.ne.s32.totalorder %s351, %s352
    %p366 = scmp.eq.s32.totalorder %s26, 1
    %p367 = por %p365, %p366
    %p369 = scmp.ne.s32.totalorder %s352, %s368
    %p370 = scmp.eq.s32.totalorder %s26, 0
    %p371 = por %p369, %p370
    %p372 = scmp.le.s32.totalorder 1, %s20
    %p373 = scmp.lt.s32.totalorder %s20, 3
    %p374 = pnand %p372, %p373
    %p375 = pneg %p374
    // Predicated region
    $region9: #{basic_block_forward.4} parent=5 // pred_check
      _
    $region10: #{basic_block_forward.4} parent=5 // pred_check_branch
      %377 = sbr.rel (%p374) target = $region12
    $region11: #{basic_block_forward.4} parent=5 // pred_region
      %s378 = ssub.s32 %s20, 1
      // Predicated region
      $region13: #{basic_block_forward.4} parent=11 // pred_check
        %p379 = pneg %p145
      $region14: #{basic_block_forward.4} parent=11 // pred_check_branch
        %381 = sbr.rel (%p379) target = $region16
      $region15: #{basic_block_forward.4} parent=11 // pred_region
        _
      $region16: #{basic_block_forward.4} parent=11 // pred_fallthru
        _
      // Predicated region
      $region17: #{basic_block_forward.4} parent=11 // pred_check
        %p382 = pneg %p166
      $region18: #{basic_block_forward.4} parent=11 // pred_check_branch
        %384 = sbr.rel (%p382) target = $region20
      $region19: #{basic_block_forward.4} parent=11 // pred_region
        _
      $region20: #{basic_block_forward.4} parent=11 // pred_fallthru
        _
      // Predicated region
      $region21: #{basic_block_forward.4} parent=11 // pred_check
        %p385 = pneg %p187
      $region22: #{basic_block_forward.4} parent=11 // pred_check_branch
        %387 = sbr.rel (%p385) target = $region24
      $region23: #{basic_block_forward.4} parent=11 // pred_region
        _
      $region24: #{basic_block_forward.4} parent=11 // pred_fallthru
        _
      // Predicated region
      $region25: #{basic_block_forward.4} parent=11 // pred_check
        %p388 = pneg %p260
      $region26: #{basic_block_forward.4} parent=11 // pred_check_branch
        %390 = sbr.rel (%p388) target = $region28
      $region27: #{basic_block_forward.4} parent=11 // pred_region
        _
      $region28: #{basic_block_forward.4} parent=11 // pred_fallthru
        _
    $region12: #{basic_block_forward.4} parent=5 // pred_fallthru
      _
    %p391 = scmp.lt.s32.totalorder %s20, 2
    // Predicated region
    $region29: #{basic_block_forward.4} parent=5 // pred_check
      %p392 = pneg %p391
    $region30: #{basic_block_forward.4} parent=5 // pred_check_branch
      %394 = sbr.rel (%p392) target = $region32
    $region31: #{basic_block_forward.4} parent=5 // pred_region
      // Predicated region
      $region33: #{basic_block_forward.4} parent=31 // pred_check
        %p395 = pneg %p40
      $region34: #{basic_block_forward.4} parent=31 // pred_check_branch
        %397 = sbr.rel (%p395) target = $region36
      $region35: #{basic_block_forward.4} parent=31 // pred_region
        %s398 = smul.u32 13, %s20
        %p399 = scmp.lt.s32.totalorder %s398, 25
        %s400 = scalar_select %p399, %s398, 25
        %s401 = smul.addr %s400, 4
        %s402 = scalar_lea.vmem %s0, %s401
        %s403 = smul.u32 13, %s20
      $region36: #{basic_block_forward.4} parent=31 // pred_fallthru
        _
      // Predicated region
      $region37: #{basic_block_forward.4} parent=31 // pred_check
        %p404 = pneg %p66
      $region38: #{basic_block_forward.4} parent=31 // pred_check_branch
        %406 = sbr.rel (%p404) target = $region40
      $region39: #{basic_block_forward.4} parent=31 // pred_region
        %p407 = scmp.lt.s32.totalorder %s20, 1
        %s408 = scalar_select %p407, %s20, 1
        %s409 = smul.addr %s408, 3
        %s410 = smul.addr %s409, 4
        %s411 = scalar_lea.vmem %s1, %s410
      $region40: #{basic_block_forward.4} parent=31 // pred_fallthru
        _
      // Predicated region
      $region41: #{basic_block_forward.4} parent=31 // pred_check
        %p412 = pneg %p92
      $region42: #{basic_block_forward.4} parent=31 // pred_check_branch
        %414 = sbr.rel (%p412) target = $region44
      $region43: #{basic_block_forward.4} parent=31 // pred_region
        %s415 = smul.u32 13, %s20
        %p416 = scmp.lt.s32.totalorder %s415, 25
        %s417 = scalar_select %p416, %s415, 25
        %s418 = smul.addr %s417, 8
        %s419 = scalar_lea.vmem %s2, %s418
        %s420 = smul.u32 13, %s20
      $region44: #{basic_block_forward.4} parent=31 // pred_fallthru
        _
      // Predicated region
      $region45: #{basic_block_forward.4} parent=31 // pred_check
        %p421 = pneg %p118
      $region46: #{basic_block_forward.4} parent=31 // pred_check_branch
        %423 = sbr.rel (%p421) target = $region48
      $region47: #{basic_block_forward.4} parent=31 // pred_region
        %p424 = scmp.lt.s32.totalorder %s20, 1
        %s425 = scalar_select %p424, %s20, 1
        %s426 = smul.addr %s425, 3
        %s427 = smul.addr %s426, 8
        %s428 = scalar_lea.vmem %s3, %s427
      $region48: #{basic_block_forward.4} parent=31 // pred_fallthru
        _
      // Predicated region
      $region49: #{basic_block_forward.4} parent=31 // pred_check
        %p429 = pneg %p207
      $region50: #{basic_block_forward.4} parent=31 // pred_check_branch
        %431 = sbr.rel (%p429) target = $region52
      $region51: #{basic_block_forward.4} parent=31 // pred_region
        %s432 = smul.u32 13, %s20
        %p433 = scmp.lt.s32.totalorder %s432, 25
        %s434 = scalar_select %p433, %s432, 25
        %s435 = smul.addr %s434, 8
        %s436 = scalar_lea.vmem %s7, %s435
        %s437 = smul.u32 13, %s20
      $region52: #{basic_block_forward.4} parent=31 // pred_fallthru
        _
      // Predicated region
      $region53: #{basic_block_forward.4} parent=31 // pred_check
        %p438 = pneg %p233
      $region54: #{basic_block_forward.4} parent=31 // pred_check_branch
        %440 = sbr.rel (%p438) target = $region56
      $region55: #{basic_block_forward.4} parent=31 // pred_region
        %s441 = smul.u32 13, %s20
        %p442 = scmp.lt.s32.totalorder %s441, 25
        %s443 = scalar_select %p442, %s441, 25
        %s444 = smul.addr %s443, 4
        %s445 = scalar_lea.vmem %s8, %s444
        %s446 = smul.u32 13, %s20
      $region56: #{basic_block_forward.4} parent=31 // pred_fallthru
        _
    $region32: #{basic_block_forward.4} parent=5 // pred_fallthru
      _
    %p447 = scmp.le.s32.totalorder 1, %s20
    %p448 = scmp.lt.s32.totalorder %s20, 3
    %p449 = pnand %p447, %p448
    %p450 = pneg %p449
    // Predicated region
    $region57: #{basic_block_forward.4} parent=5 // pred_check
      _
    $region58: #{basic_block_forward.4} parent=5 // pred_check_branch
      %452 = sbr.rel (%p449) target = $region60
    $region59: #{basic_block_forward.4} parent=5 // pred_region
      %s453 = ssub.s32 %s20, 1
      %s454 = smul.u32 13, %s25
      %p455 = scmp.lt.s32.totalorder %s454, 25
      %s456 = scalar_select %p455, %s454, 25
      %s457 = smul.addr %s456, 4
      %s458 = scalar_lea.vmem %s0, %s457
      %p459 = pneg %p46
      %p460 = pneg %p43
      %p461 = scmp.lt.s32.totalorder %s25, 1
      %s462 = scalar_select %p461, %s25, 1
      %s463 = smul.addr %s462, 3
      %s464 = smul.addr %s463, 4
      %s465 = scalar_lea.vmem %s1, %s464
      %p466 = pneg %p72
      %p467 = pneg %p69
      %s468 = smul.u32 13, %s25
      %p469 = scmp.lt.s32.totalorder %s468, 25
      %s470 = scalar_select %p469, %s468, 25
      %s471 = smul.addr %s470, 8
      %s472 = scalar_lea.vmem %s2, %s471
      %p473 = pneg %p98
      %p474 = pneg %p95
      %p475 = scmp.lt.s32.totalorder %s25, 1
      %s476 = scalar_select %p475, %s25, 1
      %s477 = smul.addr %s476, 3
      %s478 = smul.addr %s477, 8
      %s479 = scalar_lea.vmem %s3, %s478
      %p480 = pneg %p124
      %p481 = pneg %p121
      %p482 = pneg %p145
      %p483 = pneg %p142
      %p484 = pneg %p166
      %p485 = pneg %p163
      %p486 = pneg %p187
      %p487 = pneg %p184
      %s488 = smul.u32 13, %s25
      %p489 = scmp.lt.s32.totalorder %s488, 25
      %s490 = scalar_select %p489, %s488, 25
      %s491 = smul.addr %s490, 8
      %s492 = scalar_lea.vmem %s7, %s491
      %p493 = pneg %p213
      %p494 = pneg %p210
      %s495 = smul.u32 13, %s25
      %p496 = scmp.lt.s32.totalorder %s495, 25
      %s497 = scalar_select %p496, %s495, 25
      %s498 = smul.addr %s497, 4
      %s499 = scalar_lea.vmem %s8, %s498
      %p500 = pneg %p239
      %p501 = pneg %p236
      %p502 = pneg %p260
      %p503 = pneg %p257
      %p504 = pneg %p286
      %p505 = pneg %p283
      %s506 = smul.u32 13, %s25
      %p507 = scmp.lt.s32.totalorder %s506, 25
      %s508 = scalar_select %p507, %s506, 25
      %s509 = smul.addr %s508, 4
      %s510 = scalar_lea.vmem %s10, %s509
      %p511 = pneg %p312
      %p512 = pneg %p309
      %p513 = scmp.lt.s32.totalorder %s25, 1
      %s514 = scalar_select %p513, %s25, 1
      %s515 = smul.addr %s514, 8
      %s516 = scalar_lea.vmem %s11, %s515
      %p517 = pneg %p338
      %p518 = pneg %p335
      %s519 = smul.u32 13, %s25
      %p520 = scmp.lt.s32.totalorder %s519, 25
      %s521 = scalar_select %p520, %s519, 25
      %s522 = smul.addr %s521, 4
      %s523 = scalar_lea.vmem %s12, %s522
      %p524 = pneg %p364
      %p525 = pneg %p361
      %p526 = scmp.lt.s32.totalorder %s25, 1
      %s527 = scalar_select %p526, %s25, 1
      %s528 = smul.addr %s527, 8
      %s529 = scalar_lea.vmem %s13, %s528
      %s530 = smul.u32 13, %s25
      %p531 = scmp.lt.s32.totalorder %s530, 25
      %s532 = scalar_select %p531, %s530, 25
      %s533 = smul.addr %s532, 4
      %s534 = scalar_lea.vmem %s0, %s533
      %s535 = smul.u32 13, %s25
      %p536 = scmp.lt.s32.totalorder %s25, 1
      %s537 = scalar_select %p536, %s25, 1
      %s538 = smul.addr %s537, 3
      %s539 = smul.addr %s538, 4
      %s540 = scalar_lea.vmem %s1, %s539
      %s541 = smul.u32 13, %s25
      %p542 = scmp.lt.s32.totalorder %s541, 25
      %s543 = scalar_select %p542, %s541, 25
      %s544 = smul.addr %s543, 8
      %s545 = scalar_lea.vmem %s2, %s544
      %s546 = smul.u32 13, %s25
      %p547 = scmp.lt.s32.totalorder %s25, 1
      %s548 = scalar_select %p547, %s25, 1
      %s549 = smul.addr %s548, 3
      %s550 = smul.addr %s549, 8
      %s551 = scalar_lea.vmem %s3, %s550
      %s552 = smul.u32 13, %s25
      %p553 = scmp.lt.s32.totalorder %s552, 25
      %s554 = scalar_select %p553, %s552, 25
      %s555 = smul.addr %s554, 8
      %s556 = scalar_lea.vmem %s7, %s555
      %s557 = smul.u32 13, %s25
      %s558 = smul.u32 13, %s25
      %p559 = scmp.lt.s32.totalorder %s558, 25
      %s560 = scalar_select %p559, %s558, 25
      %s561 = smul.addr %s560, 4
      %s562 = scalar_lea.vmem %s8, %s561
      %s563 = smul.u32 13, %s25
      %s564 = smul.u32 13, %s25
      %p565 = scmp.lt.s32.totalorder %s564, 25
      %s566 = scalar_select %p565, %s564, 25
      %s567 = smul.addr %s566, 4
      %s568 = scalar_lea.vmem %s10, %s567
      %s569 = smul.u32 13, %s25
      %p570 = scmp.lt.s32.totalorder %s25, 1
      %s571 = scalar_select %p570, %s25, 1
      %s572 = smul.addr %s571, 8
      %s573 = scalar_lea.vmem %s11, %s572
      %s574 = smul.u32 13, %s25
      %p575 = scmp.lt.s32.totalorder %s574, 25
      %s576 = scalar_select %p575, %s574, 25
      %s577 = smul.addr %s576, 4
      %s578 = scalar_lea.vmem %s12, %s577
      %s579 = smul.u32 13, %s25
      %p580 = scmp.lt.s32.totalorder %s25, 1
      %s581 = scalar_select %p580, %s25, 1
      %s582 = smul.addr %s581, 8
      %s583 = scalar_lea.vmem %s13, %s582
      %v585 = vld [vmem:[%s4] sm:$0x1]
      %v586 = vld [vmem:[%s5] sm:$0x1]
      %v587 = vld [vmem:[%s534] sm:$0xf]
      %v588 = vld [vmem:[%s534 + $0x4] sm:$0xf]
      %v589 = vld [vmem:[%s534 + $0x8] sm:$0xf]
      %v590 = vld [vmem:[%s534 + $0xc] sm:$0xf]
      %v591 = vld [vmem:[%s534 + $0x10] sm:$0xf]
      %v592 = vld [vmem:[%s534 + $0x14] sm:$0xf]
      %v593 = vld [vmem:[%s534 + $0x18] sm:$0xf]
      %v594 = vld [vmem:[%s534 + $0x1c] sm:$0xf]
      %v595 = vld [vmem:[%s534 + $0x20] sm:$0xf]
      %v596 = vld [vmem:[%s534 + $0x24] sm:$0xf]
      %v597 = vld [vmem:[%s534 + $0x28] sm:$0xf]
      %v598 = vld [vmem:[%s534 + $0x2c] sm:$0xf]
      %v599 = vld [vmem:[%s534 + $0x30] sm:$0xf]
      %v600 = vunpack.c.l.bf16 %v587
      %v601 = vunpack.c.l.bf16 %v588
      %v602 = vunpack.c.l.bf16 %v589
      %v603 = vunpack.c.l.bf16 %v590
      %v604 = vunpack.c.l.bf16 %v591
      %v605 = vunpack.c.l.bf16 %v592
      %v606 = vunpack.c.l.bf16 %v593
      %v607 = vunpack.c.l.bf16 %v594
      %v608 = vunpack.c.l.bf16 %v595
      %v609 = vunpack.c.l.bf16 %v596
      %v610 = vunpack.c.l.bf16 %v597
      %v611 = vunpack.c.l.bf16 %v598
      %v612 = vunpack.c.l.bf16 %v599
      %v614 = vlaneseq
      %v615 = vshrl.u32 %v614, 7
      %v616 = vsub.s32 0, %v615
      %v617 = vrot.slane %v585, %v616
      %v619 = vmul.f32 %v600, %v617
      %v620 = vmul.f32 %v601, %v617
      %v621 = vmul.f32 %v602, %v617
      %v622 = vmul.f32 %v603, %v617
      %v623 = vmul.f32 %v604, %v617
      %v624 = vmul.f32 %v605, %v617
      %v625 = vmul.f32 %v606, %v617
      %v626 = vmul.f32 %v607, %v617
      %v627 = vmul.f32 %v608, %v617
      %v628 = vmul.f32 %v609, %v617
      %v629 = vmul.f32 %v610, %v617
      %v630 = vmul.f32 %v611, %v617
      %v631 = vmul.f32 %v612, %v617
      %v633 = vlaneseq
      %v634 = vshrl.u32 %v633, 7
      %v635 = vsub.s32 0, %v634
      %v636 = vrot.slane %v586, %v635
      %v638 = vadd.f32 %v619, %v636
      %v639 = vadd.f32 %v620, %v636
      %v640 = vadd.f32 %v621, %v636
      %v641 = vadd.f32 %v622, %v636
      %v642 = vadd.f32 %v623, %v636
      %v643 = vadd.f32 %v624, %v636
      %v644 = vadd.f32 %v625, %v636
      %v645 = vadd.f32 %v626, %v636
      %v646 = vadd.f32 %v627, %v636
      %v647 = vadd.f32 %v628, %v636
      %v648 = vadd.f32 %v629, %v636
      %v649 = vadd.f32 %v630, %v636
      %v650 = vadd.f32 %v631, %v636
      %v651 = vmax.f32 %v638, 0.0
      %v652 = vmax.f32 %v639, 0.0
      %v653 = vmax.f32 %v640, 0.0
      %v654 = vmax.f32 %v641, 0.0
      %v655 = vmax.f32 %v642, 0.0
      %v656 = vmax.f32 %v643, 0.0
      %v657 = vmax.f32 %v644, 0.0
      %v658 = vmax.f32 %v645, 0.0
      %v659 = vmax.f32 %v646, 0.0
      %v660 = vmax.f32 %v647, 0.0
      %v661 = vmax.f32 %v648, 0.0
      %v662 = vmax.f32 %v649, 0.0
      %v663 = vmax.f32 %v650, 0.0
      %v664 = vld [vmem:[%s545] sm:$0xff]
      %v665 = vld [vmem:[%s545 + $0x8] sm:$0xff]
      %v666 = vld [vmem:[%s545 + $0x10] sm:$0xff]
      %v667 = vld [vmem:[%s545 + $0x18] sm:$0xff]
      %v668 = vld [vmem:[%s545 + $0x20] sm:$0xff]
      %v669 = vld [vmem:[%s545 + $0x28] sm:$0xff]
      %v670 = vld [vmem:[%s545 + $0x30] sm:$0xff]
      %v671 = vld [vmem:[%s545 + $0x38] sm:$0xff]
      %v672 = vld [vmem:[%s545 + $0x40] sm:$0xff]
      %v673 = vld [vmem:[%s545 + $0x48] sm:$0xff]
      %v674 = vld [vmem:[%s545 + $0x50] sm:$0xff]
      %v675 = vld [vmem:[%s545 + $0x58] sm:$0xff]
      %v676 = vld [vmem:[%s545 + $0x60] sm:$0xff]
      %678 = vset.pattern.permute.xlu0 0
      %679 = vperm.xlu0 %678, %v664
      %v680 = vpop.permute.xlu0 %679
      %683 = vset.pattern.permute.xlu0 0
      %684 = vperm.xlu0 %683, %v665
      %v685 = vpop.permute.xlu0 %684
      %688 = vset.pattern.permute.xlu0 0
      %689 = vperm.xlu0 %688, %v666
      %v690 = vpop.permute.xlu0 %689
      %693 = vset.pattern.permute.xlu0 0
      %694 = vperm.xlu0 %693, %v667
      %v695 = vpop.permute.xlu0 %694
      %698 = vset.pattern.permute.xlu0 0
      %699 = vperm.xlu0 %698, %v668
      %v700 = vpop.permute.xlu0 %699
      %703 = vset.pattern.permute.xlu0 0
      %704 = vperm.xlu0 %703, %v669
      %v705 = vpop.permute.xlu0 %704
      %708 = vset.pattern.permute.xlu0 0
      %709 = vperm.xlu0 %708, %v670
      %v710 = vpop.permute.xlu0 %709
      %713 = vset.pattern.permute.xlu0 0
      %714 = vperm.xlu0 %713, %v671
      %v715 = vpop.permute.xlu0 %714
      %718 = vset.pattern.permute.xlu0 0
      %719 = vperm.xlu0 %718, %v672
      %v720 = vpop.permute.xlu0 %719
      %723 = vset.pattern.permute.xlu0 0
      %724 = vperm.xlu0 %723, %v673
      %v725 = vpop.permute.xlu0 %724
      %728 = vset.pattern.permute.xlu0 0
      %729 = vperm.xlu0 %728, %v674
      %v730 = vpop.permute.xlu0 %729
      %733 = vset.pattern.permute.xlu0 0
      %734 = vperm.xlu0 %733, %v675
      %v735 = vpop.permute.xlu0 %734
      %738 = vset.pattern.permute.xlu0 0
      %739 = vperm.xlu0 %738, %v676
      %v740 = vpop.permute.xlu0 %739
      %v742 = vmul.f32 %v651, %v680
      %v743 = vmul.f32 %v652, %v685
      %v744 = vmul.f32 %v653, %v690
      %v745 = vmul.f32 %v654, %v695
      %v746 = vmul.f32 %v655, %v700
      %v747 = vmul.f32 %v656, %v705
      %v748 = vmul.f32 %v657, %v710
      %v749 = vmul.f32 %v658, %v715
      %v750 = vmul.f32 %v659, %v720
      %v751 = vmul.f32 %v660, %v725
      %v752 = vmul.f32 %v661, %v730
      %v753 = vmul.f32 %v662, %v735
      %v754 = vmul.f32 %v663, %v740
      %v755 = vpack.c.bf16 %v743, %v742
      %v756 = vpack.c.bf16 %v745, %v744
      %v757 = vpack.c.bf16 %v747, %v746
      %v758 = vpack.c.bf16 %v749, %v748
      %v759 = vpack.c.bf16 %v751, %v750
      %v760 = vpack.c.bf16 %v753, %v752
      %v761 = vpack.c.bf16 %v754, %v754
      %vm762 = vcmask 130048
      %763 = vst.msk [vmem:[#allocation2] sm:$0xff] %vm762, %v755
      %764 = vst.msk [vmem:[#allocation2 + $0x8] sm:$0xff] %vm762, %v756
      %765 = vst.msk [vmem:[#allocation2 + $0x10] sm:$0xff] %vm762, %v757
      %766 = vst.msk [vmem:[#allocation2 + $0x18] sm:$0xff] %vm762, %v758
      %767 = vst.msk [vmem:[#allocation2 + $0x20] sm:$0xff] %vm762, %v759
      %768 = vst.msk [vmem:[#allocation2 + $0x28] sm:$0xff] %vm762, %v760
      %vm769 = vcmask 125952
      %770 = vst.msk [vmem:[#allocation2 + $0x30] sm:$0xf] %vm769, %v761
      %v771 = vld [vmem:[%s540] sm:$0xf]
      %v772 = vld [vmem:[%s540 + $0x4] sm:$0xf]
      %v773 = vld [vmem:[%s540 + $0x8] sm:$0xf]
      %v774 = vunpack.c.l.bf16 %v771
      %v775 = vunpack.c.l.bf16 %v772
      %v776 = vunpack.c.l.bf16 %v773
      %v777 = vmul.f32 %v774, %v617
      %v778 = vmul.f32 %v775, %v617
      %v779 = vmul.f32 %v776, %v617
      %v780 = vadd.f32 %v777, %v636
      %v781 = vadd.f32 %v778, %v636
      %v782 = vadd.f32 %v779, %v636
      %v783 = vmax.f32 %v780, 0.0
      %v784 = vmax.f32 %v781, 0.0
      %v785 = vmax.f32 %v782, 0.0
      %v786 = vld [vmem:[%s551] sm:$0xff]
      %v787 = vld [vmem:[%s551 + $0x8] sm:$0xff]
      %v788 = vld [vmem:[%s551 + $0x10] sm:$0xff]
      %790 = vset.pattern.permute.xlu0 0
      %791 = vperm.xlu0 %790, %v786
      %v792 = vpop.permute.xlu0 %791
      %795 = vset.pattern.permute.xlu0 0
      %796 = vperm.xlu0 %795, %v787
      %v797 = vpop.permute.xlu0 %796
      %800 = vset.pattern.permute.xlu0 0
      %801 = vperm.xlu0 %800, %v788
      %v802 = vpop.permute.xlu0 %801
      %v804 = vmul.f32 %v783, %v792
      %v805 = vmul.f32 %v784, %v797
      %v806 = vmul.f32 %v785, %v802
      %v807 = vpack.c.bf16 %v805, %v804
      %v808 = vpack.c.bf16 %v806, %v806
      %vm811 = vcmask 1043456
      %v812 = vrot.slane %v807, 4
      %v813 = vrot.slane %v808, 4
      %v814 = vsel %vm811, %v812, %v813
      %vm817 = vcmask 130052
      %818 = vst.msk [vmem:[#allocation2 + $0x30] sm:$0xf0] %vm817, %v812
      %819 = vst.msk [vmem:[#allocation2 + $0x38] sm:$0xff] %vm762, %v814
      %v820 = vld [vmem:[#allocation2] sm:$0xff]
      %v821 = vld [vmem:[#allocation2 + $0x8] sm:$0xff]
      %v822 = vld [vmem:[#allocation2 + $0x10] sm:$0xff]
      %v823 = vld [vmem:[#allocation2 + $0x18] sm:$0xff]
      %v824 = vld [vmem:[#allocation2 + $0x20] sm:$0xff]
      %v825 = vld [vmem:[#allocation2 + $0x28] sm:$0xff]
      %v826 = vld [vmem:[#allocation2 + $0x30] sm:$0xf]
      %v827 = vld [vmem:[%s6] sm:$0xf]
      %v828 = vld [vmem:[%s6 + $0x4] sm:$0xf]
      %v829 = vld [vmem:[#allocation2 + $0x30] sm:$0x1f]
      %s830 = scalar_lea.vmem %s6, 8
      %v831 = vld [vmem:[%s830] sm:$0xf]
      %v832 = vld [vmem:[%s830 + $0x4] sm:$0xf]
      %vm833 = vsmask.f32 7424
      %v835 = vshrl.u32 %v820, 16
      %v837 = vshll.u32 %v820, 16
      %v839 = vrot.slane %v837, 1
      %v840 = vor.u32 %v835, %v839
      %v842 = vshll.u32 %v821, 16
      %v844 = vrot.slane %v842, 1
      %v845 = vsel %vm833, %v840, %v844
      %v846 = vshrl.u32 %v821, 16
      %v848 = vor.u32 %v846, %v844
      %v850 = vshll.u32 %v822, 16
      %v852 = vrot.slane %v850, 1
      %v853 = vsel %vm833, %v848, %v852
      %v854 = vshrl.u32 %v822, 16
      %v856 = vor.u32 %v854, %v852
      %v858 = vshll.u32 %v823, 16
      %v860 = vrot.slane %v858, 1
      %v861 = vsel %vm833, %v856, %v860
      %v862 = vshrl.u32 %v823, 16
      %v864 = vor.u32 %v862, %v860
      %v866 = vshll.u32 %v824, 16
      %v868 = vrot.slane %v866, 1
      %v869 = vsel %vm833, %v864, %v868
      %v870 = vshrl.u32 %v824, 16
      %v872 = vor.u32 %v870, %v868
      %v874 = vshll.u32 %v825, 16
      %v876 = vrot.slane %v874, 1
      %v877 = vsel %vm833, %v872, %v876
      %v878 = vshrl.u32 %v825, 16
      %v880 = vor.u32 %v878, %v876
      %v882 = vshll.u32 %v829, 16
      %v884 = vrot.slane %v882, 1
      %v885 = vsel %vm833, %v880, %v884
      %v886 = vshrl.u32 %v829, 16
      %v888 = vor.u32 %v886, %v884
      %v891 = vunpack.c.l.b16 %v831
      %v892 = vunpack.c.l.b16 %v832
      %v893 = vpack.c.b16 %v892, %v891
      %v896 = vsel %vm762, %v845, 0
      %v899 = vsel %vm762, %v853, 0
      %v902 = vsel %vm762, %v861, 0
      %v905 = vsel %vm762, %v869, 0
      %v908 = vsel %vm762, %v877, 0
      %v911 = vsel %vm762, %v885, 0
      %v914 = vsel %vm762, %v888, 0
      %916 = vmatprep.subr.bf16.mxu0 0
      %917 = vmatpush1.bf16.msra.mxu0 %v893
      %918 = vmatprep.subr.bf16.mxu0 0
      %919 = vmatpush1.bf16.msra.mxu0 0
      %920 = vmatprep.subr.bf16.mxu0 0
      %921 = vmatpush1.bf16.msra.mxu0 0
      %922 = vmatprep.subr.bf16.mxu0 0
      %923 = vmatpush1.bf16.msra.mxu0 0
      %924 = vmatprep.subr.bf16.mxu0 0
      %925 = vmatpush1.bf16.msra.mxu0 0
      %926 = vmatprep.subr.bf16.mxu0 0
      %927 = vmatpush1.bf16.msra.mxu0 0
      %928 = vmatprep.subr.bf16.mxu0 0
      %929 = vmatpush1.bf16.msra.mxu0 0
      %930 = vmatprep.subr.bf16.mxu0 0
      %931 = vmatpush1.bf16.msra.mxu0 0
      %932 = vmatprep.subr.bf16.mxu0 0
      %933 = vmatpush1.bf16.msra.mxu0 0
      %934 = vmatprep.subr.bf16.mxu0 0
      %935 = vmatpush1.bf16.msra.mxu0 0
      %936 = vmatprep.subr.bf16.mxu0 0
      %937 = vmatpush1.bf16.msra.mxu0 0
      %938 = vmatprep.subr.bf16.mxu0 0
      %939 = vmatpush1.bf16.msra.mxu0 0
      %940 = vmatprep.subr.bf16.mxu0 0
      %941 = vmatpush1.bf16.msra.mxu0 0
      %942 = vmatprep.subr.bf16.mxu0 0
      %943 = vmatpush1.bf16.msra.mxu0 0
      %944 = vmatprep.subr.bf16.mxu0 0
      %945 = vmatpush1.bf16.msra.mxu0 0
      %946 = vmatprep.subr.bf16.mxu0 0
      %947 = vmatpush1.bf16.msra.mxu0 0
      %948 = vmatprep.mubr.bf16.mxu0 0
      %949 = vmatmul.mubr.bf16.gmra.mrb[0].mxu0 %v896
      %v950 = vpop.f32.mrb[0].mxu0
      %v951 = vadd.f32 0.0, %v950
      %v952 = vpop.f32.mrb[0].mxu0
      %v953 = vpop.f32.mrb[0].mxu0
      %v954 = vadd.f32 0.0, %v953
      %v955 = vpop.f32.mrb[0].mxu0
      %956 = vmatprep.mubr.bf16.mxu0 0
      %957 = vmatmul.mubr.bf16.gmra.mrb[0].mxu0 %v899
      %v958 = vpop.f32.mrb[0].mxu0
      %v959 = vadd.f32 0.0, %v958
      %v960 = vpop.f32.mrb[0].mxu0
      %v961 = vpop.f32.mrb[0].mxu0
      %v962 = vadd.f32 0.0, %v961
      %v963 = vpop.f32.mrb[0].mxu0
      %964 = vmatprep.mubr.bf16.mxu0 0
      %965 = vmatmul.mubr.bf16.gmra.mrb[0].mxu0 %v902
      %v966 = vpop.f32.mrb[0].mxu0
      %v967 = vadd.f32 0.0, %v966
      %v968 = vpop.f32.mrb[0].mxu0
      %v969 = vpop.f32.mrb[0].mxu0
      %v970 = vadd.f32 0.0, %v969
      %v971 = vpop.f32.mrb[0].mxu0
      %972 = vmatprep.mubr.bf16.mxu0 0
      %973 = vmatmul.mubr.bf16.gmra.mrb[0].mxu0 %v905
      %v974 = vpop.f32.mrb[0].mxu0
      %v975 = vadd.f32 0.0, %v974
      %v976 = vpop.f32.mrb[0].mxu0
      %v977 = vpop.f32.mrb[0].mxu0
      %v978 = vadd.f32 0.0, %v977
      %v979 = vpop.f32.mrb[0].mxu0
      %980 = vmatprep.mubr.bf16.mxu0 0
      %981 = vmatmul.mubr.bf16.gmra.mrb[0].mxu0 %v908
      %v982 = vpop.f32.mrb[0].mxu0
      %v983 = vadd.f32 0.0, %v982
      %v984 = vpop.f32.mrb[0].mxu0
      %v985 = vpop.f32.mrb[0].mxu0
      %v986 = vadd.f32 0.0, %v985
      %v987 = vpop.f32.mrb[0].mxu0
      %988 = vmatprep.mubr.bf16.mxu0 0
      %989 = vmatmul.mubr.bf16.gmra.mrb[0].mxu0 %v911
      %v990 = vpop.f32.mrb[0].mxu0
      %v991 = vadd.f32 0.0, %v990
      %v992 = vpop.f32.mrb[0].mxu0
      %v993 = vpop.f32.mrb[0].mxu0
      %v994 = vadd.f32 0.0, %v993
      %v995 = vpop.f32.mrb[0].mxu0
      %996 = vmatprep.mubr.bf16.mxu0 0
      %997 = vmatmul.mubr.bf16.gmra.mrb[0].mxu0 %v914
      %v998 = vpop.f32.mrb[0].mxu0
      %v999 = vadd.f32 0.0, %v998
      %v1000 = vpop.f32.mrb[0].mxu0
      %v1001 = vpop.f32.mrb[0].mxu0
      %v1002 = vpop.f32.mrb[0].mxu0
      %1003 = vdwg.mxu0
      %v1006 = vunpack.c.l.b16 %v827
      %v1007 = vunpack.c.l.b16 %v828
      %v1008 = vpack.c.b16 %v1007, %v1006
      %v1010 = vsel %vm762, %v820, 0
      %v1012 = vsel %vm762, %v821, 0
      %v1014 = vsel %vm762, %v822, 0
      %v1016 = vsel %vm762, %v823, 0
      %v1018 = vsel %vm762, %v824, 0
      %v1020 = vsel %vm762, %v825, 0
      %v1023 = vsel %vm762, %v826, 0
      %1025 = vmatprep.subr.bf16.mxu0 0
      %1026 = vmatpush1.bf16.msra.mxu0 %v1008
      %1027 = vmatprep.subr.bf16.mxu0 0
      %1028 = vmatpush1.bf16.msra.mxu0 0
      %1029 = vmatprep.subr.bf16.mxu0 0
      %1030 = vmatpush1.bf16.msra.mxu0 0
      %1031 = vmatprep.subr.bf16.mxu0 0
      %1032 = vmatpush1.bf16.msra.mxu0 0
      %1033 = vmatprep.subr.bf16.mxu0 0
      %1034 = vmatpush1.bf16.msra.mxu0 0
      %1035 = vmatprep.subr.bf16.mxu0 0
      %1036 = vmatpush1.bf16.msra.mxu0 0
      %1037 = vmatprep.subr.bf16.mxu0 0
      %1038 = vmatpush1.bf16.msra.mxu0 0
      %1039 = vmatprep.subr.bf16.mxu0 0
      %1040 = vmatpush1.bf16.msra.mxu0 0
      %1041 = vmatprep.subr.bf16.mxu0 0
      %1042 = vmatpush1.bf16.msra.mxu0 0
      %1043 = vmatprep.subr.bf16.mxu0 0
      %1044 = vmatpush1.bf16.msra.mxu0 0
      %1045 = vmatprep.subr.bf16.mxu0 0
      %1046 = vmatpush1.bf16.msra.mxu0 0
      %1047 = vmatprep.subr.bf16.mxu0 0
      %1048 = vmatpush1.bf16.msra.mxu0 0
      %1049 = vmatprep.subr.bf16.mxu0 0
      %1050 = vmatpush1.bf16.msra.mxu0 0
      %1051 = vmatprep.subr.bf16.mxu0 0
      %1052 = vmatpush1.bf16.msra.mxu0 0
      %1053 = vmatprep.subr.bf16.mxu0 0
      %1054 = vmatpush1.bf16.msra.mxu0 0
      %1055 = vmatprep.subr.bf16.mxu0 0
      %1056 = vmatpush1.bf16.msra.mxu0 0
      %1057 = vmatprep.mubr.bf16.mxu0 0
      %1058 = vmatmul.mubr.bf16.gmra.mrb[0].mxu0 %v1010
      %v1059 = vpop.f32.mrb[0].mxu0
      %v1060 = vadd.f32 %v951, %v1059
      %v1061 = vpop.f32.mrb[0].mxu0
      %v1062 = vpop.f32.mrb[0].mxu0
      %v1063 = vadd.f32 %v954, %v1062
      %v1064 = vpop.f32.mrb[0].mxu0
      %1065 = vmatprep.mubr.bf16.mxu0 0
      %1066 = vmatmul.mubr.bf16.gmra.mrb[0].mxu0 %v1012
      %v1067 = vpop.f32.mrb[0].mxu0
      %v1068 = vadd.f32 %v959, %v1067
      %v1069 = vpop.f32.mrb[0].mxu0
      %v1070 = vpop.f32.mrb[0].mxu0
      %v1071 = vadd.f32 %v962, %v1070
      %v1072 = vpop.f32.mrb[0].mxu0
      %1073 = vmatprep.mubr.bf16.mxu0 0
      %1074 = vmatmul.mubr.bf16.gmra.mrb[0].mxu0 %v1014
      %v1075 = vpop.f32.mrb[0].mxu0
      %v1076 = vadd.f32 %v967, %v1075
      %v1077 = vpop.f32.mrb[0].mxu0
      %v1078 = vpop.f32.mrb[0].mxu0
      %v1079 = vadd.f32 %v970, %v1078
      %v1080 = vpop.f32.mrb[0].mxu0
      %1081 = vmatprep.mubr.bf16.mxu0 0
      %1082 = vmatmul.mubr.bf16.gmra.mrb[0].mxu0 %v1016
      %v1083 = vpop.f32.mrb[0].mxu0
      %v1084 = vadd.f32 %v975, %v1083
      %v1085 = vpop.f32.mrb[0].mxu0
      %v1086 = vpop.f32.mrb[0].mxu0
      %v1087 = vadd.f32 %v978, %v1086
      %v1088 = vpop.f32.mrb[0].mxu0
      %1089 = vmatprep.mubr.bf16.mxu0 0
      %1090 = vmatmul.mubr.bf16.gmra.mrb[0].mxu0 %v1018
      %v1091 = vpop.f32.mrb[0].mxu0
      %v1092 = vadd.f32 %v983, %v1091
      %v1093 = vpop.f32.mrb[0].mxu0
      %v1094 = vpop.f32.mrb[0].mxu0
      %v1095 = vadd.f32 %v986, %v1094
      %v1096 = vpop.f32.mrb[0].mxu0
      %1097 = vmatprep.mubr.bf16.mxu0 0
      %1098 = vmatmul.mubr.bf16.gmra.mrb[0].mxu0 %v1020
      %v1099 = vpop.f32.mrb[0].mxu0
      %v1100 = vadd.f32 %v991, %v1099
      %v1101 = vpop.f32.mrb[0].mxu0
      %v1102 = vpop.f32.mrb[0].mxu0
      %v1103 = vadd.f32 %v994, %v1102
      %v1104 = vpop.f32.mrb[0].mxu0
      %1105 = vmatprep.mubr.bf16.mxu0 0
      %1106 = vmatmul.mubr.bf16.gmra.mrb[0].mxu0 %v1023
      %v1107 = vpop.f32.mrb[0].mxu0
      %v1108 = vadd.f32 %v999, %v1107
      %v1109 = vpop.f32.mrb[0].mxu0
      %v1110 = vpop.f32.mrb[0].mxu0
      %v1111 = vpop.f32.mrb[0].mxu0
      %1112 = vdwg.mxu0
      %v1113 = vld [vmem:[#allocation2] sm:$0xfe]
      %s1114 = scalar_lea.vmem %s6, 16
      %v1115 = vld [vmem:[%s1114] sm:$0xf]
      %v1116 = vld [vmem:[%s1114 + $0x4] sm:$0xf]
      %vm1124 = vcmask 1046528
      %v1125 = vrot.slane %v1113, 1
      %v1126 = vrot.slane %v821, 1
      %v1127 = vsel %vm1124, %v1125, %v1126
      %v1128 = vrot.slane %v822, 1
      %v1129 = vsel %vm1124, %v1126, %v1128
      %v1130 = vrot.slane %v823, 1
      %v1131 = vsel %vm1124, %v1128, %v1130
      %v1132 = vrot.slane %v824, 1
      %v1133 = vsel %vm1124, %v1130, %v1132
      %v1134 = vrot.slane %v825, 1
      %v1135 = vsel %vm1124, %v1132, %v1134
      %v1136 = vrot.slane %v829, 1
      %v1137 = vsel %vm1124, %v1134, %v1136
      %v1140 = vunpack.c.l.b16 %v1115
      %v1141 = vunpack.c.l.b16 %v1116
      %v1142 = vpack.c.b16 %v1141, %v1140
      %v1145 = vsel %vm762, %v1127, 0
      %v1148 = vsel %vm762, %v1129, 0
      %v1151 = vsel %vm762, %v1131, 0
      %v1154 = vsel %vm762, %v1133, 0
      %v1157 = vsel %vm762, %v1135, 0
      %v1160 = vsel %vm762, %v1137, 0
      %v1163 = vsel %vm762, %v1136, 0
      %1165 = vmatprep.subr.bf16.mxu0 0
      %1166 = vmatpush1.bf16.msra.mxu0 %v1142
      %1167 = vmatprep.subr.bf16.mxu0 0
      %1168 = vmatpush1.bf16.msra.mxu0 0
      %1169 = vmatprep.subr.bf16.mxu0 0
      %1170 = vmatpush1.bf16.msra.mxu0 0
      %1171 = vmatprep.subr.bf16.mxu0 0
      %1172 = vmatpush1.bf16.msra.mxu0 0
      %1173 = vmatprep.subr.bf16.mxu0 0
      %1174 = vmatpush1.bf16.msra.mxu0 0
      %1175 = vmatprep.subr.bf16.mxu0 0
      %1176 = vmatpush1.bf16.msra.mxu0 0
      %1177 = vmatprep.subr.bf16.mxu0 0
      %1178 = vmatpush1.bf16.msra.mxu0 0
      %1179 = vmatprep.subr.bf16.mxu0 0
      %1180 = vmatpush1.bf16.msra.mxu0 0
      %1181 = vmatprep.subr.bf16.mxu0 0
      %1182 = vmatpush1.bf16.msra.mxu0 0
      %1183 = vmatprep.subr.bf16.mxu0 0
      %1184 = vmatpush1.bf16.msra.mxu0 0
      %1185 = vmatprep.subr.bf16.mxu0 0
      %1186 = vmatpush1.bf16.msra.mxu0 0
      %1187 = vmatprep.subr.bf16.mxu0 0
      %1188 = vmatpush1.bf16.msra.mxu0 0
      %1189 = vmatprep.subr.bf16.mxu0 0
      %1190 = vmatpush1.bf16.msra.mxu0 0
      %1191 = vmatprep.subr.bf16.mxu0 0
      %1192 = vmatpush1.bf16.msra.mxu0 0
      %1193 = vmatprep.subr.bf16.mxu0 0
      %1194 = vmatpush1.bf16.msra.mxu0 0
      %1195 = vmatprep.subr.bf16.mxu0 0
      %1196 = vmatpush1.bf16.msra.mxu0 0
      %1197 = vmatprep.mubr.bf16.mxu0 0
      %1198 = vmatmul.mubr.bf16.gmra.mrb[0].mxu0 %v1145
      %v1199 = vpop.f32.mrb[0].mxu0
      %v1200 = vadd.f32 0.0, %v1199
      %v1201 = vpop.f32.mrb[0].mxu0
      %v1202 = vpop.f32.mrb[0].mxu0
      %v1203 = vadd.f32 0.0, %v1202
      %v1204 = vpop.f32.mrb[0].mxu0
      %1205 = vmatprep.mubr.bf16.mxu0 0
      %1206 = vmatmul.mubr.bf16.gmra.mrb[0].mxu0 %v1148
      %v1207 = vpop.f32.mrb[0].mxu0
      %v1208 = vadd.f32 0.0, %v1207
      %v1209 = vpop.f32.mrb[0].mxu0
      %v1210 = vpop.f32.mrb[0].mxu0
      %v1211 = vadd.f32 0.0, %v1210
      %v1212 = vpop.f32.mrb[0].mxu0
      %1213 = vmatprep.mubr.bf16.mxu0 0
      %1214 = vmatmul.mubr.bf16.gmra.mrb[0].mxu0 %v1151
      %v1215 = vpop.f32.mrb[0].mxu0
      %v1216 = vadd.f32 0.0, %v1215
      %v1217 = vpop.f32.mrb[0].mxu0
      %v1218 = vpop.f32.mrb[0].mxu0
      %v1219 = vadd.f32 0.0, %v1218
      %v1220 = vpop.f32.mrb[0].mxu0
      %1221 = vmatprep.mubr.bf16.mxu0 0
      %1222 = vmatmul.mubr.bf16.gmra.mrb[0].mxu0 %v1154
      %v1223 = vpop.f32.mrb[0].mxu0
      %v1224 = vadd.f32 0.0, %v1223
      %v1225 = vpop.f32.mrb[0].mxu0
      %v1226 = vpop.f32.mrb[0].mxu0
      %v1227 = vadd.f32 0.0, %v1226
      %v1228 = vpop.f32.mrb[0].mxu0
      %1229 = vmatprep.mubr.bf16.mxu0 0
      %1230 = vmatmul.mubr.bf16.gmra.mrb[0].mxu0 %v1157
      %v1231 = vpop.f32.mrb[0].mxu0
      %v1232 = vadd.f32 0.0, %v1231
      %v1233 = vpop.f32.mrb[0].mxu0
      %v1234 = vpop.f32.mrb[0].mxu0
      %v1235 = vadd.f32 0.0, %v1234
      %v1236 = vpop.f32.mrb[0].mxu0
      %1237 = vmatprep.mubr.bf16.mxu0 0
      %1238 = vmatmul.mubr.bf16.gmra.mrb[0].mxu0 %v1160
      %v1239 = vpop.f32.mrb[0].mxu0
      %v1240 = vadd.f32 0.0, %v1239
      %v1241 = vpop.f32.mrb[0].mxu0
      %v1242 = vpop.f32.mrb[0].mxu0
      %v1243 = vadd.f32 0.0, %v1242
      %v1244 = vpop.f32.mrb[0].mxu0
      %1245 = vmatprep.mubr.bf16.mxu0 0
      %1246 = vmatmul.mubr.bf16.gmra.mrb[0].mxu0 %v1163
      %v1247 = vpop.f32.mrb[0].mxu0
      %v1248 = vadd.f32 0.0, %v1247
      %v1249 = vpop.f32.mrb[0].mxu0
      %v1250 = vpop.f32.mrb[0].mxu0
      %v1251 = vpop.f32.mrb[0].mxu0
      %1252 = vdwg.mxu0
      %v1253 = vadd.f32 %v1060, %v1200
      %v1254 = vadd.f32 %v1063, %v1203
      %v1255 = vadd.f32 %v1068, %v1208
      %v1256 = vadd.f32 %v1071, %v1211
      %v1257 = vadd.f32 %v1076, %v1216
      %v1258 = vadd.f32 %v1079, %v1219
      %v1259 = vadd.f32 %v1084, %v1224
      %v1260 = vadd.f32 %v1087, %v1227
      %v1261 = vadd.f32 %v1092, %v1232
      %v1262 = vadd.f32 %v1095, %v1235
      %v1263 = vadd.f32 %v1100, %v1240
      %v1264 = vadd.f32 %v1103, %v1243
      %v1265 = vadd.f32 %v1108, %v1248
      %v1266 = vld [vmem:[#allocation2] sm:$0xe0]
      %v1267 = vld [vmem:[#allocation2 + $0x8] sm:$0xff]
      %v1268 = vld [vmem:[#allocation2 + $0x10] sm:$0xff]
      %v1269 = vld [vmem:[#allocation2 + $0x18] sm:$0xff]
      %v1270 = vld [vmem:[#allocation2 + $0x20] sm:$0xff]
      %v1271 = vld [vmem:[#allocation2 + $0x28] sm:$0xff]
      %v1272 = vld [vmem:[#allocation2 + $0x30] sm:$0xff]
      %v1273 = vld [vmem:[#allocation2 + $0x38] sm:$0x1]
      %s1274 = scalar_lea.vmem %s6, 24
      %v1275 = vld [vmem:[%s1274] sm:$0xf]
      %v1276 = vld [vmem:[%s1274 + $0x4] sm:$0xf]
      %vm1285 = vcmask 1042432
      %v1286 = vrot.slane %v1266, 5
      %v1287 = vrot.slane %v1267, 5
      %v1288 = vsel %vm1285, %v1286, %v1287
      %v1289 = vrot.slane %v1268, 5
      %v1290 = vsel %vm1285, %v1287, %v1289
      %v1291 = vrot.slane %v1269, 5
      %v1292 = vsel %vm1285, %v1289, %v1291
      %v1293 = vrot.slane %v1270, 5
      %v1294 = vsel %vm1285, %v1291, %v1293
      %v1295 = vrot.slane %v1271, 5
      %v1296 = vsel %vm1285, %v1293, %v1295
      %v1297 = vrot.slane %v1272, 5
      %v1298 = vsel %vm1285, %v1295, %v1297
      %v1299 = vrot.slane %v1273, 5
      %v1300 = vsel %vm1285, %v1297, %v1299
      %v1303 = vunpack.c.l.b16 %v1275
      %v1304 = vunpack.c.l.b16 %v1276
      %v1305 = vpack.c.b16 %v1304, %v1303
      %v1308 = vsel %vm762, %v1288, 0
      %v1311 = vsel %vm762, %v1290, 0
      %v1314 = vsel %vm762, %v1292, 0
      %v1317 = vsel %vm762, %v1294, 0
      %v1320 = vsel %vm762, %v1296, 0
      %v1323 = vsel %vm762, %v1298, 0
      %v1326 = vsel %vm762, %v1300, 0
      %1328 = vmatprep.subr.bf16.mxu0 0
      %1329 = vmatpush1.bf16.msra.mxu0 %v1305
      %1330 = vmatprep.subr.bf16.mxu0 0
      %1331 = vmatpush1.bf16.msra.mxu0 0
      %1332 = vmatprep.subr.bf16.mxu0 0
      %1333 = vmatpush1.bf16.msra.mxu0 0
      %1334 = vmatprep.subr.bf16.mxu0 0
      %1335 = vmatpush1.bf16.msra.mxu0 0
      %1336 = vmatprep.subr.bf16.mxu0 0
      %1337 = vmatpush1.bf16.msra.mxu0 0
      %1338 = vmatprep.subr.bf16.mxu0 0
      %1339 = vmatpush1.bf16.msra.mxu0 0
      %1340 = vmatprep.subr.bf16.mxu0 0
      %1341 = vmatpush1.bf16.msra.mxu0 0
      %1342 = vmatprep.subr.bf16.mxu0 0
      %1343 = vmatpush1.bf16.msra.mxu0 0
      %1344 = vmatprep.subr.bf16.mxu0 0
      %1345 = vmatpush1.bf16.msra.mxu0 0
      %1346 = vmatprep.subr.bf16.mxu0 0
      %1347 = vmatpush1.bf16.msra.mxu0 0
      %1348 = vmatprep.subr.bf16.mxu0 0
      %1349 = vmatpush1.bf16.msra.mxu0 0
      %1350 = vmatprep.subr.bf16.mxu0 0
      %1351 = vmatpush1.bf16.msra.mxu0 0
      %1352 = vmatprep.subr.bf16.mxu0 0
      %1353 = vmatpush1.bf16.msra.mxu0 0
      %1354 = vmatprep.subr.bf16.mxu0 0
      %1355 = vmatpush1.bf16.msra.mxu0 0
      %1356 = vmatprep.subr.bf16.mxu0 0
      %1357 = vmatpush1.bf16.msra.mxu0 0
      %1358 = vmatprep.subr.bf16.mxu0 0
      %1359 = vmatpush1.bf16.msra.mxu0 0
      %1360 = vmatprep.mubr.bf16.mxu0 0
      %1361 = vmatmul.mubr.bf16.gmra.mrb[0].mxu0 %v1308
      %v1362 = vpop.f32.mrb[0].mxu0
      %v1363 = vadd.f32 0.0, %v1362
      %v1364 = vpop.f32.mrb[0].mxu0
      %v1365 = vpop.f32.mrb[0].mxu0
      %v1366 = vadd.f32 0.0, %v1365
      %v1367 = vpop.f32.mrb[0].mxu0
      %1368 = vmatprep.mubr.bf16.mxu0 0
      %1369 = vmatmul.mubr.bf16.gmra.mrb[0].mxu0 %v1311
      %v1370 = vpop.f32.mrb[0].mxu0
      %v1371 = vadd.f32 0.0, %v1370
      %v1372 = vpop.f32.mrb[0].mxu0
      %v1373 = vpop.f32.mrb[0].mxu0
      %v1374 = vadd.f32 0.0, %v1373
      %v1375 = vpop.f32.mrb[0].mxu0
      %1376 = vmatprep.mubr.bf16.mxu0 0
      %1377 = vmatmul.mubr.bf16.gmra.mrb[0].mxu0 %v1314
      %v1378 = vpop.f32.mrb[0].mxu0
      %v1379 = vadd.f32 0.0, %v1378
      %v1380 = vpop.f32.mrb[0].mxu0
      %v1381 = vpop.f32.mrb[0].mxu0
      %v1382 = vadd.f32 0.0, %v1381
      %v1383 = vpop.f32.mrb[0].mxu0
      %1384 = vmatprep.mubr.bf16.mxu0 0
      %1385 = vmatmul.mubr.bf16.gmra.mrb[0].mxu0 %v1317
      %v1386 = vpop.f32.mrb[0].mxu0
      %v1387 = vadd.f32 0.0, %v1386
      %v1388 = vpop.f32.mrb[0].mxu0
      %v1389 = vpop.f32.mrb[0].mxu0
      %v1390 = vadd.f32 0.0, %v1389
      %v1391 = vpop.f32.mrb[0].mxu0
      %1392 = vmatprep.mubr.bf16.mxu0 0
      %1393 = vmatmul.mubr.bf16.gmra.mrb[0].mxu0 %v1320
      %v1394 = vpop.f32.mrb[0].mxu0
      %v1395 = vadd.f32 0.0, %v1394
      %v1396 = vpop.f32.mrb[0].mxu0
      %v1397 = vpop.f32.mrb[0].mxu0
      %v1398 = vadd.f32 0.0, %v1397
      %v1399 = vpop.f32.mrb[0].mxu0
      %1400 = vmatprep.mubr.bf16.mxu0 0
      %1401 = vmatmul.mubr.bf16.gmra.mrb[0].mxu0 %v1323
      %v1402 = vpop.f32.mrb[0].mxu0
      %v1403 = vadd.f32 0.0, %v1402
      %v1404 = vpop.f32.mrb[0].mxu0
      %v1405 = vpop.f32.mrb[0].mxu0
      %v1406 = vadd.f32 0.0, %v1405
      %v1407 = vpop.f32.mrb[0].mxu0
      %1408 = vmatprep.mubr.bf16.mxu0 0
      %1409 = vmatmul.mubr.bf16.gmra.mrb[0].mxu0 %v1326
      %v1410 = vpop.f32.mrb[0].mxu0
      %v1411 = vadd.f32 0.0, %v1410
      %v1412 = vpop.f32.mrb[0].mxu0
      %v1413 = vpop.f32.mrb[0].mxu0
      %v1414 = vpop.f32.mrb[0].mxu0
      %1415 = vdwg.mxu0
      %v1416 = vadd.f32 %v1253, %v1363
      %v1417 = vadd.f32 %v1254, %v1366
      %v1418 = vadd.f32 %v1255, %v1371
      %v1419 = vadd.f32 %v1256, %v1374
      %v1420 = vadd.f32 %v1257, %v1379
      %v1421 = vadd.f32 %v1258, %v1382
      %v1422 = vadd.f32 %v1259, %v1387
      %v1423 = vadd.f32 %v1260, %v1390
      %v1424 = vadd.f32 %v1261, %v1395
      %v1425 = vadd.f32 %v1262, %v1398
      %v1426 = vadd.f32 %v1263, %v1403
      %v1427 = vadd.f32 %v1264, %v1406
      %v1428 = vadd.f32 %v1265, %v1411
      %v1429 = vld [vmem:[#allocation2 + $0x38] sm:$0x3]
      %s1430 = scalar_lea.vmem %s6, 32
      %v1431 = vld [vmem:[%s1430] sm:$0xf]
      %v1432 = vld [vmem:[%s1430 + $0x4] sm:$0xf]
      %vm1433 = vsmask.f32 2304
      %v1435 = vshrl.u32 %v1266, 16
      %v1437 = vrot.slane %v1435, 5
      %v1438 = vshll.u32 %v1266, 16
      %v1440 = vrot.slane %v1438, 6
      %v1441 = vor.u32 %v1437, %v1440
      %v1443 = vshrl.u32 %v1267, 16
      %v1445 = vrot.slane %v1443, 5
      %v1446 = vshll.u32 %v1267, 16
      %v1448 = vrot.slane %v1446, 6
      %v1449 = vor.u32 %v1445, %v1448
      %v1450 = vsel %vm1433, %v1441, %v1449
      %v1452 = vshrl.u32 %v1268, 16
      %v1454 = vrot.slane %v1452, 5
      %v1455 = vshll.u32 %v1268, 16
      %v1457 = vrot.slane %v1455, 6
      %v1458 = vor.u32 %v1454, %v1457
      %v1459 = vsel %vm1433, %v1449, %v1458
      %v1461 = vshrl.u32 %v1269, 16
      %v1463 = vrot.slane %v1461, 5
      %v1464 = vshll.u32 %v1269, 16
      %v1466 = vrot.slane %v1464, 6
      %v1467 = vor.u32 %v1463, %v1466
      %v1468 = vsel %vm1433, %v1458, %v1467
      %v1470 = vshrl.u32 %v1270, 16
      %v1472 = vrot.slane %v1470, 5
      %v1473 = vshll.u32 %v1270, 16
      %v1475 = vrot.slane %v1473, 6
      %v1476 = vor.u32 %v1472, %v1475
      %v1477 = vsel %vm1433, %v1467, %v1476
      %v1479 = vshrl.u32 %v1271, 16
      %v1481 = vrot.slane %v1479, 5
      %v1482 = vshll.u32 %v1271, 16
      %v1484 = vrot.slane %v1482, 6
      %v1485 = vor.u32 %v1481, %v1484
      %v1486 = vsel %vm1433, %v1476, %v1485
      %v1488 = vshrl.u32 %v1272, 16
      %v1490 = vrot.slane %v1488, 5
      %v1491 = vshll.u32 %v1272, 16
      %v1493 = vrot.slane %v1491, 6
      %v1494 = vor.u32 %v1490, %v1493
      %v1495 = vsel %vm1433, %v1485, %v1494
      %v1497 = vshrl.u32 %v1429, 16
      %v1499 = vrot.slane %v1497, 5
      %v1500 = vshll.u32 %v1429, 16
      %v1502 = vrot.slane %v1500, 6
      %v1503 = vor.u32 %v1499, %v1502
      %v1504 = vsel %vm1433, %v1494, %v1503
      %v1507 = vunpack.c.l.b16 %v1431
      %v1508 = vunpack.c.l.b16 %v1432
      %v1509 = vpack.c.b16 %v1508, %v1507
      %v1512 = vsel %vm762, %v1450, 0
      %v1515 = vsel %vm762, %v1459, 0
      %v1518 = vsel %vm762, %v1468, 0
      %v1521 = vsel %vm762, %v1477, 0
      %v1524 = vsel %vm762, %v1486, 0
      %v1527 = vsel %vm762, %v1495, 0
      %v1530 = vsel %vm762, %v1504, 0
      %1532 = vmatprep.subr.bf16.mxu0 0
      %1533 = vmatpush1.bf16.msra.mxu0 %v1509
      %1534 = vmatprep.subr.bf16.mxu0 0
      %1535 = vmatpush1.bf16.msra.mxu0 0
      %1536 = vmatprep.subr.bf16.mxu0 0
      %1537 = vmatpush1.bf16.msra.mxu0 0
      %1538 = vmatprep.subr.bf16.mxu0 0
      %1539 = vmatpush1.bf16.msra.mxu0 0
      %1540 = vmatprep.subr.bf16.mxu0 0
      %1541 = vmatpush1.bf16.msra.mxu0 0
      %1542 = vmatprep.subr.bf16.mxu0 0
      %1543 = vmatpush1.bf16.msra.mxu0 0
      %1544 = vmatprep.subr.bf16.mxu0 0
      %1545 = vmatpush1.bf16.msra.mxu0 0
      %1546 = vmatprep.subr.bf16.mxu0 0
      %1547 = vmatpush1.bf16.msra.mxu0 0
      %1548 = vmatprep.subr.bf16.mxu0 0
      %1549 = vmatpush1.bf16.msra.mxu0 0
      %1550 = vmatprep.subr.bf16.mxu0 0
      %1551 = vmatpush1.bf16.msra.mxu0 0
      %1552 = vmatprep.subr.bf16.mxu0 0
      %1553 = vmatpush1.bf16.msra.mxu0 0
      %1554 = vmatprep.subr.bf16.mxu0 0
      %1555 = vmatpush1.bf16.msra.mxu0 0
      %1556 = vmatprep.subr.bf16.mxu0 0
      %1557 = vmatpush1.bf16.msra.mxu0 0
      %1558 = vmatprep.subr.bf16.mxu0 0
      %1559 = vmatpush1.bf16.msra.mxu0 0
      %1560 = vmatprep.subr.bf16.mxu0 0
      %1561 = vmatpush1.bf16.msra.mxu0 0
      %1562 = vmatprep.subr.bf16.mxu0 0
      %1563 = vmatpush1.bf16.msra.mxu0 0
      %1564 = vmatprep.mubr.bf16.mxu0 0
      %1565 = vmatmul.mubr.bf16.gmra.mrb[0].mxu0 %v1512
      %v1566 = vpop.f32.mrb[0].mxu0
      %v1567 = vadd.f32 0.0, %v1566
      %v1568 = vpop.f32.mrb[0].mxu0
      %v1569 = vpop.f32.mrb[0].mxu0
      %v1570 = vadd.f32 0.0, %v1569
      %v1571 = vpop.f32.mrb[0].mxu0
      %1572 = vmatprep.mubr.bf16.mxu0 0
      %1573 = vmatmul.mubr.bf16.gmra.mrb[0].mxu0 %v1515
      %v1574 = vpop.f32.mrb[0].mxu0
      %v1575 = vadd.f32 0.0, %v1574
      %v1576 = vpop.f32.mrb[0].mxu0
      %v1577 = vpop.f32.mrb[0].mxu0
      %v1578 = vadd.f32 0.0, %v1577
      %v1579 = vpop.f32.mrb[0].mxu0
      %1580 = vmatprep.mubr.bf16.mxu0 0
      %1581 = vmatmul.mubr.bf16.gmra.mrb[0].mxu0 %v1518
      %v1582 = vpop.f32.mrb[0].mxu0
      %v1583 = vadd.f32 0.0, %v1582
      %v1584 = vpop.f32.mrb[0].mxu0
      %v1585 = vpop.f32.mrb[0].mxu0
      %v1586 = vadd.f32 0.0, %v1585
      %v1587 = vpop.f32.mrb[0].mxu0
      %1588 = vmatprep.mubr.bf16.mxu0 0
      %1589 = vmatmul.mubr.bf16.gmra.mrb[0].mxu0 %v1521
      %v1590 = vpop.f32.mrb[0].mxu0
      %v1591 = vadd.f32 0.0, %v1590
      %v1592 = vpop.f32.mrb[0].mxu0
      %v1593 = vpop.f32.mrb[0].mxu0
      %v1594 = vadd.f32 0.0, %v1593
      %v1595 = vpop.f32.mrb[0].mxu0
      %1596 = vmatprep.mubr.bf16.mxu0 0
      %1597 = vmatmul.mubr.bf16.gmra.mrb[0].mxu0 %v1524
      %v1598 = vpop.f32.mrb[0].mxu0
      %v1599 = vadd.f32 0.0, %v1598
      %v1600 = vpop.f32.mrb[0].mxu0
      %v1601 = vpop.f32.mrb[0].mxu0
      %v1602 = vadd.f32 0.0, %v1601
      %v1603 = vpop.f32.mrb[0].mxu0
      %1604 = vmatprep.mubr.bf16.mxu0 0
      %1605 = vmatmul.mubr.bf16.gmra.mrb[0].mxu0 %v1527
      %v1606 = vpop.f32.mrb[0].mxu0
      %v1607 = vadd.f32 0.0, %v1606
      %v1608 = vpop.f32.mrb[0].mxu0
      %v1609 = vpop.f32.mrb[0].mxu0
      %v1610 = vadd.f32 0.0, %v1609
      %v1611 = vpop.f32.mrb[0].mxu0
      %1612 = vmatprep.mubr.bf16.mxu0 0
      %1613 = vmatmul.mubr.bf16.gmra.mrb[0].mxu0 %v1530
      %v1614 = vpop.f32.mrb[0].mxu0
      %v1615 = vadd.f32 0.0, %v1614
      %v1616 = vpop.f32.mrb[0].mxu0
      %v1617 = vpop.f32.mrb[0].mxu0
      %v1618 = vpop.f32.mrb[0].mxu0
      %1619 = vdwg.mxu0
      %v1620 = vadd.f32 %v1416, %v1567
      %v1621 = vadd.f32 %v1417, %v1570
      %v1622 = vadd.f32 %v1418, %v1575
      %v1623 = vadd.f32 %v1419, %v1578
      %v1624 = vadd.f32 %v1420, %v1583
      %v1625 = vadd.f32 %v1421, %v1586
      %v1626 = vadd.f32 %v1422, %v1591
      %v1627 = vadd.f32 %v1423, %v1594
      %v1628 = vadd.f32 %v1424, %v1599
      %v1629 = vadd.f32 %v1425, %v1602
      %v1630 = vadd.f32 %v1426, %v1607
      %v1631 = vadd.f32 %v1427, %v1610
      %v1632 = vadd.f32 %v1428, %v1615
      %v1633 = vld [vmem:[#allocation2] sm:$0xc0]
      %s1634 = scalar_lea.vmem %s6, 40
      %v1635 = vld [vmem:[%s1634] sm:$0xf]
      %v1636 = vld [vmem:[%s1634 + $0x4] sm:$0xf]
      %vm1639 = vcmask 1041408
      %v1640 = vrot.slane %v1633, 6
      %v1641 = vrot.slane %v1267, 6
      %v1642 = vsel %vm1639, %v1640, %v1641
      %v1643 = vrot.slane %v1268, 6
      %v1644 = vsel %vm1639, %v1641, %v1643
      %v1645 = vrot.slane %v1269, 6
      %v1646 = vsel %vm1639, %v1643, %v1645
      %v1647 = vrot.slane %v1270, 6
      %v1648 = vsel %vm1639, %v1645, %v1647
      %v1649 = vrot.slane %v1271, 6
      %v1650 = vsel %vm1639, %v1647, %v1649
      %v1651 = vrot.slane %v1272, 6
      %v1652 = vsel %vm1639, %v1649, %v1651
      %v1653 = vrot.slane %v1429, 6
      %v1654 = vsel %vm1639, %v1651, %v1653
      %v1657 = vunpack.c.l.b16 %v1635
      %v1658 = vunpack.c.l.b16 %v1636
      %v1659 = vpack.c.b16 %v1658, %v1657
      %v1662 = vsel %vm762, %v1642, 0
      %v1665 = vsel %vm762, %v1644, 0
      %v1668 = vsel %vm762, %v1646, 0
      %v1671 = vsel %vm762, %v1648, 0
      %v1674 = vsel %vm762, %v1650, 0
      %v1677 = vsel %vm762, %v1652, 0
      %v1680 = vsel %vm762, %v1654, 0
      %1682 = vmatprep.subr.bf16.mxu0 0
      %1683 = vmatpush1.bf16.msra.mxu0 %v1659
      %1684 = vmatprep.subr.bf16.mxu0 0
      %1685 = vmatpush1.bf16.msra.mxu0 0
      %1686 = vmatprep.subr.bf16.mxu0 0
      %1687 = vmatpush1.bf16.msra.mxu0 0
      %1688 = vmatprep.subr.bf16.mxu0 0
      %1689 = vmatpush1.bf16.msra.mxu0 0
      %1690 = vmatprep.subr.bf16.mxu0 0
      %1691 = vmatpush1.bf16.msra.mxu0 0
      %1692 = vmatprep.subr.bf16.mxu0 0
      %1693 = vmatpush1.bf16.msra.mxu0 0
      %1694 = vmatprep.subr.bf16.mxu0 0
      %1695 = vmatpush1.bf16.msra.mxu0 0
      %1696 = vmatprep.subr.bf16.mxu0 0
      %1697 = vmatpush1.bf16.msra.mxu0 0
      %1698 = vmatprep.subr.bf16.mxu0 0
      %1699 = vmatpush1.bf16.msra.mxu0 0
      %1700 = vmatprep.subr.bf16.mxu0 0
      %1701 = vmatpush1.bf16.msra.mxu0 0
      %1702 = vmatprep.subr.bf16.mxu0 0
      %1703 = vmatpush1.bf16.msra.mxu0 0
      %1704 = vmatprep.subr.bf16.mxu0 0
      %1705 = vmatpush1.bf16.msra.mxu0 0
      %1706 = vmatprep.subr.bf16.mxu0 0
      %1707 = vmatpush1.bf16.msra.mxu0 0
      %1708 = vmatprep.subr.bf16.mxu0 0
      %1709 = vmatpush1.bf16.msra.mxu0 0
      %1710 = vmatprep.subr.bf16.mxu0 0
      %1711 = vmatpush1.bf16.msra.mxu0 0
      %1712 = vmatprep.subr.bf16.mxu0 0
      %1713 = vmatpush1.bf16.msra.mxu0 0
      %1714 = vmatprep.mubr.bf16.mxu0 0
      %1715 = vmatmul.mubr.bf16.gmra.mrb[0].mxu0 %v1662
      %v1716 = vpop.f32.mrb[0].mxu0
      %v1717 = vadd.f32 0.0, %v1716
      %v1718 = vpop.f32.mrb[0].mxu0
      %v1719 = vpop.f32.mrb[0].mxu0
      %v1720 = vadd.f32 0.0, %v1719
      %v1721 = vpop.f32.mrb[0].mxu0
      %1722 = vmatprep.mubr.bf16.mxu0 0
      %1723 = vmatmul.mubr.bf16.gmra.mrb[0].mxu0 %v1665
      %v1724 = vpop.f32.mrb[0].mxu0
      %v1725 = vadd.f32 0.0, %v1724
      %v1726 = vpop.f32.mrb[0].mxu0
      %v1727 = vpop.f32.mrb[0].mxu0
      %v1728 = vadd.f32 0.0, %v1727
      %v1729 = vpop.f32.mrb[0].mxu0
      %1730 = vmatprep.mubr.bf16.mxu0 0
      %1731 = vmatmul.mubr.bf16.gmra.mrb[0].mxu0 %v1668
      %v1732 = vpop.f32.mrb[0].mxu0
      %v1733 = vadd.f32 0.0, %v1732
      %v1734 = vpop.f32.mrb[0].mxu0
      %v1735 = vpop.f32.mrb[0].mxu0
      %v1736 = vadd.f32 0.0, %v1735
      %v1737 = vpop.f32.mrb[0].mxu0
      %1738 = vmatprep.mubr.bf16.mxu0 0
      %1739 = vmatmul.mubr.bf16.gmra.mrb[0].mxu0 %v1671
      %v1740 = vpop.f32.mrb[0].mxu0
      %v1741 = vadd.f32 0.0, %v1740
      %v1742 = vpop.f32.mrb[0].mxu0
      %v1743 = vpop.f32.mrb[0].mxu0
      %v1744 = vadd.f32 0.0, %v1743
      %v1745 = vpop.f32.mrb[0].mxu0
      %1746 = vmatprep.mubr.bf16.mxu0 0
      %1747 = vmatmul.mubr.bf16.gmra.mrb[0].mxu0 %v1674
      %v1748 = vpop.f32.mrb[0].mxu0
      %v1749 = vadd.f32 0.0, %v1748
      %v1750 = vpop.f32.mrb[0].mxu0
      %v1751 = vpop.f32.mrb[0].mxu0
      %v1752 = vadd.f32 0.0, %v1751
      %v1753 = vpop.f32.mrb[0].mxu0
      %1754 = vmatprep.mubr.bf16.mxu0 0
      %1755 = vmatmul.mubr.bf16.gmra.mrb[0].mxu0 %v1677
      %v1756 = vpop.f32.mrb[0].mxu0
      %v1757 = vadd.f32 0.0, %v1756
      %v1758 = vpop.f32.mrb[0].mxu0
      %v1759 = vpop.f32.mrb[0].mxu0
      %v1760 = vadd.f32 0.0, %v1759
      %v1761 = vpop.f32.mrb[0].mxu0
      %1762 = vmatprep.mubr.bf16.mxu0 0
      %1763 = vmatmul.mubr.bf16.gmra.mrb[0].mxu0 %v1680
      %v1764 = vpop.f32.mrb[0].mxu0
      %v1765 = vadd.f32 0.0, %v1764
      %v1766 = vpop.f32.mrb[0].mxu0
      %v1767 = vpop.f32.mrb[0].mxu0
      %v1768 = vpop.f32.mrb[0].mxu0
      %1769 = vdwg.mxu0
      %v1770 = vadd.f32 %v1620, %v1717
      %v1771 = vadd.f32 %v1621, %v1720
      %v1772 = vadd.f32 %v1622, %v1725
      %v1773 = vadd.f32 %v1623, %v1728
      %v1774 = vadd.f32 %v1624, %v1733
      %v1775 = vadd.f32 %v1625, %v1736
      %v1776 = vadd.f32 %v1626, %v1741
      %v1777 = vadd.f32 %v1627, %v1744
      %v1778 = vadd.f32 %v1628, %v1749
      %v1779 = vadd.f32 %v1629, %v1752
      %v1780 = vadd.f32 %v1630, %v1757
      %v1781 = vadd.f32 %v1631, %v1760
      %v1782 = vadd.f32 %v1632, %v1765
      %v1783 = vld [vmem:[#allocation2 + $0x8] sm:$0xfc]
      %v1784 = vld [vmem:[#allocation2 + $0x38] sm:$0x3f]
      %s1785 = scalar_lea.vmem %s6, 48
      %v1786 = vld [vmem:[%s1785] sm:$0xf]
      %v1787 = vld [vmem:[%s1785 + $0x4] sm:$0xf]
      %vm1790 = vcmask 1045504
      %v1791 = vrot.slane %v1783, 2
      %v1792 = vrot.slane %v1268, 2
      %v1793 = vsel %vm1790, %v1791, %v1792
      %v1794 = vrot.slane %v1269, 2
      %v1795 = vsel %vm1790, %v1792, %v1794
      %v1796 = vrot.slane %v1270, 2
      %v1797 = vsel %vm1790, %v1794, %v1796
      %v1798 = vrot.slane %v1271, 2
      %v1799 = vsel %vm1790, %v1796, %v1798
      %v1800 = vrot.slane %v1272, 2
      %v1801 = vsel %vm1790, %v1798, %v1800
      %v1802 = vrot.slane %v1784, 2
      %v1803 = vsel %vm1790, %v1800, %v1802
      %v1806 = vunpack.c.l.b16 %v1786
      %v1807 = vunpack.c.l.b16 %v1787
      %v1808 = vpack.c.b16 %v1807, %v1806
      %v1811 = vsel %vm762, %v1793, 0
      %v1814 = vsel %vm762, %v1795, 0
      %v1817 = vsel %vm762, %v1797, 0
      %v1820 = vsel %vm762, %v1799, 0
      %v1823 = vsel %vm762, %v1801, 0
      %v1826 = vsel %vm762, %v1803, 0
      %v1829 = vsel %vm762, %v1802, 0
      %1831 = vmatprep.subr.bf16.mxu0 0
      %1832 = vmatpush1.bf16.msra.mxu0 %v1808
      %1833 = vmatprep.subr.bf16.mxu0 0
      %1834 = vmatpush1.bf16.msra.mxu0 0
      %1835 = vmatprep.subr.bf16.mxu0 0
      %1836 = vmatpush1.bf16.msra.mxu0 0
      %1837 = vmatprep.subr.bf16.mxu0 0
      %1838 = vmatpush1.bf16.msra.mxu0 0
      %1839 = vmatprep.subr.bf16.mxu0 0
      %1840 = vmatpush1.bf16.msra.mxu0 0
      %1841 = vmatprep.subr.bf16.mxu0 0
      %1842 = vmatpush1.bf16.msra.mxu0 0
      %1843 = vmatprep.subr.bf16.mxu0 0
      %1844 = vmatpush1.bf16.msra.mxu0 0
      %1845 = vmatprep.subr.bf16.mxu0 0
      %1846 = vmatpush1.bf16.msra.mxu0 0
      %1847 = vmatprep.subr.bf16.mxu0 0
      %1848 = vmatpush1.bf16.msra.mxu0 0
      %1849 = vmatprep.subr.bf16.mxu0 0
      %1850 = vmatpush1.bf16.msra.mxu0 0
      %1851 = vmatprep.subr.bf16.mxu0 0
      %1852 = vmatpush1.bf16.msra.mxu0 0
      %1853 = vmatprep.subr.bf16.mxu0 0
      %1854 = vmatpush1.bf16.msra.mxu0 0
      %1855 = vmatprep.subr.bf16.mxu0 0
      %1856 = vmatpush1.bf16.msra.mxu0 0
      %1857 = vmatprep.subr.bf16.mxu0 0
      %1858 = vmatpush1.bf16.msra.mxu0 0
      %1859 = vmatprep.subr.bf16.mxu0 0
      %1860 = vmatpush1.bf16.msra.mxu0 0
      %1861 = vmatprep.subr.bf16.mxu0 0
      %1862 = vmatpush1.bf16.msra.mxu0 0
      %1863 = vmatprep.mubr.bf16.mxu0 0
      %1864 = vmatmul.mubr.bf16.gmra.mrb[0].mxu0 %v1811
      %v1865 = vpop.f32.mrb[0].mxu0
      %v1866 = vadd.f32 0.0, %v1865
      %v1867 = vpop.f32.mrb[0].mxu0
      %v1868 = vpop.f32.mrb[0].mxu0
      %v1869 = vadd.f32 0.0, %v1868
      %v1870 = vpop.f32.mrb[0].mxu0
      %1871 = vmatprep.mubr.bf16.mxu0 0
      %1872 = vmatmul.mubr.bf16.gmra.mrb[0].mxu0 %v1814
      %v1873 = vpop.f32.mrb[0].mxu0
      %v1874 = vadd.f32 0.0, %v1873
      %v1875 = vpop.f32.mrb[0].mxu0
      %v1876 = vpop.f32.mrb[0].mxu0
      %v1877 = vadd.f32 0.0, %v1876
      %v1878 = vpop.f32.mrb[0].mxu0
      %1879 = vmatprep.mubr.bf16.mxu0 0
      %1880 = vmatmul.mubr.bf16.gmra.mrb[0].mxu0 %v1817
      %v1881 = vpop.f32.mrb[0].mxu0
      %v1882 = vadd.f32 0.0, %v1881
      %v1883 = vpop.f32.mrb[0].mxu0
      %v1884 = vpop.f32.mrb[0].mxu0
      %v1885 = vadd.f32 0.0, %v1884
      %v1886 = vpop.f32.mrb[0].mxu0
      %1887 = vmatprep.mubr.bf16.mxu0 0
      %1888 = vmatmul.mubr.bf16.gmra.mrb[0].mxu0 %v1820
      %v1889 = vpop.f32.mrb[0].mxu0
      %v1890 = vadd.f32 0.0, %v1889
      %v1891 = vpop.f32.mrb[0].mxu0
      %v1892 = vpop.f32.mrb[0].mxu0
      %v1893 = vadd.f32 0.0, %v1892
      %v1894 = vpop.f32.mrb[0].mxu0
      %1895 = vmatprep.mubr.bf16.mxu0 0
      %1896 = vmatmul.mubr.bf16.gmra.mrb[0].mxu0 %v1823
      %v1897 = vpop.f32.mrb[0].mxu0
      %v1898 = vadd.f32 0.0, %v1897
      %v1899 = vpop.f32.mrb[0].mxu0
      %v1900 = vpop.f32.mrb[0].mxu0
      %v1901 = vadd.f32 0.0, %v1900
      %v1902 = vpop.f32.mrb[0].mxu0
      %1903 = vmatprep.mubr.bf16.mxu0 0
      %1904 = vmatmul.mubr.bf16.gmra.mrb[0].mxu0 %v1826
      %v1905 = vpop.f32.mrb[0].mxu0
      %v1906 = vadd.f32 0.0, %v1905
      %v1907 = vpop.f32.mrb[0].mxu0
      %v1908 = vpop.f32.mrb[0].mxu0
      %v1909 = vadd.f32 0.0, %v1908
      %v1910 = vpop.f32.mrb[0].mxu0
      %1911 = vmatprep.mubr.bf16.mxu0 0
      %1912 = vmatmul.mubr.bf16.gmra.mrb[0].mxu0 %v1829
      %v1913 = vpop.f32.mrb[0].mxu0
      %v1914 = vadd.f32 0.0, %v1913
      %v1915 = vpop.f32.mrb[0].mxu0
      %v1916 = vpop.f32.mrb[0].mxu0
      %v1917 = vpop.f32.mrb[0].mxu0
      %1918 = vdwg.mxu0
      %v1919 = vadd.f32 %v1770, %v1866
      %v1920 = vadd.f32 %v1771, %v1869
      %v1921 = vadd.f32 %v1772, %v1874
      %v1922 = vadd.f32 %v1773, %v1877
      %v1923 = vadd.f32 %v1774, %v1882
      %v1924 = vadd.f32 %v1775, %v1885
      %v1925 = vadd.f32 %v1776, %v1890
      %v1926 = vadd.f32 %v1777, %v1893
      %v1927 = vadd.f32 %v1778, %v1898
      %v1928 = vadd.f32 %v1779, %v1901
      %v1929 = vadd.f32 %v1780, %v1906
      %v1930 = vadd.f32 %v1781, %v1909
      %v1931 = vadd.f32 %v1782, %v1914
      %v1932 = vld [vmem:[#allocation2 + $0x38] sm:$0x7f]
      %s1933 = scalar_lea.vmem %s6, 56
      %v1934 = vld [vmem:[%s1933] sm:$0xf]
      %v1935 = vld [vmem:[%s1933 + $0x4] sm:$0xf]
      %vm1936 = vsmask.f32 5376
      %v1938 = vshrl.u32 %v1783, 16
      %v1940 = vrot.slane %v1938, 2
      %v1941 = vshll.u32 %v1783, 16
      %v1943 = vrot.slane %v1941, 3
      %v1944 = vor.u32 %v1940, %v1943
      %v1945 = vrot.slane %v1452, 2
      %v1946 = vrot.slane %v1455, 3
      %v1947 = vor.u32 %v1945, %v1946
      %v1948 = vsel %vm1936, %v1944, %v1947
      %v1949 = vrot.slane %v1461, 2
      %v1950 = vrot.slane %v1464, 3
      %v1951 = vor.u32 %v1949, %v1950
      %v1952 = vsel %vm1936, %v1947, %v1951
      %v1953 = vrot.slane %v1470, 2
      %v1954 = vrot.slane %v1473, 3
      %v1955 = vor.u32 %v1953, %v1954
      %v1956 = vsel %vm1936, %v1951, %v1955
      %v1957 = vrot.slane %v1479, 2
      %v1958 = vrot.slane %v1482, 3
      %v1959 = vor.u32 %v1957, %v1958
      %v1960 = vsel %vm1936, %v1955, %v1959
      %v1961 = vrot.slane %v1488, 2
      %v1962 = vrot.slane %v1491, 3
      %v1963 = vor.u32 %v1961, %v1962
      %v1964 = vsel %vm1936, %v1959, %v1963
      %v1966 = vshrl.u32 %v1932, 16
      %v1968 = vrot.slane %v1966, 2
      %v1969 = vshll.u32 %v1932, 16
      %v1971 = vrot.slane %v1969, 3
      %v1972 = vor.u32 %v1968, %v1971
      %v1973 = vsel %vm1936, %v1963, %v1972
      %v1976 = vunpack.c.l.b16 %v1934
      %v1977 = vunpack.c.l.b16 %v1935
      %v1978 = vpack.c.b16 %v1977, %v1976
      %v1981 = vsel %vm762, %v1948, 0
      %v1984 = vsel %vm762, %v1952, 0
      %v1987 = vsel %vm762, %v1956, 0
      %v1990 = vsel %vm762, %v1960, 0
      %v1993 = vsel %vm762, %v1964, 0
      %v1996 = vsel %vm762, %v1973, 0
      %v1999 = vsel %vm762, %v1972, 0
      %2001 = vmatprep.subr.bf16.mxu0 0
      %2002 = vmatpush1.bf16.msra.mxu0 %v1978
      %2003 = vmatprep.subr.bf16.mxu0 0
      %2004 = vmatpush1.bf16.msra.mxu0 0
      %2005 = vmatprep.subr.bf16.mxu0 0
      %2006 = vmatpush1.bf16.msra.mxu0 0
      %2007 = vmatprep.subr.bf16.mxu0 0
      %2008 = vmatpush1.bf16.msra.mxu0 0
      %2009 = vmatprep.subr.bf16.mxu0 0
      %2010 = vmatpush1.bf16.msra.mxu0 0
      %2011 = vmatprep.subr.bf16.mxu0 0
      %2012 = vmatpush1.bf16.msra.mxu0 0
      %2013 = vmatprep.subr.bf16.mxu0 0
      %2014 = vmatpush1.bf16.msra.mxu0 0
      %2015 = vmatprep.subr.bf16.mxu0 0
      %2016 = vmatpush1.bf16.msra.mxu0 0
      %2017 = vmatprep.subr.bf16.mxu0 0
      %2018 = vmatpush1.bf16.msra.mxu0 0
      %2019 = vmatprep.subr.bf16.mxu0 0
      %2020 = vmatpush1.bf16.msra.mxu0 0
      %2021 = vmatprep.subr.bf16.mxu0 0
      %2022 = vmatpush1.bf16.msra.mxu0 0
      %2023 = vmatprep.subr.bf16.mxu0 0
      %2024 = vmatpush1.bf16.msra.mxu0 0
      %2025 = vmatprep.subr.bf16.mxu0 0
      %2026 = vmatpush1.bf16.msra.mxu0 0
      %2027 = vmatprep.subr.bf16.mxu0 0
      %2028 = vmatpush1.bf16.msra.mxu0 0
      %2029 = vmatprep.subr.bf16.mxu0 0
      %2030 = vmatpush1.bf16.msra.mxu0 0
      %2031 = vmatprep.subr.bf16.mxu0 0
      %2032 = vmatpush1.bf16.msra.mxu0 0
      %2033 = vmatprep.mubr.bf16.mxu0 0
      %2034 = vmatmul.mubr.bf16.gmra.mrb[0].mxu0 %v1981
      %v2035 = vpop.f32.mrb[0].mxu0
      %v2036 = vadd.f32 0.0, %v2035
      %v2037 = vpop.f32.mrb[0].mxu0
      %v2038 = vpop.f32.mrb[0].mxu0
      %v2039 = vadd.f32 0.0, %v2038
      %v2040 = vpop.f32.mrb[0].mxu0
      %2041 = vmatprep.mubr.bf16.mxu0 0
      %2042 = vmatmul.mubr.bf16.gmra.mrb[0].mxu0 %v1984
      %v2043 = vpop.f32.mrb[0].mxu0
      %v2044 = vadd.f32 0.0, %v2043
      %v2045 = vpop.f32.mrb[0].mxu0
      %v2046 = vpop.f32.mrb[0].mxu0
      %v2047 = vadd.f32 0.0, %v2046
      %v2048 = vpop.f32.mrb[0].mxu0
      %2049 = vmatprep.mubr.bf16.mxu0 0
      %2050 = vmatmul.mubr.bf16.gmra.mrb[0].mxu0 %v1987
      %v2051 = vpop.f32.mrb[0].mxu0
      %v2052 = vadd.f32 0.0, %v2051
      %v2053 = vpop.f32.mrb[0].mxu0
      %v2054 = vpop.f32.mrb[0].mxu0
      %v2055 = vadd.f32 0.0, %v2054
      %v2056 = vpop.f32.mrb[0].mxu0
      %2057 = vmatprep.mubr.bf16.mxu0 0
      %2058 = vmatmul.mubr.bf16.gmra.mrb[0].mxu0 %v1990
      %v2059 = vpop.f32.mrb[0].mxu0
      %v2060 = vadd.f32 0.0, %v2059
      %v2061 = vpop.f32.mrb[0].mxu0
      %v2062 = vpop.f32.mrb[0].mxu0
      %v2063 = vadd.f32 0.0, %v2062
      %v2064 = vpop.f32.mrb[0].mxu0
      %2065 = vmatprep.mubr.bf16.mxu0 0
      %2066 = vmatmul.mubr.bf16.gmra.mrb[0].mxu0 %v1993
      %v2067 = vpop.f32.mrb[0].mxu0
      %v2068 = vadd.f32 0.0, %v2067
      %v2069 = vpop.f32.mrb[0].mxu0
      %v2070 = vpop.f32.mrb[0].mxu0
      %v2071 = vadd.f32 0.0, %v2070
      %v2072 = vpop.f32.mrb[0].mxu0
      %2073 = vmatprep.mubr.bf16.mxu0 0
      %2074 = vmatmul.mubr.bf16.gmra.mrb[0].mxu0 %v1996
      %v2075 = vpop.f32.mrb[0].mxu0
      %v2076 = vadd.f32 0.0, %v2075
      %v2077 = vpop.f32.mrb[0].mxu0
      %v2078 = vpop.f32.mrb[0].mxu0
      %v2079 = vadd.f32 0.0, %v2078
      %v2080 = vpop.f32.mrb[0].mxu0
      %2081 = vmatprep.mubr.bf16.mxu0 0
      %2082 = vmatmul.mubr.bf16.gmra.mrb[0].mxu0 %v1999
      %v2083 = vpop.f32.mrb[0].mxu0
      %v2084 = vadd.f32 0.0, %v2083
      %v2085 = vpop.f32.mrb[0].mxu0
      %v2086 = vpop.f32.mrb[0].mxu0
      %v2087 = vpop.f32.mrb[0].mxu0
      %2088 = vdwg.mxu0
      %v2089 = vadd.f32 %v1919, %v2036
      %v2090 = vadd.f32 %v1920, %v2039
      %v2091 = vadd.f32 %v1921, %v2044
      %v2092 = vadd.f32 %v1922, %v2047
      %v2093 = vadd.f32 %v1923, %v2052
      %v2094 = vadd.f32 %v1924, %v2055
      %v2095 = vadd.f32 %v1925, %v2060
      %v2096 = vadd.f32 %v1926, %v2063
      %v2097 = vadd.f32 %v1927, %v2068
      %v2098 = vadd.f32 %v1928, %v2071
      %v2099 = vadd.f32 %v1929, %v2076
      %v2100 = vadd.f32 %v1930, %v2079
      %v2101 = vadd.f32 %v1931, %v2084
      %v2102 = vld [vmem:[#allocation2 + $0x8] sm:$0xf8]
      %s2103 = scalar_lea.vmem %s6, 64
      %v2104 = vld [vmem:[%s2103] sm:$0xf]
      %v2105 = vld [vmem:[%s2103 + $0x4] sm:$0xf]
      %vm2108 = vcmask 1044480
      %v2109 = vrot.slane %v2102, 3
      %v2110 = vrot.slane %v1268, 3
      %v2111 = vsel %vm2108, %v2109, %v2110
      %v2112 = vrot.slane %v1269, 3
      %v2113 = vsel %vm2108, %v2110, %v2112
      %v2114 = vrot.slane %v1270, 3
      %v2115 = vsel %vm2108, %v2112, %v2114
      %v2116 = vrot.slane %v1271, 3
      %v2117 = vsel %vm2108, %v2114, %v2116
      %v2118 = vrot.slane %v1272, 3
      %v2119 = vsel %vm2108, %v2116, %v2118
      %v2120 = vrot.slane %v1932, 3
      %v2121 = vsel %vm2108, %v2118, %v2120
      %v2124 = vunpack.c.l.b16 %v2104
      %v2125 = vunpack.c.l.b16 %v2105
      %v2126 = vpack.c.b16 %v2125, %v2124
      %v2129 = vsel %vm762, %v2111, 0
      %v2132 = vsel %vm762, %v2113, 0
      %v2135 = vsel %vm762, %v2115, 0
      %v2138 = vsel %vm762, %v2117, 0
      %v2141 = vsel %vm762, %v2119, 0
      %v2144 = vsel %vm762, %v2121, 0
      %v2147 = vsel %vm762, %v2120, 0
      %2149 = vmatprep.subr.bf16.mxu0 0
      %2150 = vmatpush1.bf16.msra.mxu0 %v2126
      %2151 = vmatprep.subr.bf16.mxu0 0
      %2152 = vmatpush1.bf16.msra.mxu0 0
      %2153 = vmatprep.subr.bf16.mxu0 0
      %2154 = vmatpush1.bf16.msra.mxu0 0
      %2155 = vmatprep.subr.bf16.mxu0 0
      %2156 = vmatpush1.bf16.msra.mxu0 0
      %2157 = vmatprep.subr.bf16.mxu0 0
      %2158 = vmatpush1.bf16.msra.mxu0 0
      %2159 = vmatprep.subr.bf16.mxu0 0
      %2160 = vmatpush1.bf16.msra.mxu0 0
      %2161 = vmatprep.subr.bf16.mxu0 0
      %2162 = vmatpush1.bf16.msra.mxu0 0
      %2163 = vmatprep.subr.bf16.mxu0 0
      %2164 = vmatpush1.bf16.msra.mxu0 0
      %2165 = vmatprep.subr.bf16.mxu0 0
      %2166 = vmatpush1.bf16.msra.mxu0 0
      %2167 = vmatprep.subr.bf16.mxu0 0
      %2168 = vmatpush1.bf16.msra.mxu0 0
      %2169 = vmatprep.subr.bf16.mxu0 0
      %2170 = vmatpush1.bf16.msra.mxu0 0
      %2171 = vmatprep.subr.bf16.mxu0 0
      %2172 = vmatpush1.bf16.msra.mxu0 0
      %2173 = vmatprep.subr.bf16.mxu0 0
      %2174 = vmatpush1.bf16.msra.mxu0 0
      %2175 = vmatprep.subr.bf16.mxu0 0
      %2176 = vmatpush1.bf16.msra.mxu0 0
      %2177 = vmatprep.subr.bf16.mxu0 0
      %2178 = vmatpush1.bf16.msra.mxu0 0
      %2179 = vmatprep.subr.bf16.mxu0 0
      %2180 = vmatpush1.bf16.msra.mxu0 0
      %2181 = vmatprep.mubr.bf16.mxu0 0
      %2182 = vmatmul.mubr.bf16.gmra.mrb[0].mxu0 %v2129
      %v2183 = vpop.f32.mrb[0].mxu0
      %v2184 = vadd.f32 0.0, %v2183
      %v2185 = vpop.f32.mrb[0].mxu0
      %v2186 = vpop.f32.mrb[0].mxu0
      %v2187 = vadd.f32 0.0, %v2186
      %v2188 = vpop.f32.mrb[0].mxu0
      %2189 = vmatprep.mubr.bf16.mxu0 0
      %2190 = vmatmul.mubr.bf16.gmra.mrb[0].mxu0 %v2132
      %v2191 = vpop.f32.mrb[0].mxu0
      %v2192 = vadd.f32 0.0, %v2191
      %v2193 = vpop.f32.mrb[0].mxu0
      %v2194 = vpop.f32.mrb[0].mxu0
      %v2195 = vadd.f32 0.0, %v2194
      %v2196 = vpop.f32.mrb[0].mxu0
      %2197 = vmatprep.mubr.bf16.mxu0 0
      %2198 = vmatmul.mubr.bf16.gmra.mrb[0].mxu0 %v2135
      %v2199 = vpop.f32.mrb[0].mxu0
      %v2200 = vadd.f32 0.0, %v2199
      %v2201 = vpop.f32.mrb[0].mxu0
      %v2202 = vpop.f32.mrb[0].mxu0
      %v2203 = vadd.f32 0.0, %v2202
      %v2204 = vpop.f32.mrb[0].mxu0
      %2205 = vmatprep.mubr.bf16.mxu0 0
      %2206 = vmatmul.mubr.bf16.gmra.mrb[0].mxu0 %v2138
      %v2207 = vpop.f32.mrb[0].mxu0
      %v2208 = vadd.f32 0.0, %v2207
      %v2209 = vpop.f32.mrb[0].mxu0
      %v2210 = vpop.f32.mrb[0].mxu0
      %v2211 = vadd.f32 0.0, %v2210
      %v2212 = vpop.f32.mrb[0].mxu0
      %2213 = vmatprep.mubr.bf16.mxu0 0
      %2214 = vmatmul.mubr.bf16.gmra.mrb[0].mxu0 %v2141
      %v2215 = vpop.f32.mrb[0].mxu0
      %v2216 = vadd.f32 0.0, %v2215
      %v2217 = vpop.f32.mrb[0].mxu0
      %v2218 = vpop.f32.mrb[0].mxu0
      %v2219 = vadd.f32 0.0, %v2218
      %v2220 = vpop.f32.mrb[0].mxu0
      %2221 = vmatprep.mubr.bf16.mxu0 0
      %2222 = vmatmul.mubr.bf16.gmra.mrb[0].mxu0 %v2144
      %v2223 = vpop.f32.mrb[0].mxu0
      %v2224 = vadd.f32 0.0, %v2223
      %v2225 = vpop.f32.mrb[0].mxu0
      %v2226 = vpop.f32.mrb[0].mxu0
      %v2227 = vadd.f32 0.0, %v2226
      %v2228 = vpop.f32.mrb[0].mxu0
      %2229 = vmatprep.mubr.bf16.mxu0 0
      %2230 = vmatmul.mubr.bf16.gmra.mrb[0].mxu0 %v2147
      %v2231 = vpop.f32.mrb[0].mxu0
      %v2232 = vadd.f32 0.0, %v2231
      %v2233 = vpop.f32.mrb[0].mxu0
      %v2234 = vpop.f32.mrb[0].mxu0
      %v2235 = vpop.f32.mrb[0].mxu0
      %2236 = vdwg.mxu0
      %v2237 = vadd.f32 %v2089, %v2184
      %v2238 = vadd.f32 %v2090, %v2187
      %v2239 = vadd.f32 %v2091, %v2192
      %v2240 = vadd.f32 %v2092, %v2195
      %v2241 = vadd.f32 %v2093, %v2200
      %v2242 = vadd.f32 %v2094, %v2203
      %v2243 = vadd.f32 %v2095, %v2208
      %v2244 = vadd.f32 %v2096, %v2211
      %v2245 = vadd.f32 %v2097, %v2216
      %v2246 = vadd.f32 %v2098, %v2219
      %v2247 = vadd.f32 %v2099, %v2224
      %v2248 = vadd.f32 %v2100, %v2227
      %v2249 = vadd.f32 %v2101, %v2232
      %v2250 = vld [vmem:[%s556] sm:$0xff]
      %v2251 = vld [vmem:[%s556 + $0x8] sm:$0xff]
      %v2252 = vld [vmem:[%s556 + $0x10] sm:$0xff]
      %v2253 = vld [vmem:[%s556 + $0x18] sm:$0xff]
      %v2254 = vld [vmem:[%s556 + $0x20] sm:$0xff]
      %v2255 = vld [vmem:[%s556 + $0x28] sm:$0xff]
      %v2256 = vld [vmem:[%s556 + $0x30] sm:$0xff]
      %v2257 = vld [vmem:[%s556 + $0x38] sm:$0xff]
      %v2258 = vld [vmem:[%s556 + $0x40] sm:$0xff]
      %v2259 = vld [vmem:[%s556 + $0x48] sm:$0xff]
      %v2260 = vld [vmem:[%s556 + $0x50] sm:$0xff]
      %v2261 = vld [vmem:[%s556 + $0x58] sm:$0xff]
      %v2262 = vld [vmem:[%s556 + $0x60] sm:$0xff]
      %v2263 = vpack.c.bf16 %v2238, %v2237
      %v2264 = vpack.c.bf16 %v2240, %v2239
      %v2265 = vpack.c.bf16 %v2242, %v2241
      %v2266 = vpack.c.bf16 %v2244, %v2243
      %v2267 = vpack.c.bf16 %v2246, %v2245
      %v2268 = vpack.c.bf16 %v2248, %v2247
      %v2269 = vpack.c.bf16 %v2249, %v2249
      %v2277 = vunpack.c.l.b16 %v2263
      %v2278 = vunpack.c.h.b16 %v2263
      %v2279 = vunpack.c.l.b16 %v2264
      %v2280 = vunpack.c.h.b16 %v2264
      %v2281 = vunpack.c.l.b16 %v2265
      %v2282 = vunpack.c.h.b16 %v2265
      %v2283 = vunpack.c.l.b16 %v2266
      %v2284 = vunpack.c.h.b16 %v2266
      %v2285 = vunpack.c.l.b16 %v2267
      %v2286 = vunpack.c.h.b16 %v2267
      %v2287 = vunpack.c.l.b16 %v2268
      %v2288 = vunpack.c.h.b16 %v2268
      %v2289 = vunpack.c.l.b16 %v2269
      %v2290 = vpack.c.b16 %v2277, %v2277
      %v2291 = vpack.c.b16 %v2278, %v2278
      %v2292 = vpack.c.b16 %v2279, %v2279
      %v2293 = vpack.c.b16 %v2280, %v2280
      %v2294 = vpack.c.b16 %v2281, %v2281
      %v2295 = vpack.c.b16 %v2282, %v2282
      %v2296 = vpack.c.b16 %v2283, %v2283
      %v2297 = vpack.c.b16 %v2284, %v2284
      %v2298 = vpack.c.b16 %v2285, %v2285
      %v2299 = vpack.c.b16 %v2286, %v2286
      %v2300 = vpack.c.b16 %v2287, %v2287
      %v2301 = vpack.c.b16 %v2288, %v2288
      %v2302 = vpack.c.b16 %v2289, %v2289
      %2316 = vst.msk [vmem:[%s568] sm:$0xf] %vm769, %v2290
      %2317 = vst.msk [vmem:[%s568 + $0x4] sm:$0xf] %vm769, %v2291
      %2318 = vst.msk [vmem:[%s568 + $0x8] sm:$0xf] %vm769, %v2292
      %2319 = vst.msk [vmem:[%s568 + $0xc] sm:$0xf] %vm769, %v2293
      %2320 = vst.msk [vmem:[%s568 + $0x10] sm:$0xf] %vm769, %v2294
      %2321 = vst.msk [vmem:[%s568 + $0x14] sm:$0xf] %vm769, %v2295
      %2322 = vst.msk [vmem:[%s568 + $0x18] sm:$0xf] %vm769, %v2296
      %2323 = vst.msk [vmem:[%s568 + $0x1c] sm:$0xf] %vm769, %v2297
      %2324 = vst.msk [vmem:[%s568 + $0x20] sm:$0xf] %vm769, %v2298
      %2325 = vst.msk [vmem:[%s568 + $0x24] sm:$0xf] %vm769, %v2299
      %2326 = vst.msk [vmem:[%s568 + $0x28] sm:$0xf] %vm769, %v2300
      %2327 = vst.msk [vmem:[%s568 + $0x2c] sm:$0xf] %vm769, %v2301
      %2328 = vst.msk [vmem:[%s568 + $0x30] sm:$0xf] %vm769, %v2302
      %2330 = vset.pattern.permute.xlu0 0
      %2331 = vperm.xlu0 %2330, %v2250
      %v2332 = vpop.permute.xlu0 %2331
      %2335 = vset.pattern.permute.xlu0 0
      %2336 = vperm.xlu0 %2335, %v2251
      %v2337 = vpop.permute.xlu0 %2336
      %2340 = vset.pattern.permute.xlu0 0
      %2341 = vperm.xlu0 %2340, %v2252
      %v2342 = vpop.permute.xlu0 %2341
      %2345 = vset.pattern.permute.xlu0 0
      %2346 = vperm.xlu0 %2345, %v2253
      %v2347 = vpop.permute.xlu0 %2346
      %2350 = vset.pattern.permute.xlu0 0
      %2351 = vperm.xlu0 %2350, %v2254
      %v2352 = vpop.permute.xlu0 %2351
      %2355 = vset.pattern.permute.xlu0 0
      %2356 = vperm.xlu0 %2355, %v2255
      %v2357 = vpop.permute.xlu0 %2356
      %2360 = vset.pattern.permute.xlu0 0
      %2361 = vperm.xlu0 %2360, %v2256
      %v2362 = vpop.permute.xlu0 %2361
      %2365 = vset.pattern.permute.xlu0 0
      %2366 = vperm.xlu0 %2365, %v2257
      %v2367 = vpop.permute.xlu0 %2366
      %2370 = vset.pattern.permute.xlu0 0
      %2371 = vperm.xlu0 %2370, %v2258
      %v2372 = vpop.permute.xlu0 %2371
      %2375 = vset.pattern.permute.xlu0 0
      %2376 = vperm.xlu0 %2375, %v2259
      %v2377 = vpop.permute.xlu0 %2376
      %2380 = vset.pattern.permute.xlu0 0
      %2381 = vperm.xlu0 %2380, %v2260
      %v2382 = vpop.permute.xlu0 %2381
      %2385 = vset.pattern.permute.xlu0 0
      %2386 = vperm.xlu0 %2385, %v2261
      %v2387 = vpop.permute.xlu0 %2386
      %2390 = vset.pattern.permute.xlu0 0
      %2391 = vperm.xlu0 %2390, %v2262
      %v2392 = vpop.permute.xlu0 %2391
      %v2394 = vmul.f32 %v2237, %v2332
      %v2395 = vmul.f32 %v2238, %v2337
      %v2396 = vmul.f32 %v2239, %v2342
      %v2397 = vmul.f32 %v2240, %v2347
      %v2398 = vmul.f32 %v2241, %v2352
      %v2399 = vmul.f32 %v2242, %v2357
      %v2400 = vmul.f32 %v2243, %v2362
      %v2401 = vmul.f32 %v2244, %v2367
      %v2402 = vmul.f32 %v2245, %v2372
      %v2403 = vmul.f32 %v2246, %v2377
      %v2404 = vmul.f32 %v2247, %v2382
      %v2405 = vmul.f32 %v2248, %v2387
      %v2406 = vmul.f32 %v2249, %v2392
      %v2407 = vsel %vm762, %v2394, 0.0
      %v2408 = vsel %vm762, %v2395, 0.0
      %v2409 = vadd.f32 %v2407, %v2408
      %v2410 = vsel %vm762, %v2396, 0.0
      %v2411 = vadd.f32 %v2409, %v2410
      %v2412 = vsel %vm762, %v2397, 0.0
      %v2413 = vadd.f32 %v2411, %v2412
      %v2414 = vsel %vm762, %v2398, 0.0
      %v2415 = vadd.f32 %v2413, %v2414
      %v2416 = vsel %vm762, %v2399, 0.0
      %v2417 = vadd.f32 %v2415, %v2416
      %v2418 = vsel %vm762, %v2400, 0.0
      %v2419 = vadd.f32 %v2417, %v2418
      %v2420 = vsel %vm762, %v2401, 0.0
      %v2421 = vadd.f32 %v2419, %v2420
      %v2422 = vsel %vm762, %v2402, 0.0
      %v2423 = vadd.f32 %v2421, %v2422
      %v2424 = vsel %vm762, %v2403, 0.0
      %v2425 = vadd.f32 %v2423, %v2424
      %v2426 = vsel %vm762, %v2404, 0.0
      %v2427 = vadd.f32 %v2425, %v2426
      %v2428 = vsel %vm762, %v2405, 0.0
      %v2429 = vadd.f32 %v2427, %v2428
      %v2430 = vsel %vm762, %v2406, 0.0
      %v2431 = vadd.f32 %v2429, %v2430
      %v2432 = vrot.slane %v2431, 4
      %v2433 = vadd.f32 %v2431, %v2432
      %v2434 = vrot.slane %v2433, 2
      %v2435 = vadd.f32 %v2433, %v2434
      %v2436 = vrot.slane %v2435, 1
      %v2437 = vadd.f32 %v2435, %v2436
      %v2438 = vmul.f32 %v2237, %v2394
      %v2439 = vmul.f32 %v2238, %v2395
      %v2440 = vmul.f32 %v2239, %v2396
      %v2441 = vmul.f32 %v2240, %v2397
      %v2442 = vmul.f32 %v2241, %v2398
      %v2443 = vmul.f32 %v2242, %v2399
      %v2444 = vmul.f32 %v2243, %v2400
      %v2445 = vmul.f32 %v2244, %v2401
      %v2446 = vmul.f32 %v2245, %v2402
      %v2447 = vmul.f32 %v2246, %v2403
      %v2448 = vmul.f32 %v2247, %v2404
      %v2449 = vmul.f32 %v2248, %v2405
      %v2450 = vmul.f32 %v2249, %v2406
      %v2451 = vsel %vm762, %v2438, 0.0
      %v2452 = vsel %vm762, %v2439, 0.0
      %v2453 = vadd.f32 %v2451, %v2452
      %v2454 = vsel %vm762, %v2440, 0.0
      %v2455 = vadd.f32 %v2453, %v2454
      %v2456 = vsel %vm762, %v2441, 0.0
      %v2457 = vadd.f32 %v2455, %v2456
      %v2458 = vsel %vm762, %v2442, 0.0
      %v2459 = vadd.f32 %v2457, %v2458
      %v2460 = vsel %vm762, %v2443, 0.0
      %v2461 = vadd.f32 %v2459, %v2460
      %v2462 = vsel %vm762, %v2444, 0.0
      %v2463 = vadd.f32 %v2461, %v2462
      %v2464 = vsel %vm762, %v2445, 0.0
      %v2465 = vadd.f32 %v2463, %v2464
      %v2466 = vsel %vm762, %v2446, 0.0
      %v2467 = vadd.f32 %v2465, %v2466
      %v2468 = vsel %vm762, %v2447, 0.0
      %v2469 = vadd.f32 %v2467, %v2468
      %v2470 = vsel %vm762, %v2448, 0.0
      %v2471 = vadd.f32 %v2469, %v2470
      %v2472 = vsel %vm762, %v2449, 0.0
      %v2473 = vadd.f32 %v2471, %v2472
      %v2474 = vsel %vm762, %v2450, 0.0
      %v2475 = vadd.f32 %v2473, %v2474
      %v2476 = vrot.slane %v2475, 4
      %v2477 = vadd.f32 %v2475, %v2476
      %v2478 = vrot.slane %v2477, 2
      %v2479 = vadd.f32 %v2477, %v2478
      %v2480 = vrot.slane %v2479, 1
      %v2481 = vadd.f32 %v2479, %v2480
      %v2482 = vlaneseq
      %v2483 = vshrl.u32 %v2482, 7
      %vm2484 = vcmp.eq.s32.totalorder %v2483, 0
      %vm2485 = vcmp.eq.s32.totalorder %v2483, 1
      %v2486 = vsel %vm2485, %v2481, 0.0
      %v2487 = vsel %vm2484, %v2437, %v2486
      %2488 = vst.msk [vmem:[%s573] sm:$0xff] %vm762, %v2487
      %v2489 = vld [vmem:[%s562] sm:$0xf]
      %v2490 = vld [vmem:[%s562 + $0x4] sm:$0xf]
      %v2491 = vld [vmem:[%s562 + $0x8] sm:$0xf]
      %v2492 = vld [vmem:[%s562 + $0xc] sm:$0xf]
      %v2493 = vld [vmem:[%s562 + $0x10] sm:$0xf]
      %v2494 = vld [vmem:[%s562 + $0x14] sm:$0xf]
      %v2495 = vld [vmem:[%s562 + $0x18] sm:$0xf]
      %v2496 = vld [vmem:[%s562 + $0x1c] sm:$0xf]
      %v2497 = vld [vmem:[%s562 + $0x20] sm:$0xf]
      %v2498 = vld [vmem:[%s562 + $0x24] sm:$0xf]
      %v2499 = vld [vmem:[%s562 + $0x28] sm:$0xf]
      %v2500 = vld [vmem:[%s562 + $0x2c] sm:$0xf]
      %v2501 = vld [vmem:[%s562 + $0x30] sm:$0xf]
      %v2502 = vld [vmem:[%s9] sm:$0xf]
      %v2516 = vunpack.c.l.b16 %v2489
      %v2517 = vunpack.c.l.b16 %v2490
      %v2518 = vunpack.c.l.b16 %v2491
      %v2519 = vunpack.c.l.b16 %v2492
      %v2520 = vunpack.c.l.b16 %v2493
      %v2521 = vunpack.c.l.b16 %v2494
      %v2522 = vunpack.c.l.b16 %v2495
      %v2523 = vunpack.c.l.b16 %v2496
      %v2524 = vunpack.c.l.b16 %v2497
      %v2525 = vunpack.c.l.b16 %v2498
      %v2526 = vunpack.c.l.b16 %v2499
      %v2527 = vunpack.c.l.b16 %v2500
      %v2528 = vunpack.c.l.b16 %v2501
      %v2529 = vpack.c.b16 %v2517, %v2516
      %v2530 = vpack.c.b16 %v2519, %v2518
      %v2531 = vpack.c.b16 %v2521, %v2520
      %v2532 = vpack.c.b16 %v2523, %v2522
      %v2533 = vpack.c.b16 %v2525, %v2524
      %v2534 = vpack.c.b16 %v2527, %v2526
      %v2535 = vpack.c.b16 %v2528, %v2528
      %vm2536 = vcmask 64512
      %v2538 = vsel %vm2536, %v2529, 0
      %v2541 = vsel %vm2536, %v2530, 0
      %v2544 = vsel %vm2536, %v2531, 0
      %v2547 = vsel %vm2536, %v2532, 0
      %v2550 = vsel %vm2536, %v2533, 0
      %v2553 = vsel %vm2536, %v2534, 0
      %v2556 = vsel %vm2536, %v2535, 0
      %vm2558 = vcmask 1043456
      %v2560 = vsel %vm2558, %v2502, 0
      %2562 = vmatprep.subr.bf16.mxu0 0
      %2563 = vmatpush1.bf16.msra.mxu0 %v2560
      %2564 = vmatprep.subr.bf16.mxu0 0
      %2565 = vmatpush1.bf16.msra.mxu0 0
      %2566 = vmatprep.subr.bf16.mxu0 0
      %2567 = vmatpush1.bf16.msra.mxu0 0
      %2568 = vmatprep.subr.bf16.mxu0 0
      %2569 = vmatpush1.bf16.msra.mxu0 0
      %2570 = vmatprep.subr.bf16.mxu0 0
      %2571 = vmatpush1.bf16.msra.mxu0 0
      %2572 = vmatprep.subr.bf16.mxu0 0
      %2573 = vmatpush1.bf16.msra.mxu0 0
      %2574 = vmatprep.subr.bf16.mxu0 0
      %2575 = vmatpush1.bf16.msra.mxu0 0
      %2576 = vmatprep.subr.bf16.mxu0 0
      %2577 = vmatpush1.bf16.msra.mxu0 0
      %2578 = vmatprep.subr.bf16.mxu0 0
      %2579 = vmatpush1.bf16.msra.mxu0 0
      %2580 = vmatprep.subr.bf16.mxu0 0
      %2581 = vmatpush1.bf16.msra.mxu0 0
      %2582 = vmatprep.subr.bf16.mxu0 0
      %2583 = vmatpush1.bf16.msra.mxu0 0
      %2584 = vmatprep.subr.bf16.mxu0 0
      %2585 = vmatpush1.bf16.msra.mxu0 0
      %2586 = vmatprep.subr.bf16.mxu0 0
      %2587 = vmatpush1.bf16.msra.mxu0 0
      %2588 = vmatprep.subr.bf16.mxu0 0
      %2589 = vmatpush1.bf16.msra.mxu0 0
      %2590 = vmatprep.subr.bf16.mxu0 0
      %2591 = vmatpush1.bf16.msra.mxu0 0
      %2592 = vmatprep.subr.bf16.mxu0 0
      %2593 = vmatpush1.bf16.msra.mxu0 0
      %2594 = vmatprep.mubr.bf16.mxu0 0
      %2595 = vmatmul.mubr.bf16.gmra.mrb[0].mxu0 %v2538
      %v2596 = vpop.f32.mrb[0].mxu0
      %v2597 = vadd.f32 0.0, %v2596
      %v2598 = vpop.f32.mrb[0].mxu0
      %v2599 = vpop.f32.mrb[0].mxu0
      %v2600 = vadd.f32 0.0, %v2599
      %v2601 = vpop.f32.mrb[0].mxu0
      %2602 = vmatprep.mubr.bf16.mxu0 0
      %2603 = vmatmul.mubr.bf16.gmra.mrb[0].mxu0 %v2541
      %v2604 = vpop.f32.mrb[0].mxu0
      %v2605 = vadd.f32 0.0, %v2604
      %v2606 = vpop.f32.mrb[0].mxu0
      %v2607 = vpop.f32.mrb[0].mxu0
      %v2608 = vadd.f32 0.0, %v2607
      %v2609 = vpop.f32.mrb[0].mxu0
      %2610 = vmatprep.mubr.bf16.mxu0 0
      %2611 = vmatmul.mubr.bf16.gmra.mrb[0].mxu0 %v2544
      %v2612 = vpop.f32.mrb[0].mxu0
      %v2613 = vadd.f32 0.0, %v2612
      %v2614 = vpop.f32.mrb[0].mxu0
      %v2615 = vpop.f32.mrb[0].mxu0
      %v2616 = vadd.f32 0.0, %v2615
      %v2617 = vpop.f32.mrb[0].mxu0
      %2618 = vmatprep.mubr.bf16.mxu0 0
      %2619 = vmatmul.mubr.bf16.gmra.mrb[0].mxu0 %v2547
      %v2620 = vpop.f32.mrb[0].mxu0
      %v2621 = vadd.f32 0.0, %v2620
      %v2622 = vpop.f32.mrb[0].mxu0
      %v2623 = vpop.f32.mrb[0].mxu0
      %v2624 = vadd.f32 0.0, %v2623
      %v2625 = vpop.f32.mrb[0].mxu0
      %2626 = vmatprep.mubr.bf16.mxu0 0
      %2627 = vmatmul.mubr.bf16.gmra.mrb[0].mxu0 %v2550
      %v2628 = vpop.f32.mrb[0].mxu0
      %v2629 = vadd.f32 0.0, %v2628
      %v2630 = vpop.f32.mrb[0].mxu0
      %v2631 = vpop.f32.mrb[0].mxu0
      %v2632 = vadd.f32 0.0, %v2631
      %v2633 = vpop.f32.mrb[0].mxu0
      %2634 = vmatprep.mubr.bf16.mxu0 0
      %2635 = vmatmul.mubr.bf16.gmra.mrb[0].mxu0 %v2553
      %v2636 = vpop.f32.mrb[0].mxu0
      %v2637 = vadd.f32 0.0, %v2636
      %v2638 = vpop.f32.mrb[0].mxu0
      %v2639 = vpop.f32.mrb[0].mxu0
      %v2640 = vadd.f32 0.0, %v2639
      %v2641 = vpop.f32.mrb[0].mxu0
      %2642 = vmatprep.mubr.bf16.mxu0 0
      %2643 = vmatmul.mubr.bf16.gmra.mrb[0].mxu0 %v2556
      %v2644 = vpop.f32.mrb[0].mxu0
      %v2645 = vadd.f32 0.0, %v2644
      %v2646 = vpop.f32.mrb[0].mxu0
      %v2647 = vpop.f32.mrb[0].mxu0
      %v2648 = vpop.f32.mrb[0].mxu0
      %2649 = vdwg.mxu0
      %v2650 = vpack.c.bf16 %v2600, %v2597
      %v2651 = vpack.c.bf16 %v2608, %v2605
      %v2652 = vpack.c.bf16 %v2616, %v2613
      %v2653 = vpack.c.bf16 %v2624, %v2621
      %v2654 = vpack.c.bf16 %v2632, %v2629
      %v2655 = vpack.c.bf16 %v2640, %v2637
      %v2656 = vpack.c.bf16 %v2645, %v2645
      %v2664 = vunpack.c.l.b16 %v2650
      %v2665 = vunpack.c.h.b16 %v2650
      %v2666 = vunpack.c.l.b16 %v2651
      %v2667 = vunpack.c.h.b16 %v2651
      %v2668 = vunpack.c.l.b16 %v2652
      %v2669 = vunpack.c.h.b16 %v2652
      %v2670 = vunpack.c.l.b16 %v2653
      %v2671 = vunpack.c.h.b16 %v2653
      %v2672 = vunpack.c.l.b16 %v2654
      %v2673 = vunpack.c.h.b16 %v2654
      %v2674 = vunpack.c.l.b16 %v2655
      %v2675 = vunpack.c.h.b16 %v2655
      %v2676 = vunpack.c.l.b16 %v2656
      %v2677 = vpack.c.b16 %v2664, %v2664
      %v2678 = vpack.c.b16 %v2665, %v2665
      %v2679 = vpack.c.b16 %v2666, %v2666
      %v2680 = vpack.c.b16 %v2667, %v2667
      %v2681 = vpack.c.b16 %v2668, %v2668
      %v2682 = vpack.c.b16 %v2669, %v2669
      %v2683 = vpack.c.b16 %v2670, %v2670
      %v2684 = vpack.c.b16 %v2671, %v2671
      %v2685 = vpack.c.b16 %v2672, %v2672
      %v2686 = vpack.c.b16 %v2673, %v2673
      %v2687 = vpack.c.b16 %v2674, %v2674
      %v2688 = vpack.c.b16 %v2675, %v2675
      %v2689 = vpack.c.b16 %v2676, %v2676
      %2703 = vst.msk [vmem:[%s578] sm:$0xf] %vm769, %v2677
      %2704 = vst.msk [vmem:[%s578 + $0x4] sm:$0xf] %vm769, %v2678
      %2705 = vst.msk [vmem:[%s578 + $0x8] sm:$0xf] %vm769, %v2679
      %2706 = vst.msk [vmem:[%s578 + $0xc] sm:$0xf] %vm769, %v2680
      %2707 = vst.msk [vmem:[%s578 + $0x10] sm:$0xf] %vm769, %v2681
      %2708 = vst.msk [vmem:[%s578 + $0x14] sm:$0xf] %vm769, %v2682
      %2709 = vst.msk [vmem:[%s578 + $0x18] sm:$0xf] %vm769, %v2683
      %2710 = vst.msk [vmem:[%s578 + $0x1c] sm:$0xf] %vm769, %v2684
      %2711 = vst.msk [vmem:[%s578 + $0x20] sm:$0xf] %vm769, %v2685
      %2712 = vst.msk [vmem:[%s578 + $0x24] sm:$0xf] %vm769, %v2686
      %2713 = vst.msk [vmem:[%s578 + $0x28] sm:$0xf] %vm769, %v2687
      %2714 = vst.msk [vmem:[%s578 + $0x2c] sm:$0xf] %vm769, %v2688
      %2715 = vst.msk [vmem:[%s578 + $0x30] sm:$0xf] %vm769, %v2689
      %v2716 = vmul.f32 %v2597, %v2332
      %v2717 = vmul.f32 %v2600, %v2337
      %v2718 = vmul.f32 %v2605, %v2342
      %v2719 = vmul.f32 %v2608, %v2347
      %v2720 = vmul.f32 %v2613, %v2352
      %v2721 = vmul.f32 %v2616, %v2357
      %v2722 = vmul.f32 %v2621, %v2362
      %v2723 = vmul.f32 %v2624, %v2367
      %v2724 = vmul.f32 %v2629, %v2372
      %v2725 = vmul.f32 %v2632, %v2377
      %v2726 = vmul.f32 %v2637, %v2382
      %v2727 = vmul.f32 %v2640, %v2387
      %v2728 = vmul.f32 %v2645, %v2392
      %v2729 = vsel %vm762, %v2716, 0.0
      %v2730 = vsel %vm762, %v2717, 0.0
      %v2731 = vadd.f32 %v2729, %v2730
      %v2732 = vsel %vm762, %v2718, 0.0
      %v2733 = vadd.f32 %v2731, %v2732
      %v2734 = vsel %vm762, %v2719, 0.0
      %v2735 = vadd.f32 %v2733, %v2734
      %v2736 = vsel %vm762, %v2720, 0.0
      %v2737 = vadd.f32 %v2735, %v2736
      %v2738 = vsel %vm762, %v2721, 0.0
      %v2739 = vadd.f32 %v2737, %v2738
      %v2740 = vsel %vm762, %v2722, 0.0
      %v2741 = vadd.f32 %v2739, %v2740
      %v2742 = vsel %vm762, %v2723, 0.0
      %v2743 = vadd.f32 %v2741, %v2742
      %v2744 = vsel %vm762, %v2724, 0.0
      %v2745 = vadd.f32 %v2743, %v2744
      %v2746 = vsel %vm762, %v2725, 0.0
      %v2747 = vadd.f32 %v2745, %v2746
      %v2748 = vsel %vm762, %v2726, 0.0
      %v2749 = vadd.f32 %v2747, %v2748
      %v2750 = vsel %vm762, %v2727, 0.0
      %v2751 = vadd.f32 %v2749, %v2750
      %v2752 = vsel %vm762, %v2728, 0.0
      %v2753 = vadd.f32 %v2751, %v2752
      %v2754 = vrot.slane %v2753, 4
      %v2755 = vadd.f32 %v2753, %v2754
      %v2756 = vrot.slane %v2755, 2
      %v2757 = vadd.f32 %v2755, %v2756
      %v2758 = vrot.slane %v2757, 1
      %v2759 = vadd.f32 %v2757, %v2758
      %v2760 = vmul.f32 %v2597, %v2716
      %v2761 = vmul.f32 %v2600, %v2717
      %v2762 = vmul.f32 %v2605, %v2718
      %v2763 = vmul.f32 %v2608, %v2719
      %v2764 = vmul.f32 %v2613, %v2720
      %v2765 = vmul.f32 %v2616, %v2721
      %v2766 = vmul.f32 %v2621, %v2722
      %v2767 = vmul.f32 %v2624, %v2723
      %v2768 = vmul.f32 %v2629, %v2724
      %v2769 = vmul.f32 %v2632, %v2725
      %v2770 = vmul.f32 %v2637, %v2726
      %v2771 = vmul.f32 %v2640, %v2727
      %v2772 = vmul.f32 %v2645, %v2728
      %v2773 = vsel %vm762, %v2760, 0.0
      %v2774 = vsel %vm762, %v2761, 0.0
      %v2775 = vadd.f32 %v2773, %v2774
      %v2776 = vsel %vm762, %v2762, 0.0
      %v2777 = vadd.f32 %v2775, %v2776
      %v2778 = vsel %vm762, %v2763, 0.0
      %v2779 = vadd.f32 %v2777, %v2778
      %v2780 = vsel %vm762, %v2764, 0.0
      %v2781 = vadd.f32 %v2779, %v2780
      %v2782 = vsel %vm762, %v2765, 0.0
      %v2783 = vadd.f32 %v2781, %v2782
      %v2784 = vsel %vm762, %v2766, 0.0
      %v2785 = vadd.f32 %v2783, %v2784
      %v2786 = vsel %vm762, %v2767, 0.0
      %v2787 = vadd.f32 %v2785, %v2786
      %v2788 = vsel %vm762, %v2768, 0.0
      %v2789 = vadd.f32 %v2787, %v2788
      %v2790 = vsel %vm762, %v2769, 0.0
      %v2791 = vadd.f32 %v2789, %v2790
      %v2792 = vsel %vm762, %v2770, 0.0
      %v2793 = vadd.f32 %v2791, %v2792
      %v2794 = vsel %vm762, %v2771, 0.0
      %v2795 = vadd.f32 %v2793, %v2794
      %v2796 = vsel %vm762, %v2772, 0.0
      %v2797 = vadd.f32 %v2795, %v2796
      %v2798 = vrot.slane %v2797, 4
      %v2799 = vadd.f32 %v2797, %v2798
      %v2800 = vrot.slane %v2799, 2
      %v2801 = vadd.f32 %v2799, %v2800
      %v2802 = vrot.slane %v2801, 1
      %v2803 = vadd.f32 %v2801, %v2802
      %v2804 = vsel %vm2485, %v2803, 0.0
      %v2805 = vsel %vm2484, %v2759, %v2804
      %2806 = vst.msk [vmem:[%s583] sm:$0xff] %vm762, %v2805
      %s2807 = smul.u32 13, %s25
      %p2808 = scmp.lt.s32.totalorder %s2807, 25
      %s2809 = scalar_select %p2808, %s2807, 25
      %s2810 = smul.addr %s2809, 4
      %s2811 = scalar_lea.vmem %s10, %s2810
      %p2812 = scmp.lt.s32.totalorder %s25, 1
      %s2813 = scalar_select %p2812, %s25, 1
      %s2814 = smul.addr %s2813, 8
      %s2815 = scalar_lea.vmem %s11, %s2814
      %s2816 = smul.u32 13, %s25
      %p2817 = scmp.lt.s32.totalorder %s2816, 25
      %s2818 = scalar_select %p2817, %s2816, 25
      %s2819 = smul.addr %s2818, 4
      %s2820 = scalar_lea.vmem %s12, %s2819
      %p2821 = scmp.lt.s32.totalorder %s25, 1
      %s2822 = scalar_select %p2821, %s25, 1
      %s2823 = smul.addr %s2822, 8
      %s2824 = scalar_lea.vmem %s13, %s2823
      // Predicated region
      $region61: #{basic_block_forward.4} parent=59 // pred_check
        %p2825 = pneg %p283
      $region62: #{basic_block_forward.4} parent=59 // pred_check_branch
        %2827 = sbr.rel (%p2825) target = $region64
      $region63: #{basic_block_forward.4} parent=59 // pred_region
        %s2828 = smul.u32 13, %s25
      $region64: #{basic_block_forward.4} parent=59 // pred_fallthru
        _
      // Predicated region
      $region65: #{basic_block_forward.4} parent=59 // pred_check
        %p2829 = pneg %p309
      $region66: #{basic_block_forward.4} parent=59 // pred_check_branch
        %2831 = sbr.rel (%p2829) target = $region68
      $region67: #{basic_block_forward.4} parent=59 // pred_region
        _
      $region68: #{basic_block_forward.4} parent=59 // pred_fallthru
        _
      // Predicated region
      $region69: #{basic_block_forward.4} parent=59 // pred_check
        %p2832 = pneg %p335
      $region70: #{basic_block_forward.4} parent=59 // pred_check_branch
        %2834 = sbr.rel (%p2832) target = $region72
      $region71: #{basic_block_forward.4} parent=59 // pred_region
        %s2835 = smul.u32 13, %s25
      $region72: #{basic_block_forward.4} parent=59 // pred_fallthru
        _
      // Predicated region
      $region73: #{basic_block_forward.4} parent=59 // pred_check
        %p2836 = pneg %p361
      $region74: #{basic_block_forward.4} parent=59 // pred_check_branch
        %2838 = sbr.rel (%p2836) target = $region76
      $region75: #{basic_block_forward.4} parent=59 // pred_region
        _
      $region76: #{basic_block_forward.4} parent=59 // pred_fallthru
        _
    $region60: #{basic_block_forward.4} parent=5 // pred_fallthru
      _
    %p2839 = scmp.le.s32.totalorder 2, %s20
    // Predicated region
    $region77: #{basic_block_forward.4} parent=5 // pred_check
      %p2840 = pneg %p2839
    $region78: #{basic_block_forward.4} parent=5 // pred_check_branch
      %2842 = sbr.rel (%p2840) target = $region80
    $region79: #{basic_block_forward.4} parent=5 // pred_region
      %s2843 = ssub.s32 %s20, 2
      // Predicated region
      $region81: #{basic_block_forward.4} parent=79 // pred_check
        %p2844 = pneg %p289
      $region82: #{basic_block_forward.4} parent=79 // pred_check_branch
        %2846 = sbr.rel (%p2844) target = $region84
      $region83: #{basic_block_forward.4} parent=79 // pred_region
        %s2847 = smul.u32 13, %s26
        %p2848 = scmp.lt.s32.totalorder %s2847, 25
        %s2849 = scalar_select %p2848, %s2847, 25
        %s2850 = smul.addr %s2849, 4
        %s2851 = scalar_lea.vmem %s10, %s2850
      $region84: #{basic_block_forward.4} parent=79 // pred_fallthru
        _
      // Predicated region
      $region85: #{basic_block_forward.4} parent=79 // pred_check
        %p2852 = pneg %p315
      $region86: #{basic_block_forward.4} parent=79 // pred_check_branch
        %2854 = sbr.rel (%p2852) target = $region88
      $region87: #{basic_block_forward.4} parent=79 // pred_region
        %p2855 = scmp.lt.s32.totalorder %s26, 1
        %s2856 = scalar_select %p2855, %s26, 1
        %s2857 = smul.addr %s2856, 8
        %s2858 = scalar_lea.vmem %s11, %s2857
      $region88: #{basic_block_forward.4} parent=79 // pred_fallthru
        _
      // Predicated region
      $region89: #{basic_block_forward.4} parent=79 // pred_check
        %p2859 = pneg %p341
      $region90: #{basic_block_forward.4} parent=79 // pred_check_branch
        %2861 = sbr.rel (%p2859) target = $region92
      $region91: #{basic_block_forward.4} parent=79 // pred_region
        %s2862 = smul.u32 13, %s26
        %p2863 = scmp.lt.s32.totalorder %s2862, 25
        %s2864 = scalar_select %p2863, %s2862, 25
        %s2865 = smul.addr %s2864, 4
        %s2866 = scalar_lea.vmem %s12, %s2865
      $region92: #{basic_block_forward.4} parent=79 // pred_fallthru
        _
      // Predicated region
      $region93: #{basic_block_forward.4} parent=79 // pred_check
        %p2867 = pneg %p367
      $region94: #{basic_block_forward.4} parent=79 // pred_check_branch
        %2869 = sbr.rel (%p2867) target = $region96
      $region95: #{basic_block_forward.4} parent=79 // pred_region
        %p2870 = scmp.lt.s32.totalorder %s26, 1
        %s2871 = scalar_select %p2870, %s26, 1
        %s2872 = smul.addr %s2871, 8
        %s2873 = scalar_lea.vmem %s13, %s2872
      $region96: #{basic_block_forward.4} parent=79 // pred_fallthru
        _
    $region80: #{basic_block_forward.4} parent=5 // pred_fallthru
      _
  $region6: #{basic_block_forward.4} parent=0 // loop_footer
    %s24 = sadd.s32 1, %s20
  $region7: #{basic_block_forward.4} parent=0 // loop_footer_branch
    %19 = sbr.rel target = $region3
  $region8: #{basic_block_forward.4} parent=0 // loop_exit
    _

</llo_original>
